<compile_context>
chip_gen: v7x
topology: tpu7x:2x2x1
jax: 0.10.0
libtpu: 0.0.40
codegen_flags: <defaults>
</compile_context>

<pallas_src>
import functools

import jax
import jax.numpy as jnp
from jax import lax
from jax.experimental import pallas as pl
from jax.experimental.pallas import tpu as pltpu

VMEM_LIMIT = 48 * 1024 * 1024          # safe on v5e/v6e (128 MiB) and v7x (64 MiB)
Z_RESIDENT_BUDGET = 36 * 1024 * 1024   # stage-2 VMEM budget for the resident-Z path


# ---------------------------------------------------------------------------
# Kernels
# ---------------------------------------------------------------------------

def fc_kernel(x1_ref, x2_ref, wfc_ref, bfc_ref, z_ref):
    """Z tile = [x1 @ Wfc + bfc | x2 @ Wfc + bfc]  via two 128-aligned stores."""
    w = wfc_ref[...]
    b = bfc_ref[...]
    n_h = w.shape[1]                                   # padded hidden (mult of 128)
    z1 = jnp.dot(x1_ref[...], w, preferred_element_type=jnp.float32) + b
    z2 = jnp.dot(x2_ref[...], w, preferred_element_type=jnp.float32) + b
    z_ref[:, :n_h] = z1.astype(z_ref.dtype)
    z_ref[:, n_h:] = z2.astype(z_ref.dtype)


def agg_resident_kernel(adj_ref, z_ref, alpha_ref, h_ref):
    """H row tile = PReLU(adj_row_tile @ Z) with Z fully resident in VMEM."""
    acc = jnp.dot(adj_ref[...], z_ref[...], preferred_element_type=jnp.float32)
    alpha = alpha_ref[0]
    h_ref[...] = (jnp.maximum(acc, 0.0) + alpha * jnp.minimum(acc, 0.0)
                  ).astype(h_ref.dtype)


def agg_stream_kernel(adj_ref, z_ref, alpha_ref, h_ref, acc_ref):
    """One (row tile, k tile) step of H = PReLU(adj @ Z), f32 accumulation."""
    k = pl.program_id(1)

    @pl.when(k == 0)
    def _init():
        acc_ref[...] = jnp.zeros_like(acc_ref)

    acc_ref[...] += jnp.dot(adj_ref[...], z_ref[...],
                            preferred_element_type=jnp.float32)

    @pl.when(k == pl.num_programs(1) - 1)
    def _finalize():
        acc = acc_ref[...]
        alpha = alpha_ref[0]
        h_ref[...] = (jnp.maximum(acc, 0.0) + alpha * jnp.minimum(acc, 0.0)
                      ).astype(h_ref.dtype)


def readout_kernel(h1_ref, wbilT_ref, v_ref, acc_ref, *, inv_n):
    """v = (sigmoid(mean(h1, nodes))) @ Wbil^T, via a row-tiled column sum."""
    i = pl.program_id(0)

    @pl.when(i == 0)
    def _init():
        acc_ref[...] = jnp.zeros_like(acc_ref)

    acc_ref[...] += jnp.sum(h1_ref[...].astype(jnp.float32), axis=0,
                            keepdims=True)

    @pl.when(i == pl.num_programs(0) - 1)
    def _finalize():
        s = jax.nn.sigmoid(acc_ref[...] * inv_n)                  # (1, H)
        v_ref[...] = jnp.dot(s, wbilT_ref[...],
                             preferred_element_type=jnp.float32)  # (1, H)


def score_kernel(v_ref, h_ref, bbil_ref, s1_ref, s2_ref):
    """Bilinear scores for one row tile of both views; lane-dense (1, tm) out."""
    n_h = v_ref.shape[1]
    v = v_ref[...]                                     # (1, H) f32
    b = bbil_ref[0]
    h1 = h_ref[:, :n_h].astype(jnp.float32)            # (tm, H)
    h2 = h_ref[:, n_h:].astype(jnp.float32)            # (tm, H)
    dims = (((1,), (1,)), ((), ()))
    s1_ref[...] = lax.dot_general(v, h1, dims,
                                  preferred_element_type=jnp.float32) + b
    s2_ref[...] = lax.dot_general(v, h2, dims,
                                  preferred_element_type=jnp.float32) + b


# ---------------------------------------------------------------------------
# Wrapper
# ---------------------------------------------------------------------------

def _round_up(x: int, m: int) -> int:
    return ((x + m - 1) // m) * m


def _pick_tile(n_pad: int, target: int, grain: int) -> int:
    """Largest multiple of grain <= target that divides n_pad (n_pad % grain == 0)."""
    t = max(grain, (min(target, n_pad) // grain) * grain)
    while n_pad % t:
        t -= grain
    return t


def _pad2(x, rows: int, cols: int):
    pr, pc = rows - x.shape[0], cols - x.shape[1]
    if pr or pc:
        x = jnp.pad(x, ((0, pr), (0, pc)))
    return x


@functools.partial(jax.jit,
                   static_argnames=("tile_m", "tile_k", "force_streamed_z"))
def dgi_forward(x_1, x_2, adj, params, *, tile_m=512, tile_k=512,
                force_streamed_z=False):
    """x_1, x_2: (1, N, F) like the PyTorch module; adj: (N, N) dense.

    Returns logits of shape (1, 2N), float32.
    """
    wfc, bfc, a, wbil, bbil = params
    x1 = jnp.squeeze(x_1, 0)
    x2 = jnp.squeeze(x_2, 0)
    n_nodes, n_feat = x1.shape
    n_hid = wfc.shape[1]

    grain = 256                               # MXU-friendly (v6e/v7x 2x256x256)
    n_pad = _round_up(n_nodes, grain)
    h_pad = _round_up(n_hid, 128)             # 128-aligned lane splits
    tm = _pick_tile(n_pad, tile_m, grain)     # row tile (output / adj sublanes)
    tk = _pick_tile(n_pad, tile_k, grain)     # contraction tile (adj lanes)

    # bf16 for the big MXU operands; accumulation stays f32 inside the kernels.
    cdtype = jnp.bfloat16
    x1p = _pad2(x1, n_pad, n_feat).astype(cdtype)
    x2p = _pad2(x2, n_pad, n_feat).astype(cdtype)
    adjp = _pad2(adj, n_pad, n_pad).astype(cdtype)
    wfcp = _pad2(wfc, n_feat, h_pad).astype(cdtype)
    bfcp = _pad2(bfc, 1, h_pad).astype(jnp.float32)
    wbilTp = _pad2(wbil, h_pad, h_pad).T.astype(jnp.float32)   # v = s @ Wbil^T
    alpha = jnp.reshape(a, (-1,)).astype(jnp.float32)[:1]      # PReLU slope
    bbil1 = jnp.reshape(bbil, (-1,)).astype(jnp.float32)[:1]   # bilinear bias

    # ---- stage 1: fused linear layers  Z = [x1 Wfc + b | x2 Wfc + b]  (N, 2H)
    z = pl.pallas_call(
        fc_kernel,
        out_shape=jax.ShapeDtypeStruct((n_pad, 2 * h_pad), cdtype),
        grid=(n_pad // tm,),
        in_specs=[
            pl.BlockSpec((tm, n_feat), lambda i: (i, 0)),
            pl.BlockSpec((tm, n_feat), lambda i: (i, 0)),
            pl.BlockSpec((n_feat, h_pad), lambda i: (0, 0)),
            pl.BlockSpec((1, h_pad), lambda i: (0, 0)),
        ],
        out_specs=pl.BlockSpec((tm, 2 * h_pad), lambda i: (i, 0)),
        compiler_params=pltpu.CompilerParams(
            dimension_semantics=("parallel",),
            vmem_limit_bytes=VMEM_LIMIT),
    )(x1p, x2p, wfcp, bfcp)

    # ---- stage 2: H = PReLU(adj @ Z), bf16 output
    # Resident-Z path avoids re-streaming Z (N/tm) times from HBM.
    resident_bytes = (2 * n_pad * 2 * h_pad * 2        # Z (worst-case dbl buf)
                      + 2 * tm * n_pad * 2             # adj row blocks
                      + 2 * tm * 2 * h_pad * 2)        # h output blocks
    use_resident = (not force_streamed_z) and resident_bytes <= Z_RESIDENT_BUDGET

    if use_resident:
        h = pl.pallas_call(
            agg_resident_kernel,
            out_shape=jax.ShapeDtypeStruct((n_pad, 2 * h_pad), cdtype),
            grid=(n_pad // tm,),
            in_specs=[
                pl.BlockSpec((tm, n_pad), lambda i: (i, 0)),
                pl.BlockSpec((n_pad, 2 * h_pad), lambda i: (0, 0)),  # resident Z
                pl.BlockSpec(memory_space=pltpu.MemorySpace.SMEM),   # PReLU slope
            ],
            out_specs=pl.BlockSpec((tm, 2 * h_pad), lambda i: (i, 0)),
            compiler_params=pltpu.CompilerParams(
                dimension_semantics=("parallel",),
                vmem_limit_bytes=VMEM_LIMIT),
        )(adjp, z, alpha)
    else:
        h = pl.pallas_call(
            agg_stream_kernel,
            out_shape=jax.ShapeDtypeStruct((n_pad, 2 * h_pad), cdtype),
            grid=(n_pad // tm, n_pad // tk),
            in_specs=[
                pl.BlockSpec((tm, tk), lambda i, k: (i, k)),
                pl.BlockSpec((tk, 2 * h_pad), lambda i, k: (k, 0)),
                pl.BlockSpec(memory_space=pltpu.MemorySpace.SMEM),   # PReLU slope
            ],
            out_specs=pl.BlockSpec((tm, 2 * h_pad), lambda i, k: (i, 0)),
            scratch_shapes=[pltpu.VMEM((tm, 2 * h_pad), jnp.float32)],
            compiler_params=pltpu.CompilerParams(
                dimension_semantics=("parallel", "arbitrary"),
                vmem_limit_bytes=VMEM_LIMIT),
        )(adjp, z, alpha)

    # ---- stage 3a: tiled readout  v = Wbil @ sigmoid(mean(h1))  -> (1, H)
    v = pl.pallas_call(
        functools.partial(readout_kernel, inv_n=1.0 / n_nodes),
        out_shape=jax.ShapeDtypeStruct((1, h_pad), jnp.float32),
        grid=(n_pad // tm,),
        in_specs=[
            pl.BlockSpec((tm, h_pad), lambda i: (i, 0)),   # h1 half only
            pl.BlockSpec((h_pad, h_pad), lambda i: (0, 0)),
        ],
        out_specs=pl.BlockSpec((1, h_pad), lambda i: (0, 0)),
        scratch_shapes=[pltpu.VMEM((1, h_pad), jnp.float32)],
        compiler_params=pltpu.CompilerParams(
            dimension_semantics=("arbitrary",),
            vmem_limit_bytes=VMEM_LIMIT),
    )(h, wbilTp)

    # ---- stage 3b: tiled bilinear scores, two lane-dense (1, N) slabs
    s1, s2 = pl.pallas_call(
        score_kernel,
        out_shape=(jax.ShapeDtypeStruct((1, n_pad), jnp.float32),
                   jax.ShapeDtypeStruct((1, n_pad), jnp.float32)),
        grid=(n_pad // tm,),
        in_specs=[
            pl.BlockSpec((1, h_pad), lambda i: (0, 0)),
            pl.BlockSpec((tm, 2 * h_pad), lambda i: (i, 0)),
            pl.BlockSpec(memory_space=pltpu.MemorySpace.SMEM),     # bilinear bias
        ],
        out_specs=(pl.BlockSpec((1, tm), lambda i: (0, i)),
                   pl.BlockSpec((1, tm), lambda i: (0, i))),
        compiler_params=pltpu.CompilerParams(
            dimension_semantics=("parallel",),
            vmem_limit_bytes=VMEM_LIMIT),
    )(v, h, bbil1)

    return jnp.concatenate([s1[:, :n_nodes], s2[:, :n_nodes]], axis=1)


# ---------------------------------------------------------------------------
# Pure-JAX reference & parameter init
# ---------------------------------------------------------------------------

def dgi_reference(x_1, x_2, adj, params, *, quantize_dtype=None):
    """Reference mirroring the PyTorch forward.

    With `quantize_dtype`, the operands the kernel down-casts (x, adj, Wfc,
    the pre-aggregation Z and the stored h) are quantized identically, so the
    comparison with the bf16 kernel path is tight.
    """
    wfc, bfc, a, wbil, bbil = params
    x1 = jnp.squeeze(x_1, 0)
    x2 = jnp.squeeze(x_2, 0)

    def q(v):
        if quantize_dtype is None:
            return v
        return v.astype(quantize_dtype).astype(jnp.float32)

    x1, x2, adjq, wfcq = q(x1), q(x2), q(adj), q(wfc)

    def gcn(x):
        z = q(jnp.dot(x, wfcq, precision="highest") + bfc)
        z = jnp.dot(adjq, z, precision="highest")
        h = jnp.where(z > 0, z, a[0, 0] * z)
        return q(h)

    h1 = gcn(x1)
    h2 = gcn(x2)
    s = jax.nn.sigmoid(jnp.mean(h1, axis=0))
    v = jnp.dot(wbil, s, precision="highest")
    sc1 = jnp.dot(h1, v, precision="highest") + bbil[0, 0]
    sc2 = jnp.dot(h2, v, precision="highest") + bbil[0, 0]
    return jnp.concatenate([sc1, sc2], axis=0)[None, :]


def make_params(key, n_features, n_hidden):
    k1, k2, k3, k4 = jax.random.split(key, 4)
    std_fc = (2.0 / (n_features + n_hidden)) ** 0.5       # xavier_normal_
    wfc = std_fc * jax.random.normal(k1, (n_features, n_hidden), jnp.float32)
    bfc = 0.01 * jax.random.normal(k2, (1, n_hidden), jnp.float32)
    a = jnp.full((1, 1), 0.25, jnp.float32)                # PReLU default init
    std_bil = (2.0 / (n_hidden + n_hidden)) ** 0.5
    wbil = std_bil * jax.random.normal(k3, (n_hidden, n_hidden), jnp.float32)
    bbil = 0.01 * jax.random.normal(k4, (1, 1), jnp.float32)
    return (wfc, bfc, a, wbil, bbil)


if __name__ == "__main__":
    # Small demo: N not a multiple of 256 and H not a multiple of 128 so the
    # padding / alignment path is exercised.
    N, F, H = 500, 48, 96

    key = jax.random.PRNGKey(0)
    kx1, kx2, kadj, kp = jax.random.split(key, 4)

    x_1 = jax.random.normal(kx1, (1, N, F), jnp.float32)
    x_2 = jax.random.normal(kx2, (1, N, F), jnp.float32)
    # dense stand-in for the sparse adjacency used by torch.spmm, row-normalized
    adj = jax.random.uniform(kadj, (N, N), jnp.float32)
    adj = adj / jnp.sum(adj, axis=1, keepdims=True)

    params = make_params(kp, F, H)

    # Resident-Z fast path (Z fits VMEM at this size).
    logits_res = jax.block_until_ready(dgi_forward(x_1, x_2, adj, params))
    # Streamed path with a real (row, k) accumulator grid (what very large N uses).
    logits_str = jax.block_until_ready(
        dgi_forward(x_1, x_2, adj, params, tile_m=256, tile_k=256,
                    force_streamed_z=True))

    ref_q = jax.block_until_ready(
        dgi_reference(x_1, x_2, adj, params, quantize_dtype=jnp.bfloat16))
    ref_f32 = jax.block_until_ready(dgi_reference(x_1, x_2, adj, params))

    for name, lg in (("resident", logits_res), ("streamed", logits_str)):
        assert lg.shape == (1, 2 * N), (name, lg.shape)
        # tight check vs a reference that quantizes the same operands the kernel does
        assert jnp.allclose(lg, ref_q, rtol=2e-2, atol=2e-2), (
            name, float(jnp.max(jnp.abs(lg - ref_q))))
        # loose sanity check vs the full-f32 reference (bf16 operands inside kernel)
        assert jnp.allclose(lg, ref_f32, rtol=1e-1, atol=1e-1), (
            name, float(jnp.max(jnp.abs(lg - ref_f32))))
    print("KERNEL_OK")
</pallas_src>

<mosaic_0001>
module attributes {stable_mosaic.version = 11 : i64} {
  func.func @score_kernel(%arg0: i32, %arg1: memref<1x128xf32, #tpu.memory_space<vmem>>, %arg2: memref<512x256xbf16, #tpu.memory_space<vmem>>, %arg3: memref<1xf32, #tpu.memory_space<smem>>, %arg4: memref<1x512xf32, #tpu.memory_space<vmem>>, %arg5: memref<1x512xf32, #tpu.memory_space<vmem>>) attributes {dimension_semantics = [#tpu.dimension_semantics<parallel>], iteration_bounds = array<i64: 1>, scalar_prefetch = 0 : i64, scratch_operands = 0 : i64, tpu.core_type = #tpu.core_type<tc>, window_params = [{pipeline_mode = #tpu.pipeline_mode<synchronous>, transform_indices = @transform_0, window_bounds = array<i64: 1, 128>}, {transform_indices = @transform_1, window_bounds = array<i64: 512, 256>}, {transform_indices = @transform_2, window_bounds = array<i64: 1>}, {transform_indices = @transform_3, window_bounds = array<i64: 1, 512>}, {transform_indices = @transform_4, window_bounds = array<i64: 1, 512>}]} {
    %c0 = arith.constant 0 : index
    %c0_0 = arith.constant 0 : index
    %0 = vector.load %arg1[%c0, %c0_0] : memref<1x128xf32, #tpu.memory_space<vmem>>, vector<1x128xf32>
    %c0_1 = arith.constant 0 : index
    %1 = memref.load %arg3[%c0_1] : memref<1xf32, #tpu.memory_space<smem>>
    %c0_2 = arith.constant 0 : index
    %c0_3 = arith.constant 0 : index
    %2 = vector.load %arg2[%c0_2, %c0_3] : memref<512x256xbf16, #tpu.memory_space<vmem>>, vector<512x128xbf16>
    %3 = arith.extf %2 : vector<512x128xbf16> to vector<512x128xf32>
    %c0_4 = arith.constant 0 : index
    %c128 = arith.constant 128 : index
    %4 = vector.load %arg2[%c0_4, %c128] : memref<512x256xbf16, #tpu.memory_space<vmem>>, vector<512x128xbf16>
    %5 = arith.extf %4 : vector<512x128xbf16> to vector<512x128xf32>
    %cst = arith.constant dense<0.000000e+00> : vector<1x512xf32>
    %6 = tpu.matmul %0, %3, %cst {dimension_numbers = #tpu.dot_dimension_numbers<[1], [1], [0], [0], [0, 0, 1, 0], [], []>} : vector<1x128xf32>, vector<512x128xf32>, vector<1x512xf32> -> vector<1x512xf32>
    %7 = vector.broadcast %1 : f32 to vector<1x512xf32>
    %8 = arith.addf %6, %7 : vector<1x512xf32>
    %c0_5 = arith.constant 0 : index
    %c0_6 = arith.constant 0 : index
    %9 = vector.load %arg4[%c0_5, %c0_6] : memref<1x512xf32, #tpu.memory_space<vmem>>, vector<1x512xf32>
    tpu.vector_store %arg4[%c0_5, %c0_6], %8 {strides = array<i32>} : memref<1x512xf32, #tpu.memory_space<vmem>>, vector<1x512xf32>,
    %cst_7 = arith.constant dense<0.000000e+00> : vector<1x512xf32>
    %10 = tpu.matmul %0, %5, %cst_7 {dimension_numbers = #tpu.dot_dimension_numbers<[1], [1], [0], [0], [0, 0, 1, 0], [], []>} : vector<1x128xf32>, vector<512x128xf32>, vector<1x512xf32> -> vector<1x512xf32>
    %11 = vector.broadcast %1 : f32 to vector<1x512xf32>
    %12 = arith.addf %10, %11 : vector<1x512xf32>
    %c0_8 = arith.constant 0 : index
    %c0_9 = arith.constant 0 : index
    %13 = vector.load %arg5[%c0_8, %c0_9] : memref<1x512xf32, #tpu.memory_space<vmem>>, vector<1x512xf32>
    tpu.vector_store %arg5[%c0_8, %c0_9], %12 {strides = array<i32>} : memref<1x512xf32, #tpu.memory_space<vmem>>, vector<1x512xf32>,
    return
  }
  func.func @transform_0(%arg0: i32) -> (i32, i32) {
    %c0_i32 = arith.constant 0 : i32
    %c0_i32_0 = arith.constant 0 : i32
    %c0_i32_1 = arith.constant 0 : i32
    return %c0_i32, %c0_i32_0 : i32, i32
  }
  func.func @transform_1(%arg0: i32) -> (i32, i32) {
    %c0_i32 = arith.constant 0 : i32
    %c0_i32_0 = arith.constant 0 : i32
    return %arg0, %c0_i32 : i32, i32
  }
  func.func @transform_2(%arg0: i32) -> i32 {
    %c0_i32 = arith.constant 0 : i32
    %c0_i32_0 = arith.constant 0 : i32
    return %c0_i32 : i32
  }
  func.func @transform_3(%arg0: i32) -> (i32, i32) {
    %c0_i32 = arith.constant 0 : i32
    %c0_i32_0 = arith.constant 0 : i32
    return %c0_i32, %arg0 : i32, i32
  }
  func.func @transform_4(%arg0: i32) -> (i32, i32) {
    %c0_i32 = arith.constant 0 : i32
    %c0_i32_0 = arith.constant 0 : i32
    return %c0_i32, %arg0 : i32, i32
  }
}

module attributes {stable_mosaic.version = 11 : i64} {
  func.func @readout_kernel(%arg0: i32, %arg1: memref<512x128xbf16, #tpu.memory_space<vmem>>, %arg2: memref<128x128xf32, #tpu.memory_space<vmem>>, %arg3: memref<1x128xf32, #tpu.memory_space<vmem>>, %arg4: memref<1x128xf32, #tpu.memory_space<vmem>>) attributes {dimension_semantics = [#tpu.dimension_semantics<arbitrary>], iteration_bounds = array<i64: 1>, scalar_prefetch = 0 : i64, scratch_operands = 1 : i64, tpu.core_type = #tpu.core_type<tc>, window_params = [{transform_indices = @transform_0, window_bounds = array<i64: 512, 128>}, {pipeline_mode = #tpu.pipeline_mode<synchronous>, transform_indices = @transform_1, window_bounds = array<i64: 128, 128>}, {pipeline_mode = #tpu.pipeline_mode<synchronous>, transform_indices = @transform_2, window_bounds = array<i64: 1, 128>}]} {
    %c0_i32 = arith.constant 0 : i32
    %0 = arith.cmpi eq, %arg0, %c0_i32 : i32
    %1 = arith.extui %0 : i1 to i32
    %c0_i32_0 = arith.constant 0 : i32
    %2 = arith.cmpi ne, %1, %c0_i32_0 : i32
    scf.if %2 {
      %cst_8 = arith.constant 0.000000e+00 : f32
      %13 = vector.broadcast %cst_8 : f32 to vector<1x128xf32>
      %c0_9 = arith.constant 0 : index
      %c0_10 = arith.constant 0 : index
      %14 = vector.load %arg4[%c0_9, %c0_10] : memref<1x128xf32, #tpu.memory_space<vmem>>, vector<1x128xf32>
      tpu.vector_store %arg4[%c0_9, %c0_10], %13 {strides = array<i32>} : memref<1x128xf32, #tpu.memory_space<vmem>>, vector<1x128xf32>,
    } else {
    }
    %c0 = arith.constant 0 : index
    %c0_1 = arith.constant 0 : index
    %3 = vector.load %arg4[%c0, %c0_1] : memref<1x128xf32, #tpu.memory_space<vmem>>, vector<1x128xf32>
    %c0_2 = arith.constant 0 : index
    %c0_3 = arith.constant 0 : index
    %4 = vector.load %arg1[%c0_2, %c0_3] : memref<512x128xbf16, #tpu.memory_space<vmem>>, vector<512x128xbf16>
    %5 = arith.extf %4 : vector<512x128xbf16> to vector<512x128xf32>
    %cst = arith.constant dense<0.000000e+00> : vector<128xf32>
    %6 = vector.multi_reduction <add>, %5, %cst [0] : vector<512x128xf32> to vector<128xf32>
    %7 = vector.shape_cast %6 : vector<128xf32> to vector<1x128xf32>
    %8 = arith.addf %3, %7 : vector<1x128xf32>
    %c0_4 = arith.constant 0 : index
    %c0_5 = arith.constant 0 : index
    %9 = vector.load %arg4[%c0_4, %c0_5] : memref<1x128xf32, #tpu.memory_space<vmem>>, vector<1x128xf32>
    tpu.vector_store %arg4[%c0_4, %c0_5], %8 {strides = array<i32>} : memref<1x128xf32, #tpu.memory_space<vmem>>, vector<1x128xf32>,
    %c0_i32_6 = arith.constant 0 : i32
    %10 = arith.cmpi eq, %arg0, %c0_i32_6 : i32
    %11 = arith.extui %10 : i1 to i32
    %c0_i32_7 = arith.constant 0 : i32
    %12 = arith.cmpi ne, %11, %c0_i32_7 : i32
    scf.if %12 {
      %c0_8 = arith.constant 0 : index
      %c0_9 = arith.constant 0 : index
      %13 = vector.load %arg4[%c0_8, %c0_9] : memref<1x128xf32, #tpu.memory_space<vmem>>, vector<1x128xf32>
      %cst_10 = arith.constant 2.000000e-03 : f32
      %14 = vector.broadcast %cst_10 : f32 to vector<1x128xf32>
      %15 = arith.mulf %13, %14 : vector<1x128xf32>
      %16 = arith.negf %15 : vector<1x128xf32>
      %17 = math.exp %16 : vector<1x128xf32>
      %cst_11 = arith.constant 1.000000e+00 : f32
      %18 = vector.broadcast %cst_11 : f32 to vector<1x128xf32>
      %19 = arith.addf %18, %17 : vector<1x128xf32>
      %20 = arith.divf %18, %19 : vector<1x128xf32>
      %c0_12 = arith.constant 0 : index
      %c0_13 = arith.constant 0 : index
      %21 = vector.load %arg2[%c0_12, %c0_13] : memref<128x128xf32, #tpu.memory_space<vmem>>, vector<128x128xf32>
      %cst_14 = arith.constant dense<0.000000e+00> : vector<1x128xf32>
      %22 = tpu.matmul %20, %21, %cst_14 {dimension_numbers = #tpu.dot_dimension_numbers<[1], [0], [0], [1], [0, 0, 1, 1], [], []>} : vector<1x128xf32>, vector<128x128xf32>, vector<1x128xf32> -> vector<1x128xf32>
      %c0_15 = arith.constant 0 : index
      %c0_16 = arith.constant 0 : index
      %23 = vector.load %arg3[%c0_15, %c0_16] : memref<1x128xf32, #tpu.memory_space<vmem>>, vector<1x128xf32>
      tpu.vector_store %arg3[%c0_15, %c0_16], %22 {strides = array<i32>} : memref<1x128xf32, #tpu.memory_space<vmem>>, vector<1x128xf32>,
    } else {
    }
    return
  }
  func.func @transform_0(%arg0: i32) -> (i32, i32) {
    %c0_i32 = arith.constant 0 : i32
    %c0_i32_0 = arith.constant 0 : i32
    return %arg0, %c0_i32 : i32, i32
  }
  func.func @transform_1(%arg0: i32) -> (i32, i32) {
    %c0_i32 = arith.constant 0 : i32
    %c0_i32_0 = arith.constant 0 : i32
    %c0_i32_1 = arith.constant 0 : i32
    return %c0_i32, %c0_i32_0 : i32, i32
  }
  func.func @transform_2(%arg0: i32) -> (i32, i32) {
    %c0_i32 = arith.constant 0 : i32
    %c0_i32_0 = arith.constant 0 : i32
    %c0_i32_1 = arith.constant 0 : i32
    return %c0_i32, %c0_i32_0 : i32, i32
  }
}

module attributes {stable_mosaic.version = 11 : i64} {
  func.func @agg_resident_kernel(%arg0: i32, %arg1: memref<512x512xbf16, #tpu.memory_space<vmem>>, %arg2: memref<512x256xbf16, #tpu.memory_space<vmem>>, %arg3: memref<1xf32, #tpu.memory_space<smem>>, %arg4: memref<512x256xbf16, #tpu.memory_space<vmem>>) attributes {dimension_semantics = [#tpu.dimension_semantics<parallel>], iteration_bounds = array<i64: 1>, scalar_prefetch = 0 : i64, scratch_operands = 0 : i64, tpu.core_type = #tpu.core_type<tc>, window_params = [{transform_indices = @transform_0, window_bounds = array<i64: 512, 512>}, {pipeline_mode = #tpu.pipeline_mode<synchronous>, transform_indices = @transform_1, window_bounds = array<i64: 512, 256>}, {transform_indices = @transform_2, window_bounds = array<i64: 1>}, {transform_indices = @transform_3, window_bounds = array<i64: 512, 256>}]} {
    %c0 = arith.constant 0 : index
    %c0_0 = arith.constant 0 : index
    %0 = vector.load %arg1[%c0, %c0_0] : memref<512x512xbf16, #tpu.memory_space<vmem>>, vector<512x512xbf16>
    %c0_1 = arith.constant 0 : index
    %c0_2 = arith.constant 0 : index
    %1 = vector.load %arg2[%c0_1, %c0_2] : memref<512x256xbf16, #tpu.memory_space<vmem>>, vector<512x256xbf16>
    %cst = arith.constant dense<0.000000e+00> : vector<512x256xf32>
    %2 = tpu.matmul %0, %1, %cst {dimension_numbers = #tpu.dot_dimension_numbers<[1], [0], [0], [1], [0, 0, 1, 1], [], []>} : vector<512x512xbf16>, vector<512x256xbf16>, vector<512x256xf32> -> vector<512x256xf32>
    %c0_3 = arith.constant 0 : index
    %3 = memref.load %arg3[%c0_3] : memref<1xf32, #tpu.memory_space<smem>>
    %cst_4 = arith.constant 0.000000e+00 : f32
    %4 = vector.broadcast %cst_4 : f32 to vector<512x256xf32>
    %5 = arith.maximumf %2, %4 : vector<512x256xf32>
    %cst_5 = arith.constant 0.000000e+00 : f32
    %6 = vector.broadcast %cst_5 : f32 to vector<512x256xf32>
    %7 = arith.minimumf %2, %6 : vector<512x256xf32>
    %8 = vector.broadcast %3 : f32 to vector<512x256xf32>
    %9 = arith.mulf %8, %7 : vector<512x256xf32>
    %10 = arith.addf %5, %9 : vector<512x256xf32>
    %11 = arith.truncf %10 : vector<512x256xf32> to vector<512x256xbf16>
    %c0_6 = arith.constant 0 : index
    %c0_7 = arith.constant 0 : index
    %12 = vector.load %arg4[%c0_6, %c0_7] : memref<512x256xbf16, #tpu.memory_space<vmem>>, vector<512x256xbf16>
    tpu.vector_store %arg4[%c0_6, %c0_7], %11 {strides = array<i32>} : memref<512x256xbf16, #tpu.memory_space<vmem>>, vector<512x256xbf16>,
    return
  }
  func.func @transform_0(%arg0: i32) -> (i32, i32) {
    %c0_i32 = arith.constant 0 : i32
    %c0_i32_0 = arith.constant 0 : i32
    return %arg0, %c0_i32 : i32, i32
  }
  func.func @transform_1(%arg0: i32) -> (i32, i32) {
    %c0_i32 = arith.constant 0 : i32
    %c0_i32_0 = arith.constant 0 : i32
    %c0_i32_1 = arith.constant 0 : i32
    return %c0_i32, %c0_i32_0 : i32, i32
  }
  func.func @transform_2(%arg0: i32) -> i32 {
    %c0_i32 = arith.constant 0 : i32
    %c0_i32_0 = arith.constant 0 : i32
    return %c0_i32 : i32
  }
  func.func @transform_3(%arg0: i32) -> (i32, i32) {
    %c0_i32 = arith.constant 0 : i32
    %c0_i32_0 = arith.constant 0 : i32
    return %arg0, %c0_i32 : i32, i32
  }
}

module attributes {stable_mosaic.version = 11 : i64} {
  func.func @fc_kernel(%arg0: i32, %arg1: memref<512x48xbf16, #tpu.memory_space<vmem>>, %arg2: memref<512x48xbf16, #tpu.memory_space<vmem>>, %arg3: memref<48x128xbf16, #tpu.memory_space<vmem>>, %arg4: memref<1x128xf32, #tpu.memory_space<vmem>>, %arg5: memref<512x256xbf16, #tpu.memory_space<vmem>>) attributes {dimension_semantics = [#tpu.dimension_semantics<parallel>], iteration_bounds = array<i64: 1>, scalar_prefetch = 0 : i64, scratch_operands = 0 : i64, tpu.core_type = #tpu.core_type<tc>, window_params = [{transform_indices = @transform_0, window_bounds = array<i64: 512, 48>}, {transform_indices = @transform_1, window_bounds = array<i64: 512, 48>}, {pipeline_mode = #tpu.pipeline_mode<synchronous>, transform_indices = @transform_2, window_bounds = array<i64: 48, 128>}, {pipeline_mode = #tpu.pipeline_mode<synchronous>, transform_indices = @transform_3, window_bounds = array<i64: 1, 128>}, {transform_indices = @transform_4, window_bounds = array<i64: 512, 256>}]} {
    %c0 = arith.constant 0 : index
    %c0_0 = arith.constant 0 : index
    %0 = vector.load %arg3[%c0, %c0_0] : memref<48x128xbf16, #tpu.memory_space<vmem>>, vector<48x128xbf16>
    %c0_1 = arith.constant 0 : index
    %c0_2 = arith.constant 0 : index
    %1 = vector.load %arg4[%c0_1, %c0_2] : memref<1x128xf32, #tpu.memory_space<vmem>>, vector<1x128xf32>
    %c0_3 = arith.constant 0 : index
    %c0_4 = arith.constant 0 : index
    %2 = vector.load %arg1[%c0_3, %c0_4] : memref<512x48xbf16, #tpu.memory_space<vmem>>, vector<512x48xbf16>
    %cst = arith.constant dense<0.000000e+00> : vector<512x128xf32>
    %3 = tpu.matmul %2, %0, %cst {dimension_numbers = #tpu.dot_dimension_numbers<[1], [0], [0], [1], [0, 0, 1, 1], [], []>} : vector<512x48xbf16>, vector<48x128xbf16>, vector<512x128xf32> -> vector<512x128xf32>
    %4 = vector.broadcast %1 : vector<1x128xf32> to vector<512x128xf32>
    %5 = arith.addf %3, %4 : vector<512x128xf32>
    %c0_5 = arith.constant 0 : index
    %c0_6 = arith.constant 0 : index
    %6 = vector.load %arg2[%c0_5, %c0_6] : memref<512x48xbf16, #tpu.memory_space<vmem>>, vector<512x48xbf16>
    %cst_7 = arith.constant dense<0.000000e+00> : vector<512x128xf32>
    %7 = tpu.matmul %6, %0, %cst_7 {dimension_numbers = #tpu.dot_dimension_numbers<[1], [0], [0], [1], [0, 0, 1, 1], [], []>} : vector<512x48xbf16>, vector<48x128xbf16>, vector<512x128xf32> -> vector<512x128xf32>
    %8 = vector.broadcast %1 : vector<1x128xf32> to vector<512x128xf32>
    %9 = arith.addf %7, %8 : vector<512x128xf32>
    %10 = arith.truncf %5 : vector<512x128xf32> to vector<512x128xbf16>
    %c0_8 = arith.constant 0 : index
    %c0_9 = arith.constant 0 : index
    %11 = vector.load %arg5[%c0_8, %c0_9] : memref<512x256xbf16, #tpu.memory_space<vmem>>, vector<512x128xbf16>
    tpu.vector_store %arg5[%c0_8, %c0_9], %10 {strides = array<i32>} : memref<512x256xbf16, #tpu.memory_space<vmem>>, vector<512x128xbf16>,
    %12 = arith.truncf %9 : vector<512x128xf32> to vector<512x128xbf16>
    %c0_10 = arith.constant 0 : index
    %c128 = arith.constant 128 : index
    %13 = vector.load %arg5[%c0_10, %c128] : memref<512x256xbf16, #tpu.memory_space<vmem>>, vector<512x128xbf16>
    tpu.vector_store %arg5[%c0_10, %c128], %12 {strides = array<i32>} : memref<512x256xbf16, #tpu.memory_space<vmem>>, vector<512x128xbf16>,
    return
  }
  func.func @transform_0(%arg0: i32) -> (i32, i32) {
    %c0_i32 = arith.constant 0 : i32
    %c0_i32_0 = arith.constant 0 : i32
    return %arg0, %c0_i32 : i32, i32
  }
  func.func @transform_1(%arg0: i32) -> (i32, i32) {
    %c0_i32 = arith.constant 0 : i32
    %c0_i32_0 = arith.constant 0 : i32
    return %arg0, %c0_i32 : i32, i32
  }
  func.func @transform_2(%arg0: i32) -> (i32, i32) {
    %c0_i32 = arith.constant 0 : i32
    %c0_i32_0 = arith.constant 0 : i32
    %c0_i32_1 = arith.constant 0 : i32
    return %c0_i32, %c0_i32_0 : i32, i32
  }
  func.func @transform_3(%arg0: i32) -> (i32, i32) {
    %c0_i32 = arith.constant 0 : i32
    %c0_i32_0 = arith.constant 0 : i32
    %c0_i32_1 = arith.constant 0 : i32
    return %c0_i32, %c0_i32_0 : i32, i32
  }
  func.func @transform_4(%arg0: i32) -> (i32, i32) {
    %c0_i32 = arith.constant 0 : i32
    %c0_i32_0 = arith.constant 0 : i32
    return %arg0, %c0_i32 : i32, i32
  }
}

</mosaic_0001>

<llo_original>
// kernel: dgi_forward.6
$region0: #{dgi_forward.6}
  #allocation0 [shape = 'u32[]', space=smem, size = 0x4, offset = 0x4, fixed_abs, tag = 'smem constant byte address 0x4 - core index']
  #allocation1 [shape = 'u32[144,128]{1,0:T(1,128)}', space=vmem, size = 0x12000, scoped, tag = 'internal scratch']
  #allocation2 [shape = 'f32[1,128]{1,0:T(1,128)}', space=vmem, size = 0x200, scoped, tag = 'scratch operand']
  %s0 = inlined_call_operand.vmem [shape: bf16[512,256], index: 0, kind: input, shape index: {}]
  %s1 = inlined_call_operand.vmem [shape: f32[128,128], index: 1, kind: input, shape index: {}]
  %s2 = inlined_call_operand.vmem [shape: f32[1,128], index: 2, kind: output, shape index: {}]
  %s3 = sld [smem:[#allocation0]]
  $region67: #{dgi_forward.6} parent=0
    _
  %s5 = ssub.s32 1, %s3
  %s6 = scalar_select 0, %s5, %s3
  $region1: #{dgi_forward.6} parent=0
    #allocation3 [shape = 'u8[131072]{0}', space=vmem, size = 0x20000, scoped, tag = 'input window, operand 0, single buffered']
    // Predicated region
    $region2: #{dgi_forward.6} parent=1 // pred_check
      _
    $region3: #{dgi_forward.6} parent=1 // pred_check_branch
      %8 = sbr.rel (0) target = $region5
    $region4: #{dgi_forward.6} parent=1 // pred_region
      // Predicated region
      $region6: #{dgi_forward.6} parent=4 // pred_check
        _
      $region7: #{dgi_forward.6} parent=4 // pred_check_branch
        %10 = sbr.rel (0) target = $region9
      $region8: #{dgi_forward.6} parent=4 // pred_region
        // Predicated region
        $region10: #{dgi_forward.6} parent=8 // pred_check
          _
        $region11: #{dgi_forward.6} parent=8 // pred_check_branch
          %12 = sbr.rel target = $region13
        $region12: #{dgi_forward.6} parent=8 // pred_region
          // Predicated region
          $region25: #{dgi_forward.6} parent=12 // pred_check
            _
          $region26: #{dgi_forward.6} parent=12 // pred_check_branch
            %153 = sbr.rel (0) target = $region28
          $region27: #{dgi_forward.6} parent=12 // pred_region
            loop: start=0, step=1, limit=1
            $region29: #{dgi_forward.6} parent=27 // loop_pre_header
              _
            $region30: #{dgi_forward.6} parent=27 // loop_header
              %s155 = sphi 0, %s159
              %p156 = scmp.ge.s32.totalorder %s155, 1
              %s160 = sphi %s0, %s0
              %s161 = sphi [#allocation3], [#allocation3]
            $region31: #{dgi_forward.6} parent=27 // loop_header_branch
              %158 = sbr.rel (%p156) target = $region35
            $region32: #{dgi_forward.6} parent=27 // loop_body
              _
            $region33: #{dgi_forward.6} parent=27 // loop_footer
              %s159 = sadd.s32 1, %s155
            $region34: #{dgi_forward.6} parent=27 // loop_footer_branch
              %154 = sbr.rel target = $region30
            $region35: #{dgi_forward.6} parent=27 // loop_exit
              _
            loop: start=0, step=1, limit=1
            $region36: #{dgi_forward.6} parent=27 // loop_pre_header
              _
            $region37: #{dgi_forward.6} parent=27 // loop_header
              %s164 = sphi 0, %s168
              %p165 = scmp.ge.s32.totalorder %s164, 1
              %s169 = sphi %s0, %s0
              %s170 = sphi [#allocation3], [#allocation3]
            $region38: #{dgi_forward.6} parent=27 // loop_header_branch
              %167 = sbr.rel (%p165) target = $region42
            $region39: #{dgi_forward.6} parent=27 // loop_body
              %v171 = vld [vmem:[%s169] sm:$0xf]
              %172 = vst [vmem:[%s170] sm:$0xf] %v171
              %v173 = vld [vmem:[%s169 + $0x8] sm:$0xf]
              %174 = vst [vmem:[%s170 + $0x4] sm:$0xf] %v173
              %v175 = vld [vmem:[%s169 + $0x10] sm:$0xf]
              %176 = vst [vmem:[%s170 + $0x8] sm:$0xf] %v175
              %v177 = vld [vmem:[%s169 + $0x18] sm:$0xf]
              %178 = vst [vmem:[%s170 + $0xc] sm:$0xf] %v177
              %v179 = vld [vmem:[%s169 + $0x20] sm:$0xf]
              %180 = vst [vmem:[%s170 + $0x10] sm:$0xf] %v179
              %v181 = vld [vmem:[%s169 + $0x28] sm:$0xf]
              %182 = vst [vmem:[%s170 + $0x14] sm:$0xf] %v181
              %v183 = vld [vmem:[%s169 + $0x30] sm:$0xf]
              %184 = vst [vmem:[%s170 + $0x18] sm:$0xf] %v183
              %v185 = vld [vmem:[%s169 + $0x38] sm:$0xf]
              %186 = vst [vmem:[%s170 + $0x1c] sm:$0xf] %v185
              %v187 = vld [vmem:[%s169 + $0x40] sm:$0xf]
              %188 = vst [vmem:[%s170 + $0x20] sm:$0xf] %v187
              %v189 = vld [vmem:[%s169 + $0x48] sm:$0xf]
              %190 = vst [vmem:[%s170 + $0x24] sm:$0xf] %v189
              %v191 = vld [vmem:[%s169 + $0x50] sm:$0xf]
              %192 = vst [vmem:[%s170 + $0x28] sm:$0xf] %v191
              %v193 = vld [vmem:[%s169 + $0x58] sm:$0xf]
              %194 = vst [vmem:[%s170 + $0x2c] sm:$0xf] %v193
              %v195 = vld [vmem:[%s169 + $0x60] sm:$0xf]
              %196 = vst [vmem:[%s170 + $0x30] sm:$0xf] %v195
              %v197 = vld [vmem:[%s169 + $0x68] sm:$0xf]
              %198 = vst [vmem:[%s170 + $0x34] sm:$0xf] %v197
              %v199 = vld [vmem:[%s169 + $0x70] sm:$0xf]
              %200 = vst [vmem:[%s170 + $0x38] sm:$0xf] %v199
              %v201 = vld [vmem:[%s169 + $0x78] sm:$0xf]
              %202 = vst [vmem:[%s170 + $0x3c] sm:$0xf] %v201
              %v203 = vld [vmem:[%s169 + $0x80] sm:$0xf]
              %204 = vst [vmem:[%s170 + $0x40] sm:$0xf] %v203
              %v205 = vld [vmem:[%s169 + $0x88] sm:$0xf]
              %206 = vst [vmem:[%s170 + $0x44] sm:$0xf] %v205
              %v207 = vld [vmem:[%s169 + $0x90] sm:$0xf]
              %208 = vst [vmem:[%s170 + $0x48] sm:$0xf] %v207
              %v209 = vld [vmem:[%s169 + $0x98] sm:$0xf]
              %210 = vst [vmem:[%s170 + $0x4c] sm:$0xf] %v209
              %v211 = vld [vmem:[%s169 + $0xa0] sm:$0xf]
              %212 = vst [vmem:[%s170 + $0x50] sm:$0xf] %v211
              %v213 = vld [vmem:[%s169 + $0xa8] sm:$0xf]
              %214 = vst [vmem:[%s170 + $0x54] sm:$0xf] %v213
              %v215 = vld [vmem:[%s169 + $0xb0] sm:$0xf]
              %216 = vst [vmem:[%s170 + $0x58] sm:$0xf] %v215
              %v217 = vld [vmem:[%s169 + $0xb8] sm:$0xf]
              %218 = vst [vmem:[%s170 + $0x5c] sm:$0xf] %v217
              %v219 = vld [vmem:[%s169 + $0xc0] sm:$0xf]
              %220 = vst [vmem:[%s170 + $0x60] sm:$0xf] %v219
              %v221 = vld [vmem:[%s169 + $0xc8] sm:$0xf]
              %222 = vst [vmem:[%s170 + $0x64] sm:$0xf] %v221
              %v223 = vld [vmem:[%s169 + $0xd0] sm:$0xf]
              %224 = vst [vmem:[%s170 + $0x68] sm:$0xf] %v223
              %v225 = vld [vmem:[%s169 + $0xd8] sm:$0xf]
              %226 = vst [vmem:[%s170 + $0x6c] sm:$0xf] %v225
              %v227 = vld [vmem:[%s169 + $0xe0] sm:$0xf]
              %228 = vst [vmem:[%s170 + $0x70] sm:$0xf] %v227
              %v229 = vld [vmem:[%s169 + $0xe8] sm:$0xf]
              %230 = vst [vmem:[%s170 + $0x74] sm:$0xf] %v229
              %v231 = vld [vmem:[%s169 + $0xf0] sm:$0xf]
              %232 = vst [vmem:[%s170 + $0x78] sm:$0xf] %v231
              %v233 = vld [vmem:[%s169 + $0xf8] sm:$0xf]
              %234 = vst [vmem:[%s170 + $0x7c] sm:$0xf] %v233
              %v235 = vld [vmem:[%s169 + $0x100] sm:$0xf]
              %236 = vst [vmem:[%s170 + $0x80] sm:$0xf] %v235
              %v237 = vld [vmem:[%s169 + $0x108] sm:$0xf]
              %238 = vst [vmem:[%s170 + $0x84] sm:$0xf] %v237
              %v239 = vld [vmem:[%s169 + $0x110] sm:$0xf]
              %240 = vst [vmem:[%s170 + $0x88] sm:$0xf] %v239
              %v241 = vld [vmem:[%s169 + $0x118] sm:$0xf]
              %242 = vst [vmem:[%s170 + $0x8c] sm:$0xf] %v241
              %v243 = vld [vmem:[%s169 + $0x120] sm:$0xf]
              %244 = vst [vmem:[%s170 + $0x90] sm:$0xf] %v243
              %v245 = vld [vmem:[%s169 + $0x128] sm:$0xf]
              %246 = vst [vmem:[%s170 + $0x94] sm:$0xf] %v245
              %v247 = vld [vmem:[%s169 + $0x130] sm:$0xf]
              %248 = vst [vmem:[%s170 + $0x98] sm:$0xf] %v247
              %v249 = vld [vmem:[%s169 + $0x138] sm:$0xf]
              %250 = vst [vmem:[%s170 + $0x9c] sm:$0xf] %v249
              %v251 = vld [vmem:[%s169 + $0x140] sm:$0xf]
              %252 = vst [vmem:[%s170 + $0xa0] sm:$0xf] %v251
              %v253 = vld [vmem:[%s169 + $0x148] sm:$0xf]
              %254 = vst [vmem:[%s170 + $0xa4] sm:$0xf] %v253
              %v255 = vld [vmem:[%s169 + $0x150] sm:$0xf]
              %256 = vst [vmem:[%s170 + $0xa8] sm:$0xf] %v255
              %v257 = vld [vmem:[%s169 + $0x158] sm:$0xf]
              %258 = vst [vmem:[%s170 + $0xac] sm:$0xf] %v257
              %v259 = vld [vmem:[%s169 + $0x160] sm:$0xf]
              %260 = vst [vmem:[%s170 + $0xb0] sm:$0xf] %v259
              %v261 = vld [vmem:[%s169 + $0x168] sm:$0xf]
              %262 = vst [vmem:[%s170 + $0xb4] sm:$0xf] %v261
              %v263 = vld [vmem:[%s169 + $0x170] sm:$0xf]
              %264 = vst [vmem:[%s170 + $0xb8] sm:$0xf] %v263
              %v265 = vld [vmem:[%s169 + $0x178] sm:$0xf]
              %266 = vst [vmem:[%s170 + $0xbc] sm:$0xf] %v265
              %v267 = vld [vmem:[%s169 + $0x180] sm:$0xf]
              %268 = vst [vmem:[%s170 + $0xc0] sm:$0xf] %v267
              %v269 = vld [vmem:[%s169 + $0x188] sm:$0xf]
              %270 = vst [vmem:[%s170 + $0xc4] sm:$0xf] %v269
              %v271 = vld [vmem:[%s169 + $0x190] sm:$0xf]
              %272 = vst [vmem:[%s170 + $0xc8] sm:$0xf] %v271
              %v273 = vld [vmem:[%s169 + $0x198] sm:$0xf]
              %274 = vst [vmem:[%s170 + $0xcc] sm:$0xf] %v273
              %v275 = vld [vmem:[%s169 + $0x1a0] sm:$0xf]
              %276 = vst [vmem:[%s170 + $0xd0] sm:$0xf] %v275
              %v277 = vld [vmem:[%s169 + $0x1a8] sm:$0xf]
              %278 = vst [vmem:[%s170 + $0xd4] sm:$0xf] %v277
              %v279 = vld [vmem:[%s169 + $0x1b0] sm:$0xf]
              %280 = vst [vmem:[%s170 + $0xd8] sm:$0xf] %v279
              %v281 = vld [vmem:[%s169 + $0x1b8] sm:$0xf]
              %282 = vst [vmem:[%s170 + $0xdc] sm:$0xf] %v281
              %v283 = vld [vmem:[%s169 + $0x1c0] sm:$0xf]
              %284 = vst [vmem:[%s170 + $0xe0] sm:$0xf] %v283
              %v285 = vld [vmem:[%s169 + $0x1c8] sm:$0xf]
              %286 = vst [vmem:[%s170 + $0xe4] sm:$0xf] %v285
              %v287 = vld [vmem:[%s169 + $0x1d0] sm:$0xf]
              %288 = vst [vmem:[%s170 + $0xe8] sm:$0xf] %v287
              %v289 = vld [vmem:[%s169 + $0x1d8] sm:$0xf]
              %290 = vst [vmem:[%s170 + $0xec] sm:$0xf] %v289
              %v291 = vld [vmem:[%s169 + $0x1e0] sm:$0xf]
              %292 = vst [vmem:[%s170 + $0xf0] sm:$0xf] %v291
              %v293 = vld [vmem:[%s169 + $0x1e8] sm:$0xf]
              %294 = vst [vmem:[%s170 + $0xf4] sm:$0xf] %v293
              %v295 = vld [vmem:[%s169 + $0x1f0] sm:$0xf]
              %296 = vst [vmem:[%s170 + $0xf8] sm:$0xf] %v295
              %v297 = vld [vmem:[%s169 + $0x1f8] sm:$0xf]
              %298 = vst [vmem:[%s170 + $0xfc] sm:$0xf] %v297
            $region40: #{dgi_forward.6} parent=27 // loop_footer
              %s168 = sadd.s32 1, %s164
            $region41: #{dgi_forward.6} parent=27 // loop_footer_branch
              %163 = sbr.rel target = $region37
            $region42: #{dgi_forward.6} parent=27 // loop_exit
              _
          $region28: #{dgi_forward.6} parent=12 // pred_fallthru
            _
        $region13: #{dgi_forward.6} parent=8 // pred_fallthru
          _
        // Predicated region
        $region14: #{dgi_forward.6} parent=8 // pred_check
          _
        $region15: #{dgi_forward.6} parent=8 // pred_check_branch
          %14 = sbr.rel (0) target = $region17
        $region16: #{dgi_forward.6} parent=8 // pred_region
          loop: start=0, step=1, limit=1
          $region18: #{dgi_forward.6} parent=16 // loop_pre_header
            _
          $region19: #{dgi_forward.6} parent=16 // loop_header
            %s17 = sphi 0, %s21
            %p18 = scmp.ge.s32.totalorder %s17, 1
            %s22 = sphi %s0, %s0
            %s23 = sphi [#allocation3], [#allocation3]
          $region20: #{dgi_forward.6} parent=16 // loop_header_branch
            %20 = sbr.rel (%p18) target = $region24
          $region21: #{dgi_forward.6} parent=16 // loop_body
            %v24 = vld [vmem:[%s22] sm:$0xf]
            %25 = vst [vmem:[%s23] sm:$0xf] %v24
            %v26 = vld [vmem:[%s22 + $0x8] sm:$0xf]
            %27 = vst [vmem:[%s23 + $0x4] sm:$0xf] %v26
            %v28 = vld [vmem:[%s22 + $0x10] sm:$0xf]
            %29 = vst [vmem:[%s23 + $0x8] sm:$0xf] %v28
            %v30 = vld [vmem:[%s22 + $0x18] sm:$0xf]
            %31 = vst [vmem:[%s23 + $0xc] sm:$0xf] %v30
            %v32 = vld [vmem:[%s22 + $0x20] sm:$0xf]
            %33 = vst [vmem:[%s23 + $0x10] sm:$0xf] %v32
            %v34 = vld [vmem:[%s22 + $0x28] sm:$0xf]
            %35 = vst [vmem:[%s23 + $0x14] sm:$0xf] %v34
            %v36 = vld [vmem:[%s22 + $0x30] sm:$0xf]
            %37 = vst [vmem:[%s23 + $0x18] sm:$0xf] %v36
            %v38 = vld [vmem:[%s22 + $0x38] sm:$0xf]
            %39 = vst [vmem:[%s23 + $0x1c] sm:$0xf] %v38
            %v40 = vld [vmem:[%s22 + $0x40] sm:$0xf]
            %41 = vst [vmem:[%s23 + $0x20] sm:$0xf] %v40
            %v42 = vld [vmem:[%s22 + $0x48] sm:$0xf]
            %43 = vst [vmem:[%s23 + $0x24] sm:$0xf] %v42
            %v44 = vld [vmem:[%s22 + $0x50] sm:$0xf]
            %45 = vst [vmem:[%s23 + $0x28] sm:$0xf] %v44
            %v46 = vld [vmem:[%s22 + $0x58] sm:$0xf]
            %47 = vst [vmem:[%s23 + $0x2c] sm:$0xf] %v46
            %v48 = vld [vmem:[%s22 + $0x60] sm:$0xf]
            %49 = vst [vmem:[%s23 + $0x30] sm:$0xf] %v48
            %v50 = vld [vmem:[%s22 + $0x68] sm:$0xf]
            %51 = vst [vmem:[%s23 + $0x34] sm:$0xf] %v50
            %v52 = vld [vmem:[%s22 + $0x70] sm:$0xf]
            %53 = vst [vmem:[%s23 + $0x38] sm:$0xf] %v52
            %v54 = vld [vmem:[%s22 + $0x78] sm:$0xf]
            %55 = vst [vmem:[%s23 + $0x3c] sm:$0xf] %v54
            %v56 = vld [vmem:[%s22 + $0x80] sm:$0xf]
            %57 = vst [vmem:[%s23 + $0x40] sm:$0xf] %v56
            %v58 = vld [vmem:[%s22 + $0x88] sm:$0xf]
            %59 = vst [vmem:[%s23 + $0x44] sm:$0xf] %v58
            %v60 = vld [vmem:[%s22 + $0x90] sm:$0xf]
            %61 = vst [vmem:[%s23 + $0x48] sm:$0xf] %v60
            %v62 = vld [vmem:[%s22 + $0x98] sm:$0xf]
            %63 = vst [vmem:[%s23 + $0x4c] sm:$0xf] %v62
            %v64 = vld [vmem:[%s22 + $0xa0] sm:$0xf]
            %65 = vst [vmem:[%s23 + $0x50] sm:$0xf] %v64
            %v66 = vld [vmem:[%s22 + $0xa8] sm:$0xf]
            %67 = vst [vmem:[%s23 + $0x54] sm:$0xf] %v66
            %v68 = vld [vmem:[%s22 + $0xb0] sm:$0xf]
            %69 = vst [vmem:[%s23 + $0x58] sm:$0xf] %v68
            %v70 = vld [vmem:[%s22 + $0xb8] sm:$0xf]
            %71 = vst [vmem:[%s23 + $0x5c] sm:$0xf] %v70
            %v72 = vld [vmem:[%s22 + $0xc0] sm:$0xf]
            %73 = vst [vmem:[%s23 + $0x60] sm:$0xf] %v72
            %v74 = vld [vmem:[%s22 + $0xc8] sm:$0xf]
            %75 = vst [vmem:[%s23 + $0x64] sm:$0xf] %v74
            %v76 = vld [vmem:[%s22 + $0xd0] sm:$0xf]
            %77 = vst [vmem:[%s23 + $0x68] sm:$0xf] %v76
            %v78 = vld [vmem:[%s22 + $0xd8] sm:$0xf]
            %79 = vst [vmem:[%s23 + $0x6c] sm:$0xf] %v78
            %v80 = vld [vmem:[%s22 + $0xe0] sm:$0xf]
            %81 = vst [vmem:[%s23 + $0x70] sm:$0xf] %v80
            %v82 = vld [vmem:[%s22 + $0xe8] sm:$0xf]
            %83 = vst [vmem:[%s23 + $0x74] sm:$0xf] %v82
            %v84 = vld [vmem:[%s22 + $0xf0] sm:$0xf]
            %85 = vst [vmem:[%s23 + $0x78] sm:$0xf] %v84
            %v86 = vld [vmem:[%s22 + $0xf8] sm:$0xf]
            %87 = vst [vmem:[%s23 + $0x7c] sm:$0xf] %v86
            %v88 = vld [vmem:[%s22 + $0x100] sm:$0xf]
            %89 = vst [vmem:[%s23 + $0x80] sm:$0xf] %v88
            %v90 = vld [vmem:[%s22 + $0x108] sm:$0xf]
            %91 = vst [vmem:[%s23 + $0x84] sm:$0xf] %v90
            %v92 = vld [vmem:[%s22 + $0x110] sm:$0xf]
            %93 = vst [vmem:[%s23 + $0x88] sm:$0xf] %v92
            %v94 = vld [vmem:[%s22 + $0x118] sm:$0xf]
            %95 = vst [vmem:[%s23 + $0x8c] sm:$0xf] %v94
            %v96 = vld [vmem:[%s22 + $0x120] sm:$0xf]
            %97 = vst [vmem:[%s23 + $0x90] sm:$0xf] %v96
            %v98 = vld [vmem:[%s22 + $0x128] sm:$0xf]
            %99 = vst [vmem:[%s23 + $0x94] sm:$0xf] %v98
            %v100 = vld [vmem:[%s22 + $0x130] sm:$0xf]
            %101 = vst [vmem:[%s23 + $0x98] sm:$0xf] %v100
            %v102 = vld [vmem:[%s22 + $0x138] sm:$0xf]
            %103 = vst [vmem:[%s23 + $0x9c] sm:$0xf] %v102
            %v104 = vld [vmem:[%s22 + $0x140] sm:$0xf]
            %105 = vst [vmem:[%s23 + $0xa0] sm:$0xf] %v104
            %v106 = vld [vmem:[%s22 + $0x148] sm:$0xf]
            %107 = vst [vmem:[%s23 + $0xa4] sm:$0xf] %v106
            %v108 = vld [vmem:[%s22 + $0x150] sm:$0xf]
            %109 = vst [vmem:[%s23 + $0xa8] sm:$0xf] %v108
            %v110 = vld [vmem:[%s22 + $0x158] sm:$0xf]
            %111 = vst [vmem:[%s23 + $0xac] sm:$0xf] %v110
            %v112 = vld [vmem:[%s22 + $0x160] sm:$0xf]
            %113 = vst [vmem:[%s23 + $0xb0] sm:$0xf] %v112
            %v114 = vld [vmem:[%s22 + $0x168] sm:$0xf]
            %115 = vst [vmem:[%s23 + $0xb4] sm:$0xf] %v114
            %v116 = vld [vmem:[%s22 + $0x170] sm:$0xf]
            %117 = vst [vmem:[%s23 + $0xb8] sm:$0xf] %v116
            %v118 = vld [vmem:[%s22 + $0x178] sm:$0xf]
            %119 = vst [vmem:[%s23 + $0xbc] sm:$0xf] %v118
            %v120 = vld [vmem:[%s22 + $0x180] sm:$0xf]
            %121 = vst [vmem:[%s23 + $0xc0] sm:$0xf] %v120
            %v122 = vld [vmem:[%s22 + $0x188] sm:$0xf]
            %123 = vst [vmem:[%s23 + $0xc4] sm:$0xf] %v122
            %v124 = vld [vmem:[%s22 + $0x190] sm:$0xf]
            %125 = vst [vmem:[%s23 + $0xc8] sm:$0xf] %v124
            %v126 = vld [vmem:[%s22 + $0x198] sm:$0xf]
            %127 = vst [vmem:[%s23 + $0xcc] sm:$0xf] %v126
            %v128 = vld [vmem:[%s22 + $0x1a0] sm:$0xf]
            %129 = vst [vmem:[%s23 + $0xd0] sm:$0xf] %v128
            %v130 = vld [vmem:[%s22 + $0x1a8] sm:$0xf]
            %131 = vst [vmem:[%s23 + $0xd4] sm:$0xf] %v130
            %v132 = vld [vmem:[%s22 + $0x1b0] sm:$0xf]
            %133 = vst [vmem:[%s23 + $0xd8] sm:$0xf] %v132
            %v134 = vld [vmem:[%s22 + $0x1b8] sm:$0xf]
            %135 = vst [vmem:[%s23 + $0xdc] sm:$0xf] %v134
            %v136 = vld [vmem:[%s22 + $0x1c0] sm:$0xf]
            %137 = vst [vmem:[%s23 + $0xe0] sm:$0xf] %v136
            %v138 = vld [vmem:[%s22 + $0x1c8] sm:$0xf]
            %139 = vst [vmem:[%s23 + $0xe4] sm:$0xf] %v138
            %v140 = vld [vmem:[%s22 + $0x1d0] sm:$0xf]
            %141 = vst [vmem:[%s23 + $0xe8] sm:$0xf] %v140
            %v142 = vld [vmem:[%s22 + $0x1d8] sm:$0xf]
            %143 = vst [vmem:[%s23 + $0xec] sm:$0xf] %v142
            %v144 = vld [vmem:[%s22 + $0x1e0] sm:$0xf]
            %145 = vst [vmem:[%s23 + $0xf0] sm:$0xf] %v144
            %v146 = vld [vmem:[%s22 + $0x1e8] sm:$0xf]
            %147 = vst [vmem:[%s23 + $0xf4] sm:$0xf] %v146
            %v148 = vld [vmem:[%s22 + $0x1f0] sm:$0xf]
            %149 = vst [vmem:[%s23 + $0xf8] sm:$0xf] %v148
            %v150 = vld [vmem:[%s22 + $0x1f8] sm:$0xf]
            %151 = vst [vmem:[%s23 + $0xfc] sm:$0xf] %v150
          $region22: #{dgi_forward.6} parent=16 // loop_footer
            %s21 = sadd.s32 1, %s17
          $region23: #{dgi_forward.6} parent=16 // loop_footer_branch
            %16 = sbr.rel target = $region19
          $region24: #{dgi_forward.6} parent=16 // loop_exit
            _
        $region17: #{dgi_forward.6} parent=8 // pred_fallthru
          _
      $region9: #{dgi_forward.6} parent=4 // pred_fallthru
        _
      %299 = vnop
    $region5: #{dgi_forward.6} parent=1 // pred_fallthru
      _
    // Predicated region
    $region43: #{dgi_forward.6} parent=1 // pred_check
      _
    $region44: #{dgi_forward.6} parent=1 // pred_check_branch
      %301 = sbr.rel (0) target = $region46
    $region45: #{dgi_forward.6} parent=1 // pred_region
      _
    $region46: #{dgi_forward.6} parent=1 // pred_fallthru
      _
    // Predicated region
    $region47: #{dgi_forward.6} parent=1 // pred_check
      _
    $region48: #{dgi_forward.6} parent=1 // pred_check_branch
      %303 = sbr.rel (0) target = $region50
    $region49: #{dgi_forward.6} parent=1 // pred_region
      _
    $region50: #{dgi_forward.6} parent=1 // pred_fallthru
      _
    %p304 = scmp.eq.s32.totalorder 0, 0
    // Predicated region
    $region51: #{dgi_forward.6} parent=1 // pred_check
      %p305 = pneg %p304
    $region52: #{dgi_forward.6} parent=1 // pred_check_branch
      %307 = sbr.rel (%p305) target = $region54
    $region53: #{dgi_forward.6} parent=1 // pred_region
      %308 = vst [vmem:[#allocation2] sm:$0x1] 0.0
    $region54: #{dgi_forward.6} parent=1 // pred_fallthru
      _
    %v309 = vld [vmem:[#allocation2] sm:$0x1]
    %v310 = vld [vmem:[#allocation3] sm:$0xf]
    %v311 = vld [vmem:[#allocation3 + $0x4] sm:$0xf]
    %v312 = vld [vmem:[#allocation3 + $0x8] sm:$0xf]
    %v313 = vld [vmem:[#allocation3 + $0xc] sm:$0xf]
    %v314 = vld [vmem:[#allocation3 + $0x10] sm:$0xf]
    %v315 = vld [vmem:[#allocation3 + $0x14] sm:$0xf]
    %v316 = vld [vmem:[#allocation3 + $0x18] sm:$0xf]
    %v317 = vld [vmem:[#allocation3 + $0x1c] sm:$0xf]
    %v318 = vld [vmem:[#allocation3 + $0x20] sm:$0xf]
    %v319 = vld [vmem:[#allocation3 + $0x24] sm:$0xf]
    %v320 = vld [vmem:[#allocation3 + $0x28] sm:$0xf]
    %v321 = vld [vmem:[#allocation3 + $0x2c] sm:$0xf]
    %v322 = vld [vmem:[#allocation3 + $0x30] sm:$0xf]
    %v323 = vld [vmem:[#allocation3 + $0x34] sm:$0xf]
    %v324 = vld [vmem:[#allocation3 + $0x38] sm:$0xf]
    %v325 = vld [vmem:[#allocation3 + $0x3c] sm:$0xf]
    %v326 = vld [vmem:[#allocation3 + $0x40] sm:$0xf]
    %v327 = vld [vmem:[#allocation3 + $0x44] sm:$0xf]
    %v328 = vld [vmem:[#allocation3 + $0x48] sm:$0xf]
    %v329 = vld [vmem:[#allocation3 + $0x4c] sm:$0xf]
    %v330 = vld [vmem:[#allocation3 + $0x50] sm:$0xf]
    %v331 = vld [vmem:[#allocation3 + $0x54] sm:$0xf]
    %v332 = vld [vmem:[#allocation3 + $0x58] sm:$0xf]
    %v333 = vld [vmem:[#allocation3 + $0x5c] sm:$0xf]
    %v334 = vld [vmem:[#allocation3 + $0x60] sm:$0xf]
    %v335 = vld [vmem:[#allocation3 + $0x64] sm:$0xf]
    %v336 = vld [vmem:[#allocation3 + $0x68] sm:$0xf]
    %v337 = vld [vmem:[#allocation3 + $0x6c] sm:$0xf]
    %v338 = vld [vmem:[#allocation3 + $0x70] sm:$0xf]
    %v339 = vld [vmem:[#allocation3 + $0x74] sm:$0xf]
    %v340 = vld [vmem:[#allocation3 + $0x78] sm:$0xf]
    %v341 = vld [vmem:[#allocation3 + $0x7c] sm:$0xf]
    %v342 = vld [vmem:[#allocation3 + $0x80] sm:$0xf]
    %v343 = vld [vmem:[#allocation3 + $0x84] sm:$0xf]
    %v344 = vld [vmem:[#allocation3 + $0x88] sm:$0xf]
    %v345 = vld [vmem:[#allocation3 + $0x8c] sm:$0xf]
    %v346 = vld [vmem:[#allocation3 + $0x90] sm:$0xf]
    %v347 = vld [vmem:[#allocation3 + $0x94] sm:$0xf]
    %v348 = vld [vmem:[#allocation3 + $0x98] sm:$0xf]
    %v349 = vld [vmem:[#allocation3 + $0x9c] sm:$0xf]
    %v350 = vld [vmem:[#allocation3 + $0xa0] sm:$0xf]
    %v351 = vld [vmem:[#allocation3 + $0xa4] sm:$0xf]
    %v352 = vld [vmem:[#allocation3 + $0xa8] sm:$0xf]
    %v353 = vld [vmem:[#allocation3 + $0xac] sm:$0xf]
    %v354 = vld [vmem:[#allocation3 + $0xb0] sm:$0xf]
    %v355 = vld [vmem:[#allocation3 + $0xb4] sm:$0xf]
    %v356 = vld [vmem:[#allocation3 + $0xb8] sm:$0xf]
    %v357 = vld [vmem:[#allocation3 + $0xbc] sm:$0xf]
    %v358 = vld [vmem:[#allocation3 + $0xc0] sm:$0xf]
    %v359 = vld [vmem:[#allocation3 + $0xc4] sm:$0xf]
    %v360 = vld [vmem:[#allocation3 + $0xc8] sm:$0xf]
    %v361 = vld [vmem:[#allocation3 + $0xcc] sm:$0xf]
    %v362 = vld [vmem:[#allocation3 + $0xd0] sm:$0xf]
    %v363 = vld [vmem:[#allocation3 + $0xd4] sm:$0xf]
    %v364 = vld [vmem:[#allocation3 + $0xd8] sm:$0xf]
    %v365 = vld [vmem:[#allocation3 + $0xdc] sm:$0xf]
    %v366 = vld [vmem:[#allocation3 + $0xe0] sm:$0xf]
    %v367 = vld [vmem:[#allocation3 + $0xe4] sm:$0xf]
    %v368 = vld [vmem:[#allocation3 + $0xe8] sm:$0xf]
    %v369 = vld [vmem:[#allocation3 + $0xec] sm:$0xf]
    %v370 = vld [vmem:[#allocation3 + $0xf0] sm:$0xf]
    %v371 = vld [vmem:[#allocation3 + $0xf4] sm:$0xf]
    %v372 = vld [vmem:[#allocation3 + $0xf8] sm:$0xf]
    %v373 = vld [vmem:[#allocation3 + $0xfc] sm:$0xf]
    %v374 = vunpack.c.l.bf16 %v310
    %v375 = vunpack.c.l.bf16 %v311
    %v376 = vunpack.c.l.bf16 %v312
    %v377 = vunpack.c.l.bf16 %v313
    %v378 = vunpack.c.l.bf16 %v314
    %v379 = vunpack.c.l.bf16 %v315
    %v380 = vunpack.c.l.bf16 %v316
    %v381 = vunpack.c.l.bf16 %v317
    %v382 = vunpack.c.l.bf16 %v318
    %v383 = vunpack.c.l.bf16 %v319
    %v384 = vunpack.c.l.bf16 %v320
    %v385 = vunpack.c.l.bf16 %v321
    %v386 = vunpack.c.l.bf16 %v322
    %v387 = vunpack.c.l.bf16 %v323
    %v388 = vunpack.c.l.bf16 %v324
    %v389 = vunpack.c.l.bf16 %v325
    %v390 = vunpack.c.l.bf16 %v326
    %v391 = vunpack.c.l.bf16 %v327
    %v392 = vunpack.c.l.bf16 %v328
    %v393 = vunpack.c.l.bf16 %v329
    %v394 = vunpack.c.l.bf16 %v330
    %v395 = vunpack.c.l.bf16 %v331
    %v396 = vunpack.c.l.bf16 %v332
    %v397 = vunpack.c.l.bf16 %v333
    %v398 = vunpack.c.l.bf16 %v334
    %v399 = vunpack.c.l.bf16 %v335
    %v400 = vunpack.c.l.bf16 %v336
    %v401 = vunpack.c.l.bf16 %v337
    %v402 = vunpack.c.l.bf16 %v338
    %v403 = vunpack.c.l.bf16 %v339
    %v404 = vunpack.c.l.bf16 %v340
    %v405 = vunpack.c.l.bf16 %v341
    %v406 = vunpack.c.l.bf16 %v342
    %v407 = vunpack.c.l.bf16 %v343
    %v408 = vunpack.c.l.bf16 %v344
    %v409 = vunpack.c.l.bf16 %v345
    %v410 = vunpack.c.l.bf16 %v346
    %v411 = vunpack.c.l.bf16 %v347
    %v412 = vunpack.c.l.bf16 %v348
    %v413 = vunpack.c.l.bf16 %v349
    %v414 = vunpack.c.l.bf16 %v350
    %v415 = vunpack.c.l.bf16 %v351
    %v416 = vunpack.c.l.bf16 %v352
    %v417 = vunpack.c.l.bf16 %v353
    %v418 = vunpack.c.l.bf16 %v354
    %v419 = vunpack.c.l.bf16 %v355
    %v420 = vunpack.c.l.bf16 %v356
    %v421 = vunpack.c.l.bf16 %v357
    %v422 = vunpack.c.l.bf16 %v358
    %v423 = vunpack.c.l.bf16 %v359
    %v424 = vunpack.c.l.bf16 %v360
    %v425 = vunpack.c.l.bf16 %v361
    %v426 = vunpack.c.l.bf16 %v362
    %v427 = vunpack.c.l.bf16 %v363
    %v428 = vunpack.c.l.bf16 %v364
    %v429 = vunpack.c.l.bf16 %v365
    %v430 = vunpack.c.l.bf16 %v366
    %v431 = vunpack.c.l.bf16 %v367
    %v432 = vunpack.c.l.bf16 %v368
    %v433 = vunpack.c.l.bf16 %v369
    %v434 = vunpack.c.l.bf16 %v370
    %v435 = vunpack.c.l.bf16 %v371
    %v436 = vunpack.c.l.bf16 %v372
    %v437 = vunpack.c.l.bf16 %v373
    %v438 = vadd.f32 %v374, %v375
    %v439 = vadd.f32 %v438, %v376
    %v440 = vadd.f32 %v439, %v377
    %v441 = vadd.f32 %v440, %v378
    %v442 = vadd.f32 %v441, %v379
    %v443 = vadd.f32 %v442, %v380
    %v444 = vadd.f32 %v443, %v381
    %v445 = vadd.f32 %v444, %v382
    %v446 = vadd.f32 %v445, %v383
    %v447 = vadd.f32 %v446, %v384
    %v448 = vadd.f32 %v447, %v385
    %v449 = vadd.f32 %v448, %v386
    %v450 = vadd.f32 %v449, %v387
    %v451 = vadd.f32 %v450, %v388
    %v452 = vadd.f32 %v451, %v389
    %v453 = vadd.f32 %v452, %v390
    %v454 = vadd.f32 %v453, %v391
    %v455 = vadd.f32 %v454, %v392
    %v456 = vadd.f32 %v455, %v393
    %v457 = vadd.f32 %v456, %v394
    %v458 = vadd.f32 %v457, %v395
    %v459 = vadd.f32 %v458, %v396
    %v460 = vadd.f32 %v459, %v397
    %v461 = vadd.f32 %v460, %v398
    %v462 = vadd.f32 %v461, %v399
    %v463 = vadd.f32 %v462, %v400
    %v464 = vadd.f32 %v463, %v401
    %v465 = vadd.f32 %v464, %v402
    %v466 = vadd.f32 %v465, %v403
    %v467 = vadd.f32 %v466, %v404
    %v468 = vadd.f32 %v467, %v405
    %v469 = vadd.f32 %v468, %v406
    %v470 = vadd.f32 %v469, %v407
    %v471 = vadd.f32 %v470, %v408
    %v472 = vadd.f32 %v471, %v409
    %v473 = vadd.f32 %v472, %v410
    %v474 = vadd.f32 %v473, %v411
    %v475 = vadd.f32 %v474, %v412
    %v476 = vadd.f32 %v475, %v413
    %v477 = vadd.f32 %v476, %v414
    %v478 = vadd.f32 %v477, %v415
    %v479 = vadd.f32 %v478, %v416
    %v480 = vadd.f32 %v479, %v417
    %v481 = vadd.f32 %v480, %v418
    %v482 = vadd.f32 %v481, %v419
    %v483 = vadd.f32 %v482, %v420
    %v484 = vadd.f32 %v483, %v421
    %v485 = vadd.f32 %v484, %v422
    %v486 = vadd.f32 %v485, %v423
    %v487 = vadd.f32 %v486, %v424
    %v488 = vadd.f32 %v487, %v425
    %v489 = vadd.f32 %v488, %v426
    %v490 = vadd.f32 %v489, %v427
    %v491 = vadd.f32 %v490, %v428
    %v492 = vadd.f32 %v491, %v429
    %v493 = vadd.f32 %v492, %v430
    %v494 = vadd.f32 %v493, %v431
    %v495 = vadd.f32 %v494, %v432
    %v496 = vadd.f32 %v495, %v433
    %v497 = vadd.f32 %v496, %v434
    %v498 = vadd.f32 %v497, %v435
    %v499 = vadd.f32 %v498, %v436
    %v500 = vadd.f32 %v499, %v437
    %v501 = vrot.slane %v500, 4
    %v502 = vadd.f32 %v500, %v501
    %v503 = vrot.slane %v502, 2
    %v504 = vadd.f32 %v502, %v503
    %v505 = vrot.slane %v504, 1
    %v506 = vadd.f32 %v504, %v505
    %v507 = vadd.f32 %v309, %v506
    %508 = vst [vmem:[#allocation2] sm:$0x1] %v507
    // Predicated region
    $region55: #{dgi_forward.6} parent=1 // pred_check
      %p509 = pneg %p304
    $region56: #{dgi_forward.6} parent=1 // pred_check_branch
      %511 = sbr.rel (%p509) target = $region58
    $region57: #{dgi_forward.6} parent=1 // pred_region
      %v512 = vld [vmem:[#allocation2] sm:$0x1]
      %v513 = vmul.f32 %v512, 0.002
      %v514 = vxor.u32 %v513, 2147483648
      %v515 = vmul.f32 %v514, 1.442695
      %v516 = vpow.pop %v515
      %v517 = vadd.f32 %v516, 1.0
      %v518 = vrcp.pop %v517
      %v519 = vmul.f32 1.0, %v518
      %v520 = vld [vmem:[%s1] sm:$0xff]
      %v521 = vld [vmem:[%s1 + $0x8] sm:$0xff]
      %v522 = vld [vmem:[%s1 + $0x10] sm:$0xff]
      %v523 = vld [vmem:[%s1 + $0x18] sm:$0xff]
      %v524 = vld [vmem:[%s1 + $0x20] sm:$0xff]
      %v525 = vld [vmem:[%s1 + $0x28] sm:$0xff]
      %v526 = vld [vmem:[%s1 + $0x30] sm:$0xff]
      %v527 = vld [vmem:[%s1 + $0x38] sm:$0xff]
      %v528 = vld [vmem:[%s1 + $0x40] sm:$0xff]
      %v529 = vld [vmem:[%s1 + $0x48] sm:$0xff]
      %v530 = vld [vmem:[%s1 + $0x50] sm:$0xff]
      %v531 = vld [vmem:[%s1 + $0x58] sm:$0xff]
      %v532 = vld [vmem:[%s1 + $0x60] sm:$0xff]
      %v533 = vld [vmem:[%s1 + $0x68] sm:$0xff]
      %v534 = vld [vmem:[%s1 + $0x70] sm:$0xff]
      %v535 = vld [vmem:[%s1 + $0x78] sm:$0xff]
      %536 = vmatprep.subr.mxu0 0.0
      %537 = vmatpush1.msra.mxu0 %v520
      %538 = vmatprep.subr.mxu0 0.0
      %539 = vmatpush1.msra.mxu0 %v521
      %540 = vmatprep.subr.mxu0 0.0
      %541 = vmatpush1.msra.mxu0 %v522
      %542 = vmatprep.subr.mxu0 0.0
      %543 = vmatpush1.msra.mxu0 %v523
      %544 = vmatprep.subr.mxu0 0.0
      %545 = vmatpush1.msra.mxu0 %v524
      %546 = vmatprep.subr.mxu0 0.0
      %547 = vmatpush1.msra.mxu0 %v525
      %548 = vmatprep.subr.mxu0 0.0
      %549 = vmatpush1.msra.mxu0 %v526
      %550 = vmatprep.subr.mxu0 0.0
      %551 = vmatpush1.msra.mxu0 %v527
      %552 = vmatprep.subr.mxu0 0.0
      %553 = vmatpush1.msra.mxu0 %v528
      %554 = vmatprep.subr.mxu0 0.0
      %555 = vmatpush1.msra.mxu0 %v529
      %556 = vmatprep.subr.mxu0 0.0
      %557 = vmatpush1.msra.mxu0 %v530
      %558 = vmatprep.subr.mxu0 0.0
      %559 = vmatpush1.msra.mxu0 %v531
      %560 = vmatprep.subr.mxu0 0.0
      %561 = vmatpush1.msra.mxu0 %v532
      %562 = vmatprep.subr.mxu0 0.0
      %563 = vmatpush1.msra.mxu0 %v533
      %564 = vmatprep.subr.mxu0 0.0
      %565 = vmatpush1.msra.mxu0 %v534
      %566 = vmatprep.subr.mxu0 0.0
      %567 = vmatpush1.msra.mxu0 %v535
      %568 = vmatprep.subr.mxu0 0.0
      %569 = vmatpush1.msra.mxu0 0.0
      %570 = vmatprep.subr.mxu0 0.0
      %571 = vmatpush1.msra.mxu0 0.0
      %572 = vmatprep.subr.mxu0 0.0
      %573 = vmatpush1.msra.mxu0 0.0
      %574 = vmatprep.subr.mxu0 0.0
      %575 = vmatpush1.msra.mxu0 0.0
      %576 = vmatprep.subr.mxu0 0.0
      %577 = vmatpush1.msra.mxu0 0.0
      %578 = vmatprep.subr.mxu0 0.0
      %579 = vmatpush1.msra.mxu0 0.0
      %580 = vmatprep.subr.mxu0 0.0
      %581 = vmatpush1.msra.mxu0 0.0
      %582 = vmatprep.subr.mxu0 0.0
      %583 = vmatpush1.msra.mxu0 0.0
      %584 = vmatprep.subr.mxu0 0.0
      %585 = vmatpush1.msra.mxu0 0.0
      %586 = vmatprep.subr.mxu0 0.0
      %587 = vmatpush1.msra.mxu0 0.0
      %588 = vmatprep.subr.mxu0 0.0
      %589 = vmatpush1.msra.mxu0 0.0
      %590 = vmatprep.subr.mxu0 0.0
      %591 = vmatpush1.msra.mxu0 0.0
      %592 = vmatprep.subr.mxu0 0.0
      %593 = vmatpush1.msra.mxu0 0.0
      %594 = vmatprep.subr.mxu0 0.0
      %595 = vmatpush1.msra.mxu0 0.0
      %596 = vmatprep.subr.mxu0 0.0
      %597 = vmatpush1.msra.mxu0 0.0
      %598 = vmatprep.subr.mxu0 0.0
      %599 = vmatpush1.msra.mxu0 0.0
      %600 = vmatprep.mubr.f32.mxu0 0.0
      %601 = vmatmul.mubr.f32.gmra.mrb[0].mxu0 %v519
      %v602 = vpop.f32.mrb[0].mxu0
      %v603 = vadd.f32 0.0, %v602
      %v604 = vpop.f32.mrb[0].mxu0
      %605 = vdwg.mxu0
      %606 = vst [vmem:[%s2] sm:$0x1] %v603
    $region58: #{dgi_forward.6} parent=1 // pred_fallthru
      _
    // Predicated region
    $region59: #{dgi_forward.6} parent=1 // pred_check
      _
    $region60: #{dgi_forward.6} parent=1 // pred_check_branch
      %608 = sbr.rel (0) target = $region62
    $region61: #{dgi_forward.6} parent=1 // pred_region
      _
    $region62: #{dgi_forward.6} parent=1 // pred_fallthru
      _
    // Predicated region
    $region63: #{dgi_forward.6} parent=1 // pred_check
      _
    $region64: #{dgi_forward.6} parent=1 // pred_check_branch
      %610 = sbr.rel (0) target = $region66
    $region65: #{dgi_forward.6} parent=1 // pred_region
      _
    $region66: #{dgi_forward.6} parent=1 // pred_fallthru
      _

// kernel: dgi_forward.7
$region0: #{dgi_forward.7}
  #allocation0 [shape = 'u32[]', space=smem, size = 0x4, offset = 0x4, fixed_abs, tag = 'smem constant byte address 0x4 - core index']
  #allocation1 [shape = 'u32[144,128]{1,0:T(1,128)}', space=vmem, size = 0x12000, scoped, tag = 'internal scratch']
  #allocation2 [shape = 'f32[1]{0:T(128)S(6)}', space=smem, size = 0x200, scoped, tag = 'scoped memory for dgi_forward.7']
  %s0 = inlined_call_operand.vmem [shape: f32[1,128], index: 0, kind: input, shape index: {}]
  %s1 = inlined_call_operand.vmem [shape: bf16[512,256], index: 1, kind: input, shape index: {}]
  %s2 = inlined_call_operand.<no memory space> [shape: f32[1], index: 2, kind: input, shape index: {}]
  %s3 = inlined_call_operand.vmem [shape: f32[1,512], index: 3, kind: output, shape index: {0}]
  %s4 = inlined_call_operand.vmem [shape: f32[1,512], index: 4, kind: output, shape index: {1}]
  %5 = xla_tuple %s3, %s4
  %s6 = sld [smem:[#allocation0]]
  $region30: #{dgi_forward.7} parent=0
    _
  %s8 = ssub.s32 1, %s6
  %s9 = scalar_select 0, %s8, %s6
  %10 = sst [smem:[#allocation2]] %s2
  // Predicated region
  $region2: #{dgi_forward.7} parent=0 // pred_check
    _
  $region3: #{dgi_forward.7} parent=0 // pred_check_branch
    %12 = sbr.rel (0) target = $region5
  $region4: #{dgi_forward.7} parent=0 // pred_region
    _
  $region5: #{dgi_forward.7} parent=0 // pred_fallthru
    _
  // Predicated region
  $region6: #{dgi_forward.7} parent=0 // pred_check
    _
  $region7: #{dgi_forward.7} parent=0 // pred_check_branch
    %14 = sbr.rel (0) target = $region9
  $region8: #{dgi_forward.7} parent=0 // pred_region
    _
  $region9: #{dgi_forward.7} parent=0 // pred_fallthru
    _
  // Predicated region
  $region10: #{dgi_forward.7} parent=0 // pred_check
    _
  $region11: #{dgi_forward.7} parent=0 // pred_check_branch
    %16 = sbr.rel (0) target = $region13
  $region12: #{dgi_forward.7} parent=0 // pred_region
    _
  $region13: #{dgi_forward.7} parent=0 // pred_fallthru
    _
  %v17 = vld [vmem:[%s0] sm:$0x1]
  %s18 = sld [smem:[#allocation2]]
  %v19 = vld [vmem:[%s1] sm:$0xf]
  %v20 = vld [vmem:[%s1 + $0x8] sm:$0xf]
  %v21 = vld [vmem:[%s1 + $0x10] sm:$0xf]
  %v22 = vld [vmem:[%s1 + $0x18] sm:$0xf]
  %v23 = vld [vmem:[%s1 + $0x20] sm:$0xf]
  %v24 = vld [vmem:[%s1 + $0x28] sm:$0xf]
  %v25 = vld [vmem:[%s1 + $0x30] sm:$0xf]
  %v26 = vld [vmem:[%s1 + $0x38] sm:$0xf]
  %v27 = vld [vmem:[%s1 + $0x40] sm:$0xf]
  %v28 = vld [vmem:[%s1 + $0x48] sm:$0xf]
  %v29 = vld [vmem:[%s1 + $0x50] sm:$0xf]
  %v30 = vld [vmem:[%s1 + $0x58] sm:$0xf]
  %v31 = vld [vmem:[%s1 + $0x60] sm:$0xf]
  %v32 = vld [vmem:[%s1 + $0x68] sm:$0xf]
  %v33 = vld [vmem:[%s1 + $0x70] sm:$0xf]
  %v34 = vld [vmem:[%s1 + $0x78] sm:$0xf]
  %v35 = vld [vmem:[%s1 + $0x80] sm:$0xf]
  %v36 = vld [vmem:[%s1 + $0x88] sm:$0xf]
  %v37 = vld [vmem:[%s1 + $0x90] sm:$0xf]
  %v38 = vld [vmem:[%s1 + $0x98] sm:$0xf]
  %v39 = vld [vmem:[%s1 + $0xa0] sm:$0xf]
  %v40 = vld [vmem:[%s1 + $0xa8] sm:$0xf]
  %v41 = vld [vmem:[%s1 + $0xb0] sm:$0xf]
  %v42 = vld [vmem:[%s1 + $0xb8] sm:$0xf]
  %v43 = vld [vmem:[%s1 + $0xc0] sm:$0xf]
  %v44 = vld [vmem:[%s1 + $0xc8] sm:$0xf]
  %v45 = vld [vmem:[%s1 + $0xd0] sm:$0xf]
  %v46 = vld [vmem:[%s1 + $0xd8] sm:$0xf]
  %v47 = vld [vmem:[%s1 + $0xe0] sm:$0xf]
  %v48 = vld [vmem:[%s1 + $0xe8] sm:$0xf]
  %v49 = vld [vmem:[%s1 + $0xf0] sm:$0xf]
  %v50 = vld [vmem:[%s1 + $0xf8] sm:$0xf]
  %v51 = vld [vmem:[%s1 + $0x100] sm:$0xf]
  %v52 = vld [vmem:[%s1 + $0x108] sm:$0xf]
  %v53 = vld [vmem:[%s1 + $0x110] sm:$0xf]
  %v54 = vld [vmem:[%s1 + $0x118] sm:$0xf]
  %v55 = vld [vmem:[%s1 + $0x120] sm:$0xf]
  %v56 = vld [vmem:[%s1 + $0x128] sm:$0xf]
  %v57 = vld [vmem:[%s1 + $0x130] sm:$0xf]
  %v58 = vld [vmem:[%s1 + $0x138] sm:$0xf]
  %v59 = vld [vmem:[%s1 + $0x140] sm:$0xf]
  %v60 = vld [vmem:[%s1 + $0x148] sm:$0xf]
  %v61 = vld [vmem:[%s1 + $0x150] sm:$0xf]
  %v62 = vld [vmem:[%s1 + $0x158] sm:$0xf]
  %v63 = vld [vmem:[%s1 + $0x160] sm:$0xf]
  %v64 = vld [vmem:[%s1 + $0x168] sm:$0xf]
  %v65 = vld [vmem:[%s1 + $0x170] sm:$0xf]
  %v66 = vld [vmem:[%s1 + $0x178] sm:$0xf]
  %v67 = vld [vmem:[%s1 + $0x180] sm:$0xf]
  %v68 = vld [vmem:[%s1 + $0x188] sm:$0xf]
  %v69 = vld [vmem:[%s1 + $0x190] sm:$0xf]
  %v70 = vld [vmem:[%s1 + $0x198] sm:$0xf]
  %v71 = vld [vmem:[%s1 + $0x1a0] sm:$0xf]
  %v72 = vld [vmem:[%s1 + $0x1a8] sm:$0xf]
  %v73 = vld [vmem:[%s1 + $0x1b0] sm:$0xf]
  %v74 = vld [vmem:[%s1 + $0x1b8] sm:$0xf]
  %v75 = vld [vmem:[%s1 + $0x1c0] sm:$0xf]
  %v76 = vld [vmem:[%s1 + $0x1c8] sm:$0xf]
  %v77 = vld [vmem:[%s1 + $0x1d0] sm:$0xf]
  %v78 = vld [vmem:[%s1 + $0x1d8] sm:$0xf]
  %v79 = vld [vmem:[%s1 + $0x1e0] sm:$0xf]
  %v80 = vld [vmem:[%s1 + $0x1e8] sm:$0xf]
  %v81 = vld [vmem:[%s1 + $0x1f0] sm:$0xf]
  %v82 = vld [vmem:[%s1 + $0x1f8] sm:$0xf]
  %v83 = vunpack.c.l.bf16 %v19
  %v84 = vunpack.c.l.bf16 %v20
  %v85 = vunpack.c.l.bf16 %v21
  %v86 = vunpack.c.l.bf16 %v22
  %v87 = vunpack.c.l.bf16 %v23
  %v88 = vunpack.c.l.bf16 %v24
  %v89 = vunpack.c.l.bf16 %v25
  %v90 = vunpack.c.l.bf16 %v26
  %v91 = vunpack.c.l.bf16 %v27
  %v92 = vunpack.c.l.bf16 %v28
  %v93 = vunpack.c.l.bf16 %v29
  %v94 = vunpack.c.l.bf16 %v30
  %v95 = vunpack.c.l.bf16 %v31
  %v96 = vunpack.c.l.bf16 %v32
  %v97 = vunpack.c.l.bf16 %v33
  %v98 = vunpack.c.l.bf16 %v34
  %v99 = vunpack.c.l.bf16 %v35
  %v100 = vunpack.c.l.bf16 %v36
  %v101 = vunpack.c.l.bf16 %v37
  %v102 = vunpack.c.l.bf16 %v38
  %v103 = vunpack.c.l.bf16 %v39
  %v104 = vunpack.c.l.bf16 %v40
  %v105 = vunpack.c.l.bf16 %v41
  %v106 = vunpack.c.l.bf16 %v42
  %v107 = vunpack.c.l.bf16 %v43
  %v108 = vunpack.c.l.bf16 %v44
  %v109 = vunpack.c.l.bf16 %v45
  %v110 = vunpack.c.l.bf16 %v46
  %v111 = vunpack.c.l.bf16 %v47
  %v112 = vunpack.c.l.bf16 %v48
  %v113 = vunpack.c.l.bf16 %v49
  %v114 = vunpack.c.l.bf16 %v50
  %v115 = vunpack.c.l.bf16 %v51
  %v116 = vunpack.c.l.bf16 %v52
  %v117 = vunpack.c.l.bf16 %v53
  %v118 = vunpack.c.l.bf16 %v54
  %v119 = vunpack.c.l.bf16 %v55
  %v120 = vunpack.c.l.bf16 %v56
  %v121 = vunpack.c.l.bf16 %v57
  %v122 = vunpack.c.l.bf16 %v58
  %v123 = vunpack.c.l.bf16 %v59
  %v124 = vunpack.c.l.bf16 %v60
  %v125 = vunpack.c.l.bf16 %v61
  %v126 = vunpack.c.l.bf16 %v62
  %v127 = vunpack.c.l.bf16 %v63
  %v128 = vunpack.c.l.bf16 %v64
  %v129 = vunpack.c.l.bf16 %v65
  %v130 = vunpack.c.l.bf16 %v66
  %v131 = vunpack.c.l.bf16 %v67
  %v132 = vunpack.c.l.bf16 %v68
  %v133 = vunpack.c.l.bf16 %v69
  %v134 = vunpack.c.l.bf16 %v70
  %v135 = vunpack.c.l.bf16 %v71
  %v136 = vunpack.c.l.bf16 %v72
  %v137 = vunpack.c.l.bf16 %v73
  %v138 = vunpack.c.l.bf16 %v74
  %v139 = vunpack.c.l.bf16 %v75
  %v140 = vunpack.c.l.bf16 %v76
  %v141 = vunpack.c.l.bf16 %v77
  %v142 = vunpack.c.l.bf16 %v78
  %v143 = vunpack.c.l.bf16 %v79
  %v144 = vunpack.c.l.bf16 %v80
  %v145 = vunpack.c.l.bf16 %v81
  %v146 = vunpack.c.l.bf16 %v82
  %v147 = vld [vmem:[%s1 + $0x4] sm:$0xf]
  %v148 = vld [vmem:[%s1 + $0xc] sm:$0xf]
  %v149 = vld [vmem:[%s1 + $0x14] sm:$0xf]
  %v150 = vld [vmem:[%s1 + $0x1c] sm:$0xf]
  %v151 = vld [vmem:[%s1 + $0x24] sm:$0xf]
  %v152 = vld [vmem:[%s1 + $0x2c] sm:$0xf]
  %v153 = vld [vmem:[%s1 + $0x34] sm:$0xf]
  %v154 = vld [vmem:[%s1 + $0x3c] sm:$0xf]
  %v155 = vld [vmem:[%s1 + $0x44] sm:$0xf]
  %v156 = vld [vmem:[%s1 + $0x4c] sm:$0xf]
  %v157 = vld [vmem:[%s1 + $0x54] sm:$0xf]
  %v158 = vld [vmem:[%s1 + $0x5c] sm:$0xf]
  %v159 = vld [vmem:[%s1 + $0x64] sm:$0xf]
  %v160 = vld [vmem:[%s1 + $0x6c] sm:$0xf]
  %v161 = vld [vmem:[%s1 + $0x74] sm:$0xf]
  %v162 = vld [vmem:[%s1 + $0x7c] sm:$0xf]
  %v163 = vld [vmem:[%s1 + $0x84] sm:$0xf]
  %v164 = vld [vmem:[%s1 + $0x8c] sm:$0xf]
  %v165 = vld [vmem:[%s1 + $0x94] sm:$0xf]
  %v166 = vld [vmem:[%s1 + $0x9c] sm:$0xf]
  %v167 = vld [vmem:[%s1 + $0xa4] sm:$0xf]
  %v168 = vld [vmem:[%s1 + $0xac] sm:$0xf]
  %v169 = vld [vmem:[%s1 + $0xb4] sm:$0xf]
  %v170 = vld [vmem:[%s1 + $0xbc] sm:$0xf]
  %v171 = vld [vmem:[%s1 + $0xc4] sm:$0xf]
  %v172 = vld [vmem:[%s1 + $0xcc] sm:$0xf]
  %v173 = vld [vmem:[%s1 + $0xd4] sm:$0xf]
  %v174 = vld [vmem:[%s1 + $0xdc] sm:$0xf]
  %v175 = vld [vmem:[%s1 + $0xe4] sm:$0xf]
  %v176 = vld [vmem:[%s1 + $0xec] sm:$0xf]
  %v177 = vld [vmem:[%s1 + $0xf4] sm:$0xf]
  %v178 = vld [vmem:[%s1 + $0xfc] sm:$0xf]
  %v179 = vld [vmem:[%s1 + $0x104] sm:$0xf]
  %v180 = vld [vmem:[%s1 + $0x10c] sm:$0xf]
  %v181 = vld [vmem:[%s1 + $0x114] sm:$0xf]
  %v182 = vld [vmem:[%s1 + $0x11c] sm:$0xf]
  %v183 = vld [vmem:[%s1 + $0x124] sm:$0xf]
  %v184 = vld [vmem:[%s1 + $0x12c] sm:$0xf]
  %v185 = vld [vmem:[%s1 + $0x134] sm:$0xf]
  %v186 = vld [vmem:[%s1 + $0x13c] sm:$0xf]
  %v187 = vld [vmem:[%s1 + $0x144] sm:$0xf]
  %v188 = vld [vmem:[%s1 + $0x14c] sm:$0xf]
  %v189 = vld [vmem:[%s1 + $0x154] sm:$0xf]
  %v190 = vld [vmem:[%s1 + $0x15c] sm:$0xf]
  %v191 = vld [vmem:[%s1 + $0x164] sm:$0xf]
  %v192 = vld [vmem:[%s1 + $0x16c] sm:$0xf]
  %v193 = vld [vmem:[%s1 + $0x174] sm:$0xf]
  %v194 = vld [vmem:[%s1 + $0x17c] sm:$0xf]
  %v195 = vld [vmem:[%s1 + $0x184] sm:$0xf]
  %v196 = vld [vmem:[%s1 + $0x18c] sm:$0xf]
  %v197 = vld [vmem:[%s1 + $0x194] sm:$0xf]
  %v198 = vld [vmem:[%s1 + $0x19c] sm:$0xf]
  %v199 = vld [vmem:[%s1 + $0x1a4] sm:$0xf]
  %v200 = vld [vmem:[%s1 + $0x1ac] sm:$0xf]
  %v201 = vld [vmem:[%s1 + $0x1b4] sm:$0xf]
  %v202 = vld [vmem:[%s1 + $0x1bc] sm:$0xf]
  %v203 = vld [vmem:[%s1 + $0x1c4] sm:$0xf]
  %v204 = vld [vmem:[%s1 + $0x1cc] sm:$0xf]
  %v205 = vld [vmem:[%s1 + $0x1d4] sm:$0xf]
  %v206 = vld [vmem:[%s1 + $0x1dc] sm:$0xf]
  %v207 = vld [vmem:[%s1 + $0x1e4] sm:$0xf]
  %v208 = vld [vmem:[%s1 + $0x1ec] sm:$0xf]
  %v209 = vld [vmem:[%s1 + $0x1f4] sm:$0xf]
  %v210 = vld [vmem:[%s1 + $0x1fc] sm:$0xf]
  %v211 = vunpack.c.l.bf16 %v147
  %v212 = vunpack.c.l.bf16 %v148
  %v213 = vunpack.c.l.bf16 %v149
  %v214 = vunpack.c.l.bf16 %v150
  %v215 = vunpack.c.l.bf16 %v151
  %v216 = vunpack.c.l.bf16 %v152
  %v217 = vunpack.c.l.bf16 %v153
  %v218 = vunpack.c.l.bf16 %v154
  %v219 = vunpack.c.l.bf16 %v155
  %v220 = vunpack.c.l.bf16 %v156
  %v221 = vunpack.c.l.bf16 %v157
  %v222 = vunpack.c.l.bf16 %v158
  %v223 = vunpack.c.l.bf16 %v159
  %v224 = vunpack.c.l.bf16 %v160
  %v225 = vunpack.c.l.bf16 %v161
  %v226 = vunpack.c.l.bf16 %v162
  %v227 = vunpack.c.l.bf16 %v163
  %v228 = vunpack.c.l.bf16 %v164
  %v229 = vunpack.c.l.bf16 %v165
  %v230 = vunpack.c.l.bf16 %v166
  %v231 = vunpack.c.l.bf16 %v167
  %v232 = vunpack.c.l.bf16 %v168
  %v233 = vunpack.c.l.bf16 %v169
  %v234 = vunpack.c.l.bf16 %v170
  %v235 = vunpack.c.l.bf16 %v171
  %v236 = vunpack.c.l.bf16 %v172
  %v237 = vunpack.c.l.bf16 %v173
  %v238 = vunpack.c.l.bf16 %v174
  %v239 = vunpack.c.l.bf16 %v175
  %v240 = vunpack.c.l.bf16 %v176
  %v241 = vunpack.c.l.bf16 %v177
  %v242 = vunpack.c.l.bf16 %v178
  %v243 = vunpack.c.l.bf16 %v179
  %v244 = vunpack.c.l.bf16 %v180
  %v245 = vunpack.c.l.bf16 %v181
  %v246 = vunpack.c.l.bf16 %v182
  %v247 = vunpack.c.l.bf16 %v183
  %v248 = vunpack.c.l.bf16 %v184
  %v249 = vunpack.c.l.bf16 %v185
  %v250 = vunpack.c.l.bf16 %v186
  %v251 = vunpack.c.l.bf16 %v187
  %v252 = vunpack.c.l.bf16 %v188
  %v253 = vunpack.c.l.bf16 %v189
  %v254 = vunpack.c.l.bf16 %v190
  %v255 = vunpack.c.l.bf16 %v191
  %v256 = vunpack.c.l.bf16 %v192
  %v257 = vunpack.c.l.bf16 %v193
  %v258 = vunpack.c.l.bf16 %v194
  %v259 = vunpack.c.l.bf16 %v195
  %v260 = vunpack.c.l.bf16 %v196
  %v261 = vunpack.c.l.bf16 %v197
  %v262 = vunpack.c.l.bf16 %v198
  %v263 = vunpack.c.l.bf16 %v199
  %v264 = vunpack.c.l.bf16 %v200
  %v265 = vunpack.c.l.bf16 %v201
  %v266 = vunpack.c.l.bf16 %v202
  %v267 = vunpack.c.l.bf16 %v203
  %v268 = vunpack.c.l.bf16 %v204
  %v269 = vunpack.c.l.bf16 %v205
  %v270 = vunpack.c.l.bf16 %v206
  %v271 = vunpack.c.l.bf16 %v207
  %v272 = vunpack.c.l.bf16 %v208
  %v273 = vunpack.c.l.bf16 %v209
  %v274 = vunpack.c.l.bf16 %v210
  %v275 = vstv %s18
  %276 = vmatprep.subr.mxu0 0.0
  %277 = vmatpush1.xpose.msra.mxu0 %v83
  %278 = vmatprep.subr.mxu0 0.0
  %279 = vmatpush1.xpose.msra.mxu0 %v84
  %280 = vmatprep.subr.mxu0 0.0
  %281 = vmatpush1.xpose.msra.mxu0 %v85
  %282 = vmatprep.subr.mxu0 0.0
  %283 = vmatpush1.xpose.msra.mxu0 %v86
  %284 = vmatprep.subr.mxu0 0.0
  %285 = vmatpush1.xpose.msra.mxu0 %v87
  %286 = vmatprep.subr.mxu0 0.0
  %287 = vmatpush1.xpose.msra.mxu0 %v88
  %288 = vmatprep.subr.mxu0 0.0
  %289 = vmatpush1.xpose.msra.mxu0 %v89
  %290 = vmatprep.subr.mxu0 0.0
  %291 = vmatpush1.xpose.msra.mxu0 %v90
  %292 = vmatprep.subr.mxu0 0.0
  %293 = vmatpush1.xpose.msra.mxu0 %v91
  %294 = vmatprep.subr.mxu0 0.0
  %295 = vmatpush1.xpose.msra.mxu0 %v92
  %296 = vmatprep.subr.mxu0 0.0
  %297 = vmatpush1.xpose.msra.mxu0 %v93
  %298 = vmatprep.subr.mxu0 0.0
  %299 = vmatpush1.xpose.msra.mxu0 %v94
  %300 = vmatprep.subr.mxu0 0.0
  %301 = vmatpush1.xpose.msra.mxu0 %v95
  %302 = vmatprep.subr.mxu0 0.0
  %303 = vmatpush1.xpose.msra.mxu0 %v96
  %304 = vmatprep.subr.mxu0 0.0
  %305 = vmatpush1.xpose.msra.mxu0 %v97
  %306 = vmatprep.subr.mxu0 0.0
  %307 = vmatpush1.xpose.msra.mxu0 %v98
  %308 = vmatprep.subr.mxu0 0.0
  %309 = vmatpush1.xpose.msra.mxu0 %v99
  %310 = vmatprep.subr.mxu0 0.0
  %311 = vmatpush1.xpose.msra.mxu0 %v100
  %312 = vmatprep.subr.mxu0 0.0
  %313 = vmatpush1.xpose.msra.mxu0 %v101
  %314 = vmatprep.subr.mxu0 0.0
  %315 = vmatpush1.xpose.msra.mxu0 %v102
  %316 = vmatprep.subr.mxu0 0.0
  %317 = vmatpush1.xpose.msra.mxu0 %v103
  %318 = vmatprep.subr.mxu0 0.0
  %319 = vmatpush1.xpose.msra.mxu0 %v104
  %320 = vmatprep.subr.mxu0 0.0
  %321 = vmatpush1.xpose.msra.mxu0 %v105
  %322 = vmatprep.subr.mxu0 0.0
  %323 = vmatpush1.xpose.msra.mxu0 %v106
  %324 = vmatprep.subr.mxu0 0.0
  %325 = vmatpush1.xpose.msra.mxu0 %v107
  %326 = vmatprep.subr.mxu0 0.0
  %327 = vmatpush1.xpose.msra.mxu0 %v108
  %328 = vmatprep.subr.mxu0 0.0
  %329 = vmatpush1.xpose.msra.mxu0 %v109
  %330 = vmatprep.subr.mxu0 0.0
  %331 = vmatpush1.xpose.msra.mxu0 %v110
  %332 = vmatprep.subr.mxu0 0.0
  %333 = vmatpush1.xpose.msra.mxu0 %v111
  %334 = vmatprep.subr.mxu0 0.0
  %335 = vmatpush1.xpose.msra.mxu0 %v112
  %336 = vmatprep.subr.mxu0 0.0
  %337 = vmatpush1.xpose.msra.mxu0 %v113
  %338 = vmatprep.subr.mxu0 0.0
  %339 = vmatpush1.xpose.msra.mxu0 %v114
  %340 = vmatprep.mubr.f32.mxu0 0.0
  %341 = vmatmul.mubr.f32.gmra.mrb[0].mxu0 %v17
  %v342 = vpop.f32.mrb[0].mxu0
  %v343 = vadd.f32 %v275, %v342
  %v344 = vpop.f32.mrb[0].mxu0
  %v345 = vadd.f32 %v275, %v344
  %346 = vdwg.mxu0
  %347 = vmatprep.subr.mxu0 0.0
  %348 = vmatpush1.xpose.msra.mxu0 %v115
  %349 = vmatprep.subr.mxu0 0.0
  %350 = vmatpush1.xpose.msra.mxu0 %v116
  %351 = vmatprep.subr.mxu0 0.0
  %352 = vmatpush1.xpose.msra.mxu0 %v117
  %353 = vmatprep.subr.mxu0 0.0
  %354 = vmatpush1.xpose.msra.mxu0 %v118
  %355 = vmatprep.subr.mxu0 0.0
  %356 = vmatpush1.xpose.msra.mxu0 %v119
  %357 = vmatprep.subr.mxu0 0.0
  %358 = vmatpush1.xpose.msra.mxu0 %v120
  %359 = vmatprep.subr.mxu0 0.0
  %360 = vmatpush1.xpose.msra.mxu0 %v121
  %361 = vmatprep.subr.mxu0 0.0
  %362 = vmatpush1.xpose.msra.mxu0 %v122
  %363 = vmatprep.subr.mxu0 0.0
  %364 = vmatpush1.xpose.msra.mxu0 %v123
  %365 = vmatprep.subr.mxu0 0.0
  %366 = vmatpush1.xpose.msra.mxu0 %v124
  %367 = vmatprep.subr.mxu0 0.0
  %368 = vmatpush1.xpose.msra.mxu0 %v125
  %369 = vmatprep.subr.mxu0 0.0
  %370 = vmatpush1.xpose.msra.mxu0 %v126
  %371 = vmatprep.subr.mxu0 0.0
  %372 = vmatpush1.xpose.msra.mxu0 %v127
  %373 = vmatprep.subr.mxu0 0.0
  %374 = vmatpush1.xpose.msra.mxu0 %v128
  %375 = vmatprep.subr.mxu0 0.0
  %376 = vmatpush1.xpose.msra.mxu0 %v129
  %377 = vmatprep.subr.mxu0 0.0
  %378 = vmatpush1.xpose.msra.mxu0 %v130
  %379 = vmatprep.subr.mxu0 0.0
  %380 = vmatpush1.xpose.msra.mxu0 %v131
  %381 = vmatprep.subr.mxu0 0.0
  %382 = vmatpush1.xpose.msra.mxu0 %v132
  %383 = vmatprep.subr.mxu0 0.0
  %384 = vmatpush1.xpose.msra.mxu0 %v133
  %385 = vmatprep.subr.mxu0 0.0
  %386 = vmatpush1.xpose.msra.mxu0 %v134
  %387 = vmatprep.subr.mxu0 0.0
  %388 = vmatpush1.xpose.msra.mxu0 %v135
  %389 = vmatprep.subr.mxu0 0.0
  %390 = vmatpush1.xpose.msra.mxu0 %v136
  %391 = vmatprep.subr.mxu0 0.0
  %392 = vmatpush1.xpose.msra.mxu0 %v137
  %393 = vmatprep.subr.mxu0 0.0
  %394 = vmatpush1.xpose.msra.mxu0 %v138
  %395 = vmatprep.subr.mxu0 0.0
  %396 = vmatpush1.xpose.msra.mxu0 %v139
  %397 = vmatprep.subr.mxu0 0.0
  %398 = vmatpush1.xpose.msra.mxu0 %v140
  %399 = vmatprep.subr.mxu0 0.0
  %400 = vmatpush1.xpose.msra.mxu0 %v141
  %401 = vmatprep.subr.mxu0 0.0
  %402 = vmatpush1.xpose.msra.mxu0 %v142
  %403 = vmatprep.subr.mxu0 0.0
  %404 = vmatpush1.xpose.msra.mxu0 %v143
  %405 = vmatprep.subr.mxu0 0.0
  %406 = vmatpush1.xpose.msra.mxu0 %v144
  %407 = vmatprep.subr.mxu0 0.0
  %408 = vmatpush1.xpose.msra.mxu0 %v145
  %409 = vmatprep.subr.mxu0 0.0
  %410 = vmatpush1.xpose.msra.mxu0 %v146
  %411 = vmatprep.mubr.f32.mxu0 0.0
  %412 = vmatmul.mubr.f32.gmra.mrb[0].mxu0 %v17
  %v413 = vpop.f32.mrb[0].mxu0
  %v414 = vadd.f32 %v275, %v413
  %v415 = vpop.f32.mrb[0].mxu0
  %v416 = vadd.f32 %v275, %v415
  %417 = vdwg.mxu0
  %v422 = vcombine.low %v343, %v345
  %v423 = vcombine.low %v414, %v416
  %v425 = vunpack.c.l.s4 1966171168
  %v426 = vunpack.c.0.s8 %v425
  %v427 = vlaneseq
  %v428 = vshrl.u32 %v427, 7
  %v429 = vsub.s32 %v426, %v428
  %v430 = vrot.slane %v422, %v429
  %v432 = vunpack.c.l.s4 1966171168
  %v433 = vunpack.c.0.s8 %v432
  %v434 = vlaneseq
  %v435 = vshrl.u32 %v434, 7
  %v436 = vsub.s32 %v433, %v435
  %v437 = vrot.slane %v423, %v436
  %v438 = vcombine.low %v430, %v437
  %v440 = vunpack.c.l.s4 1966171168
  %v441 = vunpack.c.0.s8 %v440
  %v442 = vlaneseq
  %v443 = vshrl.u32 %v442, 7
  %v444 = vsub.s32 %v441, %v443
  %v445 = vrot.slane %v438, %v444
  %v447 = vlaneseq
  %vm448 = vcmp.ge.s32.totalorder %v447, 0
  %vm449 = vcmp.lt.s32.totalorder %v447, 512
  %vm450 = vmand %vm448, %vm449
  %451 = vst.msk [vmem:[%s3] sm:$0xf] %vm450, %v445
  %452 = vmatprep.subr.mxu0 0.0
  %453 = vmatpush1.xpose.msra.mxu0 %v211
  %454 = vmatprep.subr.mxu0 0.0
  %455 = vmatpush1.xpose.msra.mxu0 %v212
  %456 = vmatprep.subr.mxu0 0.0
  %457 = vmatpush1.xpose.msra.mxu0 %v213
  %458 = vmatprep.subr.mxu0 0.0
  %459 = vmatpush1.xpose.msra.mxu0 %v214
  %460 = vmatprep.subr.mxu0 0.0
  %461 = vmatpush1.xpose.msra.mxu0 %v215
  %462 = vmatprep.subr.mxu0 0.0
  %463 = vmatpush1.xpose.msra.mxu0 %v216
  %464 = vmatprep.subr.mxu0 0.0
  %465 = vmatpush1.xpose.msra.mxu0 %v217
  %466 = vmatprep.subr.mxu0 0.0
  %467 = vmatpush1.xpose.msra.mxu0 %v218
  %468 = vmatprep.subr.mxu0 0.0
  %469 = vmatpush1.xpose.msra.mxu0 %v219
  %470 = vmatprep.subr.mxu0 0.0
  %471 = vmatpush1.xpose.msra.mxu0 %v220
  %472 = vmatprep.subr.mxu0 0.0
  %473 = vmatpush1.xpose.msra.mxu0 %v221
  %474 = vmatprep.subr.mxu0 0.0
  %475 = vmatpush1.xpose.msra.mxu0 %v222
  %476 = vmatprep.subr.mxu0 0.0
  %477 = vmatpush1.xpose.msra.mxu0 %v223
  %478 = vmatprep.subr.mxu0 0.0
  %479 = vmatpush1.xpose.msra.mxu0 %v224
  %480 = vmatprep.subr.mxu0 0.0
  %481 = vmatpush1.xpose.msra.mxu0 %v225
  %482 = vmatprep.subr.mxu0 0.0
  %483 = vmatpush1.xpose.msra.mxu0 %v226
  %484 = vmatprep.subr.mxu0 0.0
  %485 = vmatpush1.xpose.msra.mxu0 %v227
  %486 = vmatprep.subr.mxu0 0.0
  %487 = vmatpush1.xpose.msra.mxu0 %v228
  %488 = vmatprep.subr.mxu0 0.0
  %489 = vmatpush1.xpose.msra.mxu0 %v229
  %490 = vmatprep.subr.mxu0 0.0
  %491 = vmatpush1.xpose.msra.mxu0 %v230
  %492 = vmatprep.subr.mxu0 0.0
  %493 = vmatpush1.xpose.msra.mxu0 %v231
  %494 = vmatprep.subr.mxu0 0.0
  %495 = vmatpush1.xpose.msra.mxu0 %v232
  %496 = vmatprep.subr.mxu0 0.0
  %497 = vmatpush1.xpose.msra.mxu0 %v233
  %498 = vmatprep.subr.mxu0 0.0
  %499 = vmatpush1.xpose.msra.mxu0 %v234
  %500 = vmatprep.subr.mxu0 0.0
  %501 = vmatpush1.xpose.msra.mxu0 %v235
  %502 = vmatprep.subr.mxu0 0.0
  %503 = vmatpush1.xpose.msra.mxu0 %v236
  %504 = vmatprep.subr.mxu0 0.0
  %505 = vmatpush1.xpose.msra.mxu0 %v237
  %506 = vmatprep.subr.mxu0 0.0
  %507 = vmatpush1.xpose.msra.mxu0 %v238
  %508 = vmatprep.subr.mxu0 0.0
  %509 = vmatpush1.xpose.msra.mxu0 %v239
  %510 = vmatprep.subr.mxu0 0.0
  %511 = vmatpush1.xpose.msra.mxu0 %v240
  %512 = vmatprep.subr.mxu0 0.0
  %513 = vmatpush1.xpose.msra.mxu0 %v241
  %514 = vmatprep.subr.mxu0 0.0
  %515 = vmatpush1.xpose.msra.mxu0 %v242
  %516 = vmatprep.mubr.f32.mxu0 0.0
  %517 = vmatmul.mubr.f32.gmra.mrb[0].mxu0 %v17
  %v518 = vpop.f32.mrb[0].mxu0
  %v519 = vadd.f32 %v275, %v518
  %v520 = vpop.f32.mrb[0].mxu0
  %v521 = vadd.f32 %v275, %v520
  %522 = vdwg.mxu0
  %523 = vmatprep.subr.mxu0 0.0
  %524 = vmatpush1.xpose.msra.mxu0 %v243
  %525 = vmatprep.subr.mxu0 0.0
  %526 = vmatpush1.xpose.msra.mxu0 %v244
  %527 = vmatprep.subr.mxu0 0.0
  %528 = vmatpush1.xpose.msra.mxu0 %v245
  %529 = vmatprep.subr.mxu0 0.0
  %530 = vmatpush1.xpose.msra.mxu0 %v246
  %531 = vmatprep.subr.mxu0 0.0
  %532 = vmatpush1.xpose.msra.mxu0 %v247
  %533 = vmatprep.subr.mxu0 0.0
  %534 = vmatpush1.xpose.msra.mxu0 %v248
  %535 = vmatprep.subr.mxu0 0.0
  %536 = vmatpush1.xpose.msra.mxu0 %v249
  %537 = vmatprep.subr.mxu0 0.0
  %538 = vmatpush1.xpose.msra.mxu0 %v250
  %539 = vmatprep.subr.mxu0 0.0
  %540 = vmatpush1.xpose.msra.mxu0 %v251
  %541 = vmatprep.subr.mxu0 0.0
  %542 = vmatpush1.xpose.msra.mxu0 %v252
  %543 = vmatprep.subr.mxu0 0.0
  %544 = vmatpush1.xpose.msra.mxu0 %v253
  %545 = vmatprep.subr.mxu0 0.0
  %546 = vmatpush1.xpose.msra.mxu0 %v254
  %547 = vmatprep.subr.mxu0 0.0
  %548 = vmatpush1.xpose.msra.mxu0 %v255
  %549 = vmatprep.subr.mxu0 0.0
  %550 = vmatpush1.xpose.msra.mxu0 %v256
  %551 = vmatprep.subr.mxu0 0.0
  %552 = vmatpush1.xpose.msra.mxu0 %v257
  %553 = vmatprep.subr.mxu0 0.0
  %554 = vmatpush1.xpose.msra.mxu0 %v258
  %555 = vmatprep.subr.mxu0 0.0
  %556 = vmatpush1.xpose.msra.mxu0 %v259
  %557 = vmatprep.subr.mxu0 0.0
  %558 = vmatpush1.xpose.msra.mxu0 %v260
  %559 = vmatprep.subr.mxu0 0.0
  %560 = vmatpush1.xpose.msra.mxu0 %v261
  %561 = vmatprep.subr.mxu0 0.0
  %562 = vmatpush1.xpose.msra.mxu0 %v262
  %563 = vmatprep.subr.mxu0 0.0
  %564 = vmatpush1.xpose.msra.mxu0 %v263
  %565 = vmatprep.subr.mxu0 0.0
  %566 = vmatpush1.xpose.msra.mxu0 %v264
  %567 = vmatprep.subr.mxu0 0.0
  %568 = vmatpush1.xpose.msra.mxu0 %v265
  %569 = vmatprep.subr.mxu0 0.0
  %570 = vmatpush1.xpose.msra.mxu0 %v266
  %571 = vmatprep.subr.mxu0 0.0
  %572 = vmatpush1.xpose.msra.mxu0 %v267
  %573 = vmatprep.subr.mxu0 0.0
  %574 = vmatpush1.xpose.msra.mxu0 %v268
  %575 = vmatprep.subr.mxu0 0.0
  %576 = vmatpush1.xpose.msra.mxu0 %v269
  %577 = vmatprep.subr.mxu0 0.0
  %578 = vmatpush1.xpose.msra.mxu0 %v270
  %579 = vmatprep.subr.mxu0 0.0
  %580 = vmatpush1.xpose.msra.mxu0 %v271
  %581 = vmatprep.subr.mxu0 0.0
  %582 = vmatpush1.xpose.msra.mxu0 %v272
  %583 = vmatprep.subr.mxu0 0.0
  %584 = vmatpush1.xpose.msra.mxu0 %v273
  %585 = vmatprep.subr.mxu0 0.0
  %586 = vmatpush1.xpose.msra.mxu0 %v274
  %587 = vmatprep.mubr.f32.mxu0 0.0
  %588 = vmatmul.mubr.f32.gmra.mrb[0].mxu0 %v17
  %v589 = vpop.f32.mrb[0].mxu0
  %v590 = vadd.f32 %v275, %v589
  %v591 = vpop.f32.mrb[0].mxu0
  %v592 = vadd.f32 %v275, %v591
  %593 = vdwg.mxu0
  %v598 = vcombine.low %v519, %v521
  %v599 = vcombine.low %v590, %v592
  %v601 = vunpack.c.l.s4 1966171168
  %v602 = vunpack.c.0.s8 %v601
  %v603 = vlaneseq
  %v604 = vshrl.u32 %v603, 7
  %v605 = vsub.s32 %v602, %v604
  %v606 = vrot.slane %v598, %v605
  %v608 = vunpack.c.l.s4 1966171168
  %v609 = vunpack.c.0.s8 %v608
  %v610 = vlaneseq
  %v611 = vshrl.u32 %v610, 7
  %v612 = vsub.s32 %v609, %v611
  %v613 = vrot.slane %v599, %v612
  %v614 = vcombine.low %v606, %v613
  %v616 = vunpack.c.l.s4 1966171168
  %v617 = vunpack.c.0.s8 %v616
  %v618 = vlaneseq
  %v619 = vshrl.u32 %v618, 7
  %v620 = vsub.s32 %v617, %v619
  %v621 = vrot.slane %v614, %v620
  %623 = vst.msk [vmem:[%s4] sm:$0xf] %vm450, %v621
  // Predicated region
  $region14: #{dgi_forward.7} parent=0 // pred_check
    _
  $region15: #{dgi_forward.7} parent=0 // pred_check_branch
    %625 = sbr.rel (0) target = $region17
  $region16: #{dgi_forward.7} parent=0 // pred_region
    _
  $region17: #{dgi_forward.7} parent=0 // pred_fallthru
    _
  // Predicated region
  $region18: #{dgi_forward.7} parent=0 // pred_check
    _
  $region19: #{dgi_forward.7} parent=0 // pred_check_branch
    %627 = sbr.rel (0) target = $region21
  $region20: #{dgi_forward.7} parent=0 // pred_region
    _
  $region21: #{dgi_forward.7} parent=0 // pred_fallthru
    _
  // Predicated region
  $region22: #{dgi_forward.7} parent=0 // pred_check
    _
  $region23: #{dgi_forward.7} parent=0 // pred_check_branch
    %629 = sbr.rel (0) target = $region25
  $region24: #{dgi_forward.7} parent=0 // pred_region
    _
  $region25: #{dgi_forward.7} parent=0 // pred_fallthru
    _
  // Predicated region
  $region26: #{dgi_forward.7} parent=0 // pred_check
    _
  $region27: #{dgi_forward.7} parent=0 // pred_check_branch
    %631 = sbr.rel (0) target = $region29
  $region28: #{dgi_forward.7} parent=0 // pred_region
    _
  $region29: #{dgi_forward.7} parent=0 // pred_fallthru
    _

// kernel: dgi_forward.4
$region0: #{dgi_forward.4}
  #allocation0 [shape = 'u32[]', space=smem, size = 0x4, offset = 0x4, fixed_abs, tag = 'smem constant byte address 0x4 - core index']
  #allocation1 [shape = 'u32[144,128]{1,0:T(1,128)}', space=vmem, size = 0x12000, scoped, tag = 'internal scratch']
  %s0 = inlined_call_operand.vmem [shape: bf16[512,48], index: 0, kind: input, shape index: {}]
  %s1 = inlined_call_operand.vmem [shape: bf16[512,48], index: 1, kind: input, shape index: {}]
  %s2 = inlined_call_operand.vmem [shape: bf16[48,128], index: 2, kind: input, shape index: {}]
  %s3 = inlined_call_operand.vmem [shape: f32[1,128], index: 3, kind: input, shape index: {}]
  %s4 = inlined_call_operand.vmem [shape: bf16[512,256], index: 4, kind: output, shape index: {}]
  %s5 = sld [smem:[#allocation0]]
  $region26: #{dgi_forward.4} parent=0
    _
  %s7 = ssub.s32 1, %s5
  %s8 = scalar_select 0, %s7, %s5
  // Predicated region
  $region2: #{dgi_forward.4} parent=0 // pred_check
    _
  $region3: #{dgi_forward.4} parent=0 // pred_check_branch
    %10 = sbr.rel (0) target = $region5
  $region4: #{dgi_forward.4} parent=0 // pred_region
    _
  $region5: #{dgi_forward.4} parent=0 // pred_fallthru
    _
  // Predicated region
  $region6: #{dgi_forward.4} parent=0 // pred_check
    _
  $region7: #{dgi_forward.4} parent=0 // pred_check_branch
    %12 = sbr.rel (0) target = $region9
  $region8: #{dgi_forward.4} parent=0 // pred_region
    _
  $region9: #{dgi_forward.4} parent=0 // pred_fallthru
    _
  // Predicated region
  $region10: #{dgi_forward.4} parent=0 // pred_check
    _
  $region11: #{dgi_forward.4} parent=0 // pred_check_branch
    %14 = sbr.rel (0) target = $region13
  $region12: #{dgi_forward.4} parent=0 // pred_region
    _
  $region13: #{dgi_forward.4} parent=0 // pred_fallthru
    _
  // Predicated region
  $region14: #{dgi_forward.4} parent=0 // pred_check
    _
  $region15: #{dgi_forward.4} parent=0 // pred_check_branch
    %16 = sbr.rel (0) target = $region17
  $region16: #{dgi_forward.4} parent=0 // pred_region
    _
  $region17: #{dgi_forward.4} parent=0 // pred_fallthru
    _
  %v18 = vld [vmem:[%s2] sm:$0xf]
  %v19 = vld [vmem:[%s2 + $0x4] sm:$0xf]
  %v20 = vld [vmem:[%s2 + $0x8] sm:$0xf]
  %v21 = vld [vmem:[%s2 + $0xc] sm:$0xf]
  %v22 = vld [vmem:[%s2 + $0x10] sm:$0xf]
  %v23 = vld [vmem:[%s2 + $0x14] sm:$0xf]
  %v24 = vld [vmem:[%s3] sm:$0x1]
  %v25 = vld [vmem:[%s0] sm:$0xf]
  %v26 = vld [vmem:[%s0 + $0x4] sm:$0xf]
  %v27 = vld [vmem:[%s0 + $0x8] sm:$0xf]
  %v28 = vld [vmem:[%s0 + $0xc] sm:$0xf]
  %v29 = vld [vmem:[%s0 + $0x10] sm:$0xf]
  %v30 = vld [vmem:[%s0 + $0x14] sm:$0xf]
  %v31 = vld [vmem:[%s0 + $0x18] sm:$0xf]
  %v32 = vld [vmem:[%s0 + $0x1c] sm:$0xf]
  %v33 = vld [vmem:[%s0 + $0x20] sm:$0xf]
  %v34 = vld [vmem:[%s0 + $0x24] sm:$0xf]
  %v35 = vld [vmem:[%s0 + $0x28] sm:$0xf]
  %v36 = vld [vmem:[%s0 + $0x2c] sm:$0xf]
  %v37 = vld [vmem:[%s0 + $0x30] sm:$0xf]
  %v38 = vld [vmem:[%s0 + $0x34] sm:$0xf]
  %v39 = vld [vmem:[%s0 + $0x38] sm:$0xf]
  %v40 = vld [vmem:[%s0 + $0x3c] sm:$0xf]
  %v41 = vld [vmem:[%s0 + $0x40] sm:$0xf]
  %v42 = vld [vmem:[%s0 + $0x44] sm:$0xf]
  %v43 = vld [vmem:[%s0 + $0x48] sm:$0xf]
  %v44 = vld [vmem:[%s0 + $0x4c] sm:$0xf]
  %v45 = vld [vmem:[%s0 + $0x50] sm:$0xf]
  %v46 = vld [vmem:[%s0 + $0x54] sm:$0xf]
  %v47 = vld [vmem:[%s0 + $0x58] sm:$0xf]
  %v48 = vld [vmem:[%s0 + $0x5c] sm:$0xf]
  %v49 = vld [vmem:[%s0 + $0x60] sm:$0xf]
  %v50 = vld [vmem:[%s0 + $0x64] sm:$0xf]
  %v51 = vld [vmem:[%s0 + $0x68] sm:$0xf]
  %v52 = vld [vmem:[%s0 + $0x6c] sm:$0xf]
  %v53 = vld [vmem:[%s0 + $0x70] sm:$0xf]
  %v54 = vld [vmem:[%s0 + $0x74] sm:$0xf]
  %v55 = vld [vmem:[%s0 + $0x78] sm:$0xf]
  %v56 = vld [vmem:[%s0 + $0x7c] sm:$0xf]
  %v57 = vld [vmem:[%s0 + $0x80] sm:$0xf]
  %v58 = vld [vmem:[%s0 + $0x84] sm:$0xf]
  %v59 = vld [vmem:[%s0 + $0x88] sm:$0xf]
  %v60 = vld [vmem:[%s0 + $0x8c] sm:$0xf]
  %v61 = vld [vmem:[%s0 + $0x90] sm:$0xf]
  %v62 = vld [vmem:[%s0 + $0x94] sm:$0xf]
  %v63 = vld [vmem:[%s0 + $0x98] sm:$0xf]
  %v64 = vld [vmem:[%s0 + $0x9c] sm:$0xf]
  %v65 = vld [vmem:[%s0 + $0xa0] sm:$0xf]
  %v66 = vld [vmem:[%s0 + $0xa4] sm:$0xf]
  %v67 = vld [vmem:[%s0 + $0xa8] sm:$0xf]
  %v68 = vld [vmem:[%s0 + $0xac] sm:$0xf]
  %v69 = vld [vmem:[%s0 + $0xb0] sm:$0xf]
  %v70 = vld [vmem:[%s0 + $0xb4] sm:$0xf]
  %v71 = vld [vmem:[%s0 + $0xb8] sm:$0xf]
  %v72 = vld [vmem:[%s0 + $0xbc] sm:$0xf]
  %v73 = vld [vmem:[%s0 + $0xc0] sm:$0xf]
  %v74 = vld [vmem:[%s0 + $0xc4] sm:$0xf]
  %v75 = vld [vmem:[%s0 + $0xc8] sm:$0xf]
  %v76 = vld [vmem:[%s0 + $0xcc] sm:$0xf]
  %v77 = vld [vmem:[%s0 + $0xd0] sm:$0xf]
  %v78 = vld [vmem:[%s0 + $0xd4] sm:$0xf]
  %v79 = vld [vmem:[%s0 + $0xd8] sm:$0xf]
  %v80 = vld [vmem:[%s0 + $0xdc] sm:$0xf]
  %v81 = vld [vmem:[%s0 + $0xe0] sm:$0xf]
  %v82 = vld [vmem:[%s0 + $0xe4] sm:$0xf]
  %v83 = vld [vmem:[%s0 + $0xe8] sm:$0xf]
  %v84 = vld [vmem:[%s0 + $0xec] sm:$0xf]
  %v85 = vld [vmem:[%s0 + $0xf0] sm:$0xf]
  %v86 = vld [vmem:[%s0 + $0xf4] sm:$0xf]
  %v87 = vld [vmem:[%s0 + $0xf8] sm:$0xf]
  %v88 = vld [vmem:[%s0 + $0xfc] sm:$0xf]
  %v90 = vlaneseq
  %v91 = vshrl.u32 %v90, 7
  %v92 = vsub.s32 0, %v91
  %v93 = vrot.slane %v24, %v92
  %v159 = vunpack.c.l.b16 %v25
  %v160 = vunpack.c.l.b16 %v26
  %v161 = vunpack.c.l.b16 %v27
  %v162 = vunpack.c.l.b16 %v28
  %v163 = vunpack.c.l.b16 %v29
  %v164 = vunpack.c.l.b16 %v30
  %v165 = vunpack.c.l.b16 %v31
  %v166 = vunpack.c.l.b16 %v32
  %v167 = vunpack.c.l.b16 %v33
  %v168 = vunpack.c.l.b16 %v34
  %v169 = vunpack.c.l.b16 %v35
  %v170 = vunpack.c.l.b16 %v36
  %v171 = vunpack.c.l.b16 %v37
  %v172 = vunpack.c.l.b16 %v38
  %v173 = vunpack.c.l.b16 %v39
  %v174 = vunpack.c.l.b16 %v40
  %v175 = vunpack.c.l.b16 %v41
  %v176 = vunpack.c.l.b16 %v42
  %v177 = vunpack.c.l.b16 %v43
  %v178 = vunpack.c.l.b16 %v44
  %v179 = vunpack.c.l.b16 %v45
  %v180 = vunpack.c.l.b16 %v46
  %v181 = vunpack.c.l.b16 %v47
  %v182 = vunpack.c.l.b16 %v48
  %v183 = vunpack.c.l.b16 %v49
  %v184 = vunpack.c.l.b16 %v50
  %v185 = vunpack.c.l.b16 %v51
  %v186 = vunpack.c.l.b16 %v52
  %v187 = vunpack.c.l.b16 %v53
  %v188 = vunpack.c.l.b16 %v54
  %v189 = vunpack.c.l.b16 %v55
  %v190 = vunpack.c.l.b16 %v56
  %v191 = vunpack.c.l.b16 %v57
  %v192 = vunpack.c.l.b16 %v58
  %v193 = vunpack.c.l.b16 %v59
  %v194 = vunpack.c.l.b16 %v60
  %v195 = vunpack.c.l.b16 %v61
  %v196 = vunpack.c.l.b16 %v62
  %v197 = vunpack.c.l.b16 %v63
  %v198 = vunpack.c.l.b16 %v64
  %v199 = vunpack.c.l.b16 %v65
  %v200 = vunpack.c.l.b16 %v66
  %v201 = vunpack.c.l.b16 %v67
  %v202 = vunpack.c.l.b16 %v68
  %v203 = vunpack.c.l.b16 %v69
  %v204 = vunpack.c.l.b16 %v70
  %v205 = vunpack.c.l.b16 %v71
  %v206 = vunpack.c.l.b16 %v72
  %v207 = vunpack.c.l.b16 %v73
  %v208 = vunpack.c.l.b16 %v74
  %v209 = vunpack.c.l.b16 %v75
  %v210 = vunpack.c.l.b16 %v76
  %v211 = vunpack.c.l.b16 %v77
  %v212 = vunpack.c.l.b16 %v78
  %v213 = vunpack.c.l.b16 %v79
  %v214 = vunpack.c.l.b16 %v80
  %v215 = vunpack.c.l.b16 %v81
  %v216 = vunpack.c.l.b16 %v82
  %v217 = vunpack.c.l.b16 %v83
  %v218 = vunpack.c.l.b16 %v84
  %v219 = vunpack.c.l.b16 %v85
  %v220 = vunpack.c.l.b16 %v86
  %v221 = vunpack.c.l.b16 %v87
  %v222 = vunpack.c.l.b16 %v88
  %v223 = vpack.c.b16 %v160, %v159
  %v224 = vpack.c.b16 %v162, %v161
  %v225 = vpack.c.b16 %v164, %v163
  %v226 = vpack.c.b16 %v166, %v165
  %v227 = vpack.c.b16 %v168, %v167
  %v228 = vpack.c.b16 %v170, %v169
  %v229 = vpack.c.b16 %v172, %v171
  %v230 = vpack.c.b16 %v174, %v173
  %v231 = vpack.c.b16 %v176, %v175
  %v232 = vpack.c.b16 %v178, %v177
  %v233 = vpack.c.b16 %v180, %v179
  %v234 = vpack.c.b16 %v182, %v181
  %v235 = vpack.c.b16 %v184, %v183
  %v236 = vpack.c.b16 %v186, %v185
  %v237 = vpack.c.b16 %v188, %v187
  %v238 = vpack.c.b16 %v190, %v189
  %v239 = vpack.c.b16 %v192, %v191
  %v240 = vpack.c.b16 %v194, %v193
  %v241 = vpack.c.b16 %v196, %v195
  %v242 = vpack.c.b16 %v198, %v197
  %v243 = vpack.c.b16 %v200, %v199
  %v244 = vpack.c.b16 %v202, %v201
  %v245 = vpack.c.b16 %v204, %v203
  %v246 = vpack.c.b16 %v206, %v205
  %v247 = vpack.c.b16 %v208, %v207
  %v248 = vpack.c.b16 %v210, %v209
  %v249 = vpack.c.b16 %v212, %v211
  %v250 = vpack.c.b16 %v214, %v213
  %v251 = vpack.c.b16 %v216, %v215
  %v252 = vpack.c.b16 %v218, %v217
  %v253 = vpack.c.b16 %v220, %v219
  %v254 = vpack.c.b16 %v222, %v221
  %v261 = vunpack.c.l.b16 %v18
  %v262 = vunpack.c.l.b16 %v19
  %v263 = vunpack.c.l.b16 %v20
  %v264 = vunpack.c.l.b16 %v21
  %v265 = vunpack.c.l.b16 %v22
  %v266 = vunpack.c.l.b16 %v23
  %v267 = vpack.c.b16 %v262, %v261
  %v268 = vpack.c.b16 %v264, %v263
  %v269 = vpack.c.b16 %v266, %v265
  %vm273 = vcmask 392192
  %v275 = vsel %vm273, %v223, 0
  %v278 = vsel %vm273, %v224, 0
  %v281 = vsel %vm273, %v225, 0
  %v284 = vsel %vm273, %v226, 0
  %v287 = vsel %vm273, %v227, 0
  %v290 = vsel %vm273, %v228, 0
  %v293 = vsel %vm273, %v229, 0
  %v296 = vsel %vm273, %v230, 0
  %v299 = vsel %vm273, %v231, 0
  %v302 = vsel %vm273, %v232, 0
  %v305 = vsel %vm273, %v233, 0
  %v308 = vsel %vm273, %v234, 0
  %v311 = vsel %vm273, %v235, 0
  %v314 = vsel %vm273, %v236, 0
  %v317 = vsel %vm273, %v237, 0
  %v320 = vsel %vm273, %v238, 0
  %v323 = vsel %vm273, %v239, 0
  %v326 = vsel %vm273, %v240, 0
  %v329 = vsel %vm273, %v241, 0
  %v332 = vsel %vm273, %v242, 0
  %v335 = vsel %vm273, %v243, 0
  %v338 = vsel %vm273, %v244, 0
  %v341 = vsel %vm273, %v245, 0
  %v344 = vsel %vm273, %v246, 0
  %v347 = vsel %vm273, %v247, 0
  %v350 = vsel %vm273, %v248, 0
  %v353 = vsel %vm273, %v249, 0
  %v356 = vsel %vm273, %v250, 0
  %v359 = vsel %vm273, %v251, 0
  %v362 = vsel %vm273, %v252, 0
  %v365 = vsel %vm273, %v253, 0
  %v368 = vsel %vm273, %v254, 0
  %370 = vmatprep.subr.bf16.mxu0 0
  %371 = vmatpush1.bf16.msra.mxu0 %v267
  %372 = vmatprep.subr.bf16.mxu0 0
  %373 = vmatpush1.bf16.msra.mxu0 %v268
  %374 = vmatprep.subr.bf16.mxu0 0
  %375 = vmatpush1.bf16.msra.mxu0 %v269
  %376 = vmatprep.subr.bf16.mxu0 0
  %377 = vmatpush1.bf16.msra.mxu0 0
  %378 = vmatprep.subr.bf16.mxu0 0
  %379 = vmatpush1.bf16.msra.mxu0 0
  %380 = vmatprep.subr.bf16.mxu0 0
  %381 = vmatpush1.bf16.msra.mxu0 0
  %382 = vmatprep.subr.bf16.mxu0 0
  %383 = vmatpush1.bf16.msra.mxu0 0
  %384 = vmatprep.subr.bf16.mxu0 0
  %385 = vmatpush1.bf16.msra.mxu0 0
  %386 = vmatprep.subr.bf16.mxu0 0
  %387 = vmatpush1.bf16.msra.mxu0 0
  %388 = vmatprep.subr.bf16.mxu0 0
  %389 = vmatpush1.bf16.msra.mxu0 0
  %390 = vmatprep.subr.bf16.mxu0 0
  %391 = vmatpush1.bf16.msra.mxu0 0
  %392 = vmatprep.subr.bf16.mxu0 0
  %393 = vmatpush1.bf16.msra.mxu0 0
  %394 = vmatprep.subr.bf16.mxu0 0
  %395 = vmatpush1.bf16.msra.mxu0 0
  %396 = vmatprep.subr.bf16.mxu0 0
  %397 = vmatpush1.bf16.msra.mxu0 0
  %398 = vmatprep.subr.bf16.mxu0 0
  %399 = vmatpush1.bf16.msra.mxu0 0
  %400 = vmatprep.subr.bf16.mxu0 0
  %401 = vmatpush1.bf16.msra.mxu0 0
  %402 = vmatprep.mubr.bf16.mxu0 0
  %403 = vmatmul.mubr.bf16.gmra.mrb[0].mxu0 %v275
  %v404 = vpop.f32.mrb[0].mxu0
  %v405 = vadd.f32 %v93, %v404
  %v406 = vpop.f32.mrb[0].mxu0
  %v407 = vpop.f32.mrb[0].mxu0
  %v408 = vadd.f32 %v93, %v407
  %v409 = vpop.f32.mrb[0].mxu0
  %410 = vmatprep.mubr.bf16.mxu0 0
  %411 = vmatmul.mubr.bf16.gmra.mrb[0].mxu0 %v278
  %v412 = vpop.f32.mrb[0].mxu0
  %v413 = vadd.f32 %v93, %v412
  %v414 = vpop.f32.mrb[0].mxu0
  %v415 = vpop.f32.mrb[0].mxu0
  %v416 = vadd.f32 %v93, %v415
  %v417 = vpop.f32.mrb[0].mxu0
  %418 = vmatprep.mubr.bf16.mxu0 0
  %419 = vmatmul.mubr.bf16.gmra.mrb[0].mxu0 %v281
  %v420 = vpop.f32.mrb[0].mxu0
  %v421 = vadd.f32 %v93, %v420
  %v422 = vpop.f32.mrb[0].mxu0
  %v423 = vpop.f32.mrb[0].mxu0
  %v424 = vadd.f32 %v93, %v423
  %v425 = vpop.f32.mrb[0].mxu0
  %426 = vmatprep.mubr.bf16.mxu0 0
  %427 = vmatmul.mubr.bf16.gmra.mrb[0].mxu0 %v284
  %v428 = vpop.f32.mrb[0].mxu0
  %v429 = vadd.f32 %v93, %v428
  %v430 = vpop.f32.mrb[0].mxu0
  %v431 = vpop.f32.mrb[0].mxu0
  %v432 = vadd.f32 %v93, %v431
  %v433 = vpop.f32.mrb[0].mxu0
  %434 = vmatprep.mubr.bf16.mxu0 0
  %435 = vmatmul.mubr.bf16.gmra.mrb[0].mxu0 %v287
  %v436 = vpop.f32.mrb[0].mxu0
  %v437 = vadd.f32 %v93, %v436
  %v438 = vpop.f32.mrb[0].mxu0
  %v439 = vpop.f32.mrb[0].mxu0
  %v440 = vadd.f32 %v93, %v439
  %v441 = vpop.f32.mrb[0].mxu0
  %442 = vmatprep.mubr.bf16.mxu0 0
  %443 = vmatmul.mubr.bf16.gmra.mrb[0].mxu0 %v290
  %v444 = vpop.f32.mrb[0].mxu0
  %v445 = vadd.f32 %v93, %v444
  %v446 = vpop.f32.mrb[0].mxu0
  %v447 = vpop.f32.mrb[0].mxu0
  %v448 = vadd.f32 %v93, %v447
  %v449 = vpop.f32.mrb[0].mxu0
  %450 = vmatprep.mubr.bf16.mxu0 0
  %451 = vmatmul.mubr.bf16.gmra.mrb[0].mxu0 %v293
  %v452 = vpop.f32.mrb[0].mxu0
  %v453 = vadd.f32 %v93, %v452
  %v454 = vpop.f32.mrb[0].mxu0
  %v455 = vpop.f32.mrb[0].mxu0
  %v456 = vadd.f32 %v93, %v455
  %v457 = vpop.f32.mrb[0].mxu0
  %458 = vmatprep.mubr.bf16.mxu0 0
  %459 = vmatmul.mubr.bf16.gmra.mrb[0].mxu0 %v296
  %v460 = vpop.f32.mrb[0].mxu0
  %v461 = vadd.f32 %v93, %v460
  %v462 = vpop.f32.mrb[0].mxu0
  %v463 = vpop.f32.mrb[0].mxu0
  %v464 = vadd.f32 %v93, %v463
  %v465 = vpop.f32.mrb[0].mxu0
  %466 = vmatprep.mubr.bf16.mxu0 0
  %467 = vmatmul.mubr.bf16.gmra.mrb[0].mxu0 %v299
  %v468 = vpop.f32.mrb[0].mxu0
  %v469 = vadd.f32 %v93, %v468
  %v470 = vpop.f32.mrb[0].mxu0
  %v471 = vpop.f32.mrb[0].mxu0
  %v472 = vadd.f32 %v93, %v471
  %v473 = vpop.f32.mrb[0].mxu0
  %474 = vmatprep.mubr.bf16.mxu0 0
  %475 = vmatmul.mubr.bf16.gmra.mrb[0].mxu0 %v302
  %v476 = vpop.f32.mrb[0].mxu0
  %v477 = vadd.f32 %v93, %v476
  %v478 = vpop.f32.mrb[0].mxu0
  %v479 = vpop.f32.mrb[0].mxu0
  %v480 = vadd.f32 %v93, %v479
  %v481 = vpop.f32.mrb[0].mxu0
  %482 = vmatprep.mubr.bf16.mxu0 0
  %483 = vmatmul.mubr.bf16.gmra.mrb[0].mxu0 %v305
  %v484 = vpop.f32.mrb[0].mxu0
  %v485 = vadd.f32 %v93, %v484
  %v486 = vpop.f32.mrb[0].mxu0
  %v487 = vpop.f32.mrb[0].mxu0
  %v488 = vadd.f32 %v93, %v487
  %v489 = vpop.f32.mrb[0].mxu0
  %490 = vmatprep.mubr.bf16.mxu0 0
  %491 = vmatmul.mubr.bf16.gmra.mrb[0].mxu0 %v308
  %v492 = vpop.f32.mrb[0].mxu0
  %v493 = vadd.f32 %v93, %v492
  %v494 = vpop.f32.mrb[0].mxu0
  %v495 = vpop.f32.mrb[0].mxu0
  %v496 = vadd.f32 %v93, %v495
  %v497 = vpop.f32.mrb[0].mxu0
  %498 = vmatprep.mubr.bf16.mxu0 0
  %499 = vmatmul.mubr.bf16.gmra.mrb[0].mxu0 %v311
  %v500 = vpop.f32.mrb[0].mxu0
  %v501 = vadd.f32 %v93, %v500
  %v502 = vpop.f32.mrb[0].mxu0
  %v503 = vpop.f32.mrb[0].mxu0
  %v504 = vadd.f32 %v93, %v503
  %v505 = vpop.f32.mrb[0].mxu0
  %506 = vmatprep.mubr.bf16.mxu0 0
  %507 = vmatmul.mubr.bf16.gmra.mrb[0].mxu0 %v314
  %v508 = vpop.f32.mrb[0].mxu0
  %v509 = vadd.f32 %v93, %v508
  %v510 = vpop.f32.mrb[0].mxu0
  %v511 = vpop.f32.mrb[0].mxu0
  %v512 = vadd.f32 %v93, %v511
  %v513 = vpop.f32.mrb[0].mxu0
  %514 = vmatprep.mubr.bf16.mxu0 0
  %515 = vmatmul.mubr.bf16.gmra.mrb[0].mxu0 %v317
  %v516 = vpop.f32.mrb[0].mxu0
  %v517 = vadd.f32 %v93, %v516
  %v518 = vpop.f32.mrb[0].mxu0
  %v519 = vpop.f32.mrb[0].mxu0
  %v520 = vadd.f32 %v93, %v519
  %v521 = vpop.f32.mrb[0].mxu0
  %522 = vmatprep.mubr.bf16.mxu0 0
  %523 = vmatmul.mubr.bf16.gmra.mrb[0].mxu0 %v320
  %v524 = vpop.f32.mrb[0].mxu0
  %v525 = vadd.f32 %v93, %v524
  %v526 = vpop.f32.mrb[0].mxu0
  %v527 = vpop.f32.mrb[0].mxu0
  %v528 = vadd.f32 %v93, %v527
  %v529 = vpop.f32.mrb[0].mxu0
  %530 = vmatprep.mubr.bf16.mxu0 0
  %531 = vmatmul.mubr.bf16.gmra.mrb[0].mxu0 %v323
  %v532 = vpop.f32.mrb[0].mxu0
  %v533 = vadd.f32 %v93, %v532
  %v534 = vpop.f32.mrb[0].mxu0
  %v535 = vpop.f32.mrb[0].mxu0
  %v536 = vadd.f32 %v93, %v535
  %v537 = vpop.f32.mrb[0].mxu0
  %538 = vmatprep.mubr.bf16.mxu0 0
  %539 = vmatmul.mubr.bf16.gmra.mrb[0].mxu0 %v326
  %v540 = vpop.f32.mrb[0].mxu0
  %v541 = vadd.f32 %v93, %v540
  %v542 = vpop.f32.mrb[0].mxu0
  %v543 = vpop.f32.mrb[0].mxu0
  %v544 = vadd.f32 %v93, %v543
  %v545 = vpop.f32.mrb[0].mxu0
  %546 = vmatprep.mubr.bf16.mxu0 0
  %547 = vmatmul.mubr.bf16.gmra.mrb[0].mxu0 %v329
  %v548 = vpop.f32.mrb[0].mxu0
  %v549 = vadd.f32 %v93, %v548
  %v550 = vpop.f32.mrb[0].mxu0
  %v551 = vpop.f32.mrb[0].mxu0
  %v552 = vadd.f32 %v93, %v551
  %v553 = vpop.f32.mrb[0].mxu0
  %554 = vmatprep.mubr.bf16.mxu0 0
  %555 = vmatmul.mubr.bf16.gmra.mrb[0].mxu0 %v332
  %v556 = vpop.f32.mrb[0].mxu0
  %v557 = vadd.f32 %v93, %v556
  %v558 = vpop.f32.mrb[0].mxu0
  %v559 = vpop.f32.mrb[0].mxu0
  %v560 = vadd.f32 %v93, %v559
  %v561 = vpop.f32.mrb[0].mxu0
  %562 = vmatprep.mubr.bf16.mxu0 0
  %563 = vmatmul.mubr.bf16.gmra.mrb[0].mxu0 %v335
  %v564 = vpop.f32.mrb[0].mxu0
  %v565 = vadd.f32 %v93, %v564
  %v566 = vpop.f32.mrb[0].mxu0
  %v567 = vpop.f32.mrb[0].mxu0
  %v568 = vadd.f32 %v93, %v567
  %v569 = vpop.f32.mrb[0].mxu0
  %570 = vmatprep.mubr.bf16.mxu0 0
  %571 = vmatmul.mubr.bf16.gmra.mrb[0].mxu0 %v338
  %v572 = vpop.f32.mrb[0].mxu0
  %v573 = vadd.f32 %v93, %v572
  %v574 = vpop.f32.mrb[0].mxu0
  %v575 = vpop.f32.mrb[0].mxu0
  %v576 = vadd.f32 %v93, %v575
  %v577 = vpop.f32.mrb[0].mxu0
  %578 = vmatprep.mubr.bf16.mxu0 0
  %579 = vmatmul.mubr.bf16.gmra.mrb[0].mxu0 %v341
  %v580 = vpop.f32.mrb[0].mxu0
  %v581 = vadd.f32 %v93, %v580
  %v582 = vpop.f32.mrb[0].mxu0
  %v583 = vpop.f32.mrb[0].mxu0
  %v584 = vadd.f32 %v93, %v583
  %v585 = vpop.f32.mrb[0].mxu0
  %586 = vmatprep.mubr.bf16.mxu0 0
  %587 = vmatmul.mubr.bf16.gmra.mrb[0].mxu0 %v344
  %v588 = vpop.f32.mrb[0].mxu0
  %v589 = vadd.f32 %v93, %v588
  %v590 = vpop.f32.mrb[0].mxu0
  %v591 = vpop.f32.mrb[0].mxu0
  %v592 = vadd.f32 %v93, %v591
  %v593 = vpop.f32.mrb[0].mxu0
  %594 = vmatprep.mubr.bf16.mxu0 0
  %595 = vmatmul.mubr.bf16.gmra.mrb[0].mxu0 %v347
  %v596 = vpop.f32.mrb[0].mxu0
  %v597 = vadd.f32 %v93, %v596
  %v598 = vpop.f32.mrb[0].mxu0
  %v599 = vpop.f32.mrb[0].mxu0
  %v600 = vadd.f32 %v93, %v599
  %v601 = vpop.f32.mrb[0].mxu0
  %602 = vmatprep.mubr.bf16.mxu0 0
  %603 = vmatmul.mubr.bf16.gmra.mrb[0].mxu0 %v350
  %v604 = vpop.f32.mrb[0].mxu0
  %v605 = vadd.f32 %v93, %v604
  %v606 = vpop.f32.mrb[0].mxu0
  %v607 = vpop.f32.mrb[0].mxu0
  %v608 = vadd.f32 %v93, %v607
  %v609 = vpop.f32.mrb[0].mxu0
  %610 = vmatprep.mubr.bf16.mxu0 0
  %611 = vmatmul.mubr.bf16.gmra.mrb[0].mxu0 %v353
  %v612 = vpop.f32.mrb[0].mxu0
  %v613 = vadd.f32 %v93, %v612
  %v614 = vpop.f32.mrb[0].mxu0
  %v615 = vpop.f32.mrb[0].mxu0
  %v616 = vadd.f32 %v93, %v615
  %v617 = vpop.f32.mrb[0].mxu0
  %618 = vmatprep.mubr.bf16.mxu0 0
  %619 = vmatmul.mubr.bf16.gmra.mrb[0].mxu0 %v356
  %v620 = vpop.f32.mrb[0].mxu0
  %v621 = vadd.f32 %v93, %v620
  %v622 = vpop.f32.mrb[0].mxu0
  %v623 = vpop.f32.mrb[0].mxu0
  %v624 = vadd.f32 %v93, %v623
  %v625 = vpop.f32.mrb[0].mxu0
  %626 = vmatprep.mubr.bf16.mxu0 0
  %627 = vmatmul.mubr.bf16.gmra.mrb[0].mxu0 %v359
  %v628 = vpop.f32.mrb[0].mxu0
  %v629 = vadd.f32 %v93, %v628
  %v630 = vpop.f32.mrb[0].mxu0
  %v631 = vpop.f32.mrb[0].mxu0
  %v632 = vadd.f32 %v93, %v631
  %v633 = vpop.f32.mrb[0].mxu0
  %634 = vmatprep.mubr.bf16.mxu0 0
  %635 = vmatmul.mubr.bf16.gmra.mrb[0].mxu0 %v362
  %v636 = vpop.f32.mrb[0].mxu0
  %v637 = vadd.f32 %v93, %v636
  %v638 = vpop.f32.mrb[0].mxu0
  %v639 = vpop.f32.mrb[0].mxu0
  %v640 = vadd.f32 %v93, %v639
  %v641 = vpop.f32.mrb[0].mxu0
  %642 = vmatprep.mubr.bf16.mxu0 0
  %643 = vmatmul.mubr.bf16.gmra.mrb[0].mxu0 %v365
  %v644 = vpop.f32.mrb[0].mxu0
  %v645 = vadd.f32 %v93, %v644
  %v646 = vpop.f32.mrb[0].mxu0
  %v647 = vpop.f32.mrb[0].mxu0
  %v648 = vadd.f32 %v93, %v647
  %v649 = vpop.f32.mrb[0].mxu0
  %650 = vmatprep.mubr.bf16.mxu0 0
  %651 = vmatmul.mubr.bf16.gmra.mrb[0].mxu0 %v368
  %v652 = vpop.f32.mrb[0].mxu0
  %v653 = vadd.f32 %v93, %v652
  %v654 = vpop.f32.mrb[0].mxu0
  %v655 = vpop.f32.mrb[0].mxu0
  %v656 = vadd.f32 %v93, %v655
  %v657 = vpop.f32.mrb[0].mxu0
  %658 = vdwg.mxu0
  %v659 = vld [vmem:[%s1] sm:$0xf]
  %v660 = vld [vmem:[%s1 + $0x4] sm:$0xf]
  %v661 = vld [vmem:[%s1 + $0x8] sm:$0xf]
  %v662 = vld [vmem:[%s1 + $0xc] sm:$0xf]
  %v663 = vld [vmem:[%s1 + $0x10] sm:$0xf]
  %v664 = vld [vmem:[%s1 + $0x14] sm:$0xf]
  %v665 = vld [vmem:[%s1 + $0x18] sm:$0xf]
  %v666 = vld [vmem:[%s1 + $0x1c] sm:$0xf]
  %v667 = vld [vmem:[%s1 + $0x20] sm:$0xf]
  %v668 = vld [vmem:[%s1 + $0x24] sm:$0xf]
  %v669 = vld [vmem:[%s1 + $0x28] sm:$0xf]
  %v670 = vld [vmem:[%s1 + $0x2c] sm:$0xf]
  %v671 = vld [vmem:[%s1 + $0x30] sm:$0xf]
  %v672 = vld [vmem:[%s1 + $0x34] sm:$0xf]
  %v673 = vld [vmem:[%s1 + $0x38] sm:$0xf]
  %v674 = vld [vmem:[%s1 + $0x3c] sm:$0xf]
  %v675 = vld [vmem:[%s1 + $0x40] sm:$0xf]
  %v676 = vld [vmem:[%s1 + $0x44] sm:$0xf]
  %v677 = vld [vmem:[%s1 + $0x48] sm:$0xf]
  %v678 = vld [vmem:[%s1 + $0x4c] sm:$0xf]
  %v679 = vld [vmem:[%s1 + $0x50] sm:$0xf]
  %v680 = vld [vmem:[%s1 + $0x54] sm:$0xf]
  %v681 = vld [vmem:[%s1 + $0x58] sm:$0xf]
  %v682 = vld [vmem:[%s1 + $0x5c] sm:$0xf]
  %v683 = vld [vmem:[%s1 + $0x60] sm:$0xf]
  %v684 = vld [vmem:[%s1 + $0x64] sm:$0xf]
  %v685 = vld [vmem:[%s1 + $0x68] sm:$0xf]
  %v686 = vld [vmem:[%s1 + $0x6c] sm:$0xf]
  %v687 = vld [vmem:[%s1 + $0x70] sm:$0xf]
  %v688 = vld [vmem:[%s1 + $0x74] sm:$0xf]
  %v689 = vld [vmem:[%s1 + $0x78] sm:$0xf]
  %v690 = vld [vmem:[%s1 + $0x7c] sm:$0xf]
  %v691 = vld [vmem:[%s1 + $0x80] sm:$0xf]
  %v692 = vld [vmem:[%s1 + $0x84] sm:$0xf]
  %v693 = vld [vmem:[%s1 + $0x88] sm:$0xf]
  %v694 = vld [vmem:[%s1 + $0x8c] sm:$0xf]
  %v695 = vld [vmem:[%s1 + $0x90] sm:$0xf]
  %v696 = vld [vmem:[%s1 + $0x94] sm:$0xf]
  %v697 = vld [vmem:[%s1 + $0x98] sm:$0xf]
  %v698 = vld [vmem:[%s1 + $0x9c] sm:$0xf]
  %v699 = vld [vmem:[%s1 + $0xa0] sm:$0xf]
  %v700 = vld [vmem:[%s1 + $0xa4] sm:$0xf]
  %v701 = vld [vmem:[%s1 + $0xa8] sm:$0xf]
  %v702 = vld [vmem:[%s1 + $0xac] sm:$0xf]
  %v703 = vld [vmem:[%s1 + $0xb0] sm:$0xf]
  %v704 = vld [vmem:[%s1 + $0xb4] sm:$0xf]
  %v705 = vld [vmem:[%s1 + $0xb8] sm:$0xf]
  %v706 = vld [vmem:[%s1 + $0xbc] sm:$0xf]
  %v707 = vld [vmem:[%s1 + $0xc0] sm:$0xf]
  %v708 = vld [vmem:[%s1 + $0xc4] sm:$0xf]
  %v709 = vld [vmem:[%s1 + $0xc8] sm:$0xf]
  %v710 = vld [vmem:[%s1 + $0xcc] sm:$0xf]
  %v711 = vld [vmem:[%s1 + $0xd0] sm:$0xf]
  %v712 = vld [vmem:[%s1 + $0xd4] sm:$0xf]
  %v713 = vld [vmem:[%s1 + $0xd8] sm:$0xf]
  %v714 = vld [vmem:[%s1 + $0xdc] sm:$0xf]
  %v715 = vld [vmem:[%s1 + $0xe0] sm:$0xf]
  %v716 = vld [vmem:[%s1 + $0xe4] sm:$0xf]
  %v717 = vld [vmem:[%s1 + $0xe8] sm:$0xf]
  %v718 = vld [vmem:[%s1 + $0xec] sm:$0xf]
  %v719 = vld [vmem:[%s1 + $0xf0] sm:$0xf]
  %v720 = vld [vmem:[%s1 + $0xf4] sm:$0xf]
  %v721 = vld [vmem:[%s1 + $0xf8] sm:$0xf]
  %v722 = vld [vmem:[%s1 + $0xfc] sm:$0xf]
  %v787 = vunpack.c.l.b16 %v659
  %v788 = vunpack.c.l.b16 %v660
  %v789 = vunpack.c.l.b16 %v661
  %v790 = vunpack.c.l.b16 %v662
  %v791 = vunpack.c.l.b16 %v663
  %v792 = vunpack.c.l.b16 %v664
  %v793 = vunpack.c.l.b16 %v665
  %v794 = vunpack.c.l.b16 %v666
  %v795 = vunpack.c.l.b16 %v667
  %v796 = vunpack.c.l.b16 %v668
  %v797 = vunpack.c.l.b16 %v669
  %v798 = vunpack.c.l.b16 %v670
  %v799 = vunpack.c.l.b16 %v671
  %v800 = vunpack.c.l.b16 %v672
  %v801 = vunpack.c.l.b16 %v673
  %v802 = vunpack.c.l.b16 %v674
  %v803 = vunpack.c.l.b16 %v675
  %v804 = vunpack.c.l.b16 %v676
  %v805 = vunpack.c.l.b16 %v677
  %v806 = vunpack.c.l.b16 %v678
  %v807 = vunpack.c.l.b16 %v679
  %v808 = vunpack.c.l.b16 %v680
  %v809 = vunpack.c.l.b16 %v681
  %v810 = vunpack.c.l.b16 %v682
  %v811 = vunpack.c.l.b16 %v683
  %v812 = vunpack.c.l.b16 %v684
  %v813 = vunpack.c.l.b16 %v685
  %v814 = vunpack.c.l.b16 %v686
  %v815 = vunpack.c.l.b16 %v687
  %v816 = vunpack.c.l.b16 %v688
  %v817 = vunpack.c.l.b16 %v689
  %v818 = vunpack.c.l.b16 %v690
  %v819 = vunpack.c.l.b16 %v691
  %v820 = vunpack.c.l.b16 %v692
  %v821 = vunpack.c.l.b16 %v693
  %v822 = vunpack.c.l.b16 %v694
  %v823 = vunpack.c.l.b16 %v695
  %v824 = vunpack.c.l.b16 %v696
  %v825 = vunpack.c.l.b16 %v697
  %v826 = vunpack.c.l.b16 %v698
  %v827 = vunpack.c.l.b16 %v699
  %v828 = vunpack.c.l.b16 %v700
  %v829 = vunpack.c.l.b16 %v701
  %v830 = vunpack.c.l.b16 %v702
  %v831 = vunpack.c.l.b16 %v703
  %v832 = vunpack.c.l.b16 %v704
  %v833 = vunpack.c.l.b16 %v705
  %v834 = vunpack.c.l.b16 %v706
  %v835 = vunpack.c.l.b16 %v707
  %v836 = vunpack.c.l.b16 %v708
  %v837 = vunpack.c.l.b16 %v709
  %v838 = vunpack.c.l.b16 %v710
  %v839 = vunpack.c.l.b16 %v711
  %v840 = vunpack.c.l.b16 %v712
  %v841 = vunpack.c.l.b16 %v713
  %v842 = vunpack.c.l.b16 %v714
  %v843 = vunpack.c.l.b16 %v715
  %v844 = vunpack.c.l.b16 %v716
  %v845 = vunpack.c.l.b16 %v717
  %v846 = vunpack.c.l.b16 %v718
  %v847 = vunpack.c.l.b16 %v719
  %v848 = vunpack.c.l.b16 %v720
  %v849 = vunpack.c.l.b16 %v721
  %v850 = vunpack.c.l.b16 %v722
  %v851 = vpack.c.b16 %v788, %v787
  %v852 = vpack.c.b16 %v790, %v789
  %v853 = vpack.c.b16 %v792, %v791
  %v854 = vpack.c.b16 %v794, %v793
  %v855 = vpack.c.b16 %v796, %v795
  %v856 = vpack.c.b16 %v798, %v797
  %v857 = vpack.c.b16 %v800, %v799
  %v858 = vpack.c.b16 %v802, %v801
  %v859 = vpack.c.b16 %v804, %v803
  %v860 = vpack.c.b16 %v806, %v805
  %v861 = vpack.c.b16 %v808, %v807
  %v862 = vpack.c.b16 %v810, %v809
  %v863 = vpack.c.b16 %v812, %v811
  %v864 = vpack.c.b16 %v814, %v813
  %v865 = vpack.c.b16 %v816, %v815
  %v866 = vpack.c.b16 %v818, %v817
  %v867 = vpack.c.b16 %v820, %v819
  %v868 = vpack.c.b16 %v822, %v821
  %v869 = vpack.c.b16 %v824, %v823
  %v870 = vpack.c.b16 %v826, %v825
  %v871 = vpack.c.b16 %v828, %v827
  %v872 = vpack.c.b16 %v830, %v829
  %v873 = vpack.c.b16 %v832, %v831
  %v874 = vpack.c.b16 %v834, %v833
  %v875 = vpack.c.b16 %v836, %v835
  %v876 = vpack.c.b16 %v838, %v837
  %v877 = vpack.c.b16 %v840, %v839
  %v878 = vpack.c.b16 %v842, %v841
  %v879 = vpack.c.b16 %v844, %v843
  %v880 = vpack.c.b16 %v846, %v845
  %v881 = vpack.c.b16 %v848, %v847
  %v882 = vpack.c.b16 %v850, %v849
  %v884 = vsel %vm273, %v851, 0
  %v887 = vsel %vm273, %v852, 0
  %v890 = vsel %vm273, %v853, 0
  %v893 = vsel %vm273, %v854, 0
  %v896 = vsel %vm273, %v855, 0
  %v899 = vsel %vm273, %v856, 0
  %v902 = vsel %vm273, %v857, 0
  %v905 = vsel %vm273, %v858, 0
  %v908 = vsel %vm273, %v859, 0
  %v911 = vsel %vm273, %v860, 0
  %v914 = vsel %vm273, %v861, 0
  %v917 = vsel %vm273, %v862, 0
  %v920 = vsel %vm273, %v863, 0
  %v923 = vsel %vm273, %v864, 0
  %v926 = vsel %vm273, %v865, 0
  %v929 = vsel %vm273, %v866, 0
  %v932 = vsel %vm273, %v867, 0
  %v935 = vsel %vm273, %v868, 0
  %v938 = vsel %vm273, %v869, 0
  %v941 = vsel %vm273, %v870, 0
  %v944 = vsel %vm273, %v871, 0
  %v947 = vsel %vm273, %v872, 0
  %v950 = vsel %vm273, %v873, 0
  %v953 = vsel %vm273, %v874, 0
  %v956 = vsel %vm273, %v875, 0
  %v959 = vsel %vm273, %v876, 0
  %v962 = vsel %vm273, %v877, 0
  %v965 = vsel %vm273, %v878, 0
  %v968 = vsel %vm273, %v879, 0
  %v971 = vsel %vm273, %v880, 0
  %v974 = vsel %vm273, %v881, 0
  %v977 = vsel %vm273, %v882, 0
  %979 = vmatprep.subr.bf16.mxu0 0
  %980 = vmatpush1.bf16.msra.mxu0 %v267
  %981 = vmatprep.subr.bf16.mxu0 0
  %982 = vmatpush1.bf16.msra.mxu0 %v268
  %983 = vmatprep.subr.bf16.mxu0 0
  %984 = vmatpush1.bf16.msra.mxu0 %v269
  %985 = vmatprep.subr.bf16.mxu0 0
  %986 = vmatpush1.bf16.msra.mxu0 0
  %987 = vmatprep.subr.bf16.mxu0 0
  %988 = vmatpush1.bf16.msra.mxu0 0
  %989 = vmatprep.subr.bf16.mxu0 0
  %990 = vmatpush1.bf16.msra.mxu0 0
  %991 = vmatprep.subr.bf16.mxu0 0
  %992 = vmatpush1.bf16.msra.mxu0 0
  %993 = vmatprep.subr.bf16.mxu0 0
  %994 = vmatpush1.bf16.msra.mxu0 0
  %995 = vmatprep.subr.bf16.mxu0 0
  %996 = vmatpush1.bf16.msra.mxu0 0
  %997 = vmatprep.subr.bf16.mxu0 0
  %998 = vmatpush1.bf16.msra.mxu0 0
  %999 = vmatprep.subr.bf16.mxu0 0
  %1000 = vmatpush1.bf16.msra.mxu0 0
  %1001 = vmatprep.subr.bf16.mxu0 0
  %1002 = vmatpush1.bf16.msra.mxu0 0
  %1003 = vmatprep.subr.bf16.mxu0 0
  %1004 = vmatpush1.bf16.msra.mxu0 0
  %1005 = vmatprep.subr.bf16.mxu0 0
  %1006 = vmatpush1.bf16.msra.mxu0 0
  %1007 = vmatprep.subr.bf16.mxu0 0
  %1008 = vmatpush1.bf16.msra.mxu0 0
  %1009 = vmatprep.subr.bf16.mxu0 0
  %1010 = vmatpush1.bf16.msra.mxu0 0
  %1011 = vmatprep.mubr.bf16.mxu0 0
  %1012 = vmatmul.mubr.bf16.gmra.mrb[0].mxu0 %v884
  %v1013 = vpop.f32.mrb[0].mxu0
  %v1014 = vadd.f32 %v93, %v1013
  %v1015 = vpop.f32.mrb[0].mxu0
  %v1016 = vpop.f32.mrb[0].mxu0
  %v1017 = vadd.f32 %v93, %v1016
  %v1018 = vpop.f32.mrb[0].mxu0
  %1019 = vmatprep.mubr.bf16.mxu0 0
  %1020 = vmatmul.mubr.bf16.gmra.mrb[0].mxu0 %v887
  %v1021 = vpop.f32.mrb[0].mxu0
  %v1022 = vadd.f32 %v93, %v1021
  %v1023 = vpop.f32.mrb[0].mxu0
  %v1024 = vpop.f32.mrb[0].mxu0
  %v1025 = vadd.f32 %v93, %v1024
  %v1026 = vpop.f32.mrb[0].mxu0
  %1027 = vmatprep.mubr.bf16.mxu0 0
  %1028 = vmatmul.mubr.bf16.gmra.mrb[0].mxu0 %v890
  %v1029 = vpop.f32.mrb[0].mxu0
  %v1030 = vadd.f32 %v93, %v1029
  %v1031 = vpop.f32.mrb[0].mxu0
  %v1032 = vpop.f32.mrb[0].mxu0
  %v1033 = vadd.f32 %v93, %v1032
  %v1034 = vpop.f32.mrb[0].mxu0
  %1035 = vmatprep.mubr.bf16.mxu0 0
  %1036 = vmatmul.mubr.bf16.gmra.mrb[0].mxu0 %v893
  %v1037 = vpop.f32.mrb[0].mxu0
  %v1038 = vadd.f32 %v93, %v1037
  %v1039 = vpop.f32.mrb[0].mxu0
  %v1040 = vpop.f32.mrb[0].mxu0
  %v1041 = vadd.f32 %v93, %v1040
  %v1042 = vpop.f32.mrb[0].mxu0
  %1043 = vmatprep.mubr.bf16.mxu0 0
  %1044 = vmatmul.mubr.bf16.gmra.mrb[0].mxu0 %v896
  %v1045 = vpop.f32.mrb[0].mxu0
  %v1046 = vadd.f32 %v93, %v1045
  %v1047 = vpop.f32.mrb[0].mxu0
  %v1048 = vpop.f32.mrb[0].mxu0
  %v1049 = vadd.f32 %v93, %v1048
  %v1050 = vpop.f32.mrb[0].mxu0
  %1051 = vmatprep.mubr.bf16.mxu0 0
  %1052 = vmatmul.mubr.bf16.gmra.mrb[0].mxu0 %v899
  %v1053 = vpop.f32.mrb[0].mxu0
  %v1054 = vadd.f32 %v93, %v1053
  %v1055 = vpop.f32.mrb[0].mxu0
  %v1056 = vpop.f32.mrb[0].mxu0
  %v1057 = vadd.f32 %v93, %v1056
  %v1058 = vpop.f32.mrb[0].mxu0
  %1059 = vmatprep.mubr.bf16.mxu0 0
  %1060 = vmatmul.mubr.bf16.gmra.mrb[0].mxu0 %v902
  %v1061 = vpop.f32.mrb[0].mxu0
  %v1062 = vadd.f32 %v93, %v1061
  %v1063 = vpop.f32.mrb[0].mxu0
  %v1064 = vpop.f32.mrb[0].mxu0
  %v1065 = vadd.f32 %v93, %v1064
  %v1066 = vpop.f32.mrb[0].mxu0
  %1067 = vmatprep.mubr.bf16.mxu0 0
  %1068 = vmatmul.mubr.bf16.gmra.mrb[0].mxu0 %v905
  %v1069 = vpop.f32.mrb[0].mxu0
  %v1070 = vadd.f32 %v93, %v1069
  %v1071 = vpop.f32.mrb[0].mxu0
  %v1072 = vpop.f32.mrb[0].mxu0
  %v1073 = vadd.f32 %v93, %v1072
  %v1074 = vpop.f32.mrb[0].mxu0
  %1075 = vmatprep.mubr.bf16.mxu0 0
  %1076 = vmatmul.mubr.bf16.gmra.mrb[0].mxu0 %v908
  %v1077 = vpop.f32.mrb[0].mxu0
  %v1078 = vadd.f32 %v93, %v1077
  %v1079 = vpop.f32.mrb[0].mxu0
  %v1080 = vpop.f32.mrb[0].mxu0
  %v1081 = vadd.f32 %v93, %v1080
  %v1082 = vpop.f32.mrb[0].mxu0
  %1083 = vmatprep.mubr.bf16.mxu0 0
  %1084 = vmatmul.mubr.bf16.gmra.mrb[0].mxu0 %v911
  %v1085 = vpop.f32.mrb[0].mxu0
  %v1086 = vadd.f32 %v93, %v1085
  %v1087 = vpop.f32.mrb[0].mxu0
  %v1088 = vpop.f32.mrb[0].mxu0
  %v1089 = vadd.f32 %v93, %v1088
  %v1090 = vpop.f32.mrb[0].mxu0
  %1091 = vmatprep.mubr.bf16.mxu0 0
  %1092 = vmatmul.mubr.bf16.gmra.mrb[0].mxu0 %v914
  %v1093 = vpop.f32.mrb[0].mxu0
  %v1094 = vadd.f32 %v93, %v1093
  %v1095 = vpop.f32.mrb[0].mxu0
  %v1096 = vpop.f32.mrb[0].mxu0
  %v1097 = vadd.f32 %v93, %v1096
  %v1098 = vpop.f32.mrb[0].mxu0
  %1099 = vmatprep.mubr.bf16.mxu0 0
  %1100 = vmatmul.mubr.bf16.gmra.mrb[0].mxu0 %v917
  %v1101 = vpop.f32.mrb[0].mxu0
  %v1102 = vadd.f32 %v93, %v1101
  %v1103 = vpop.f32.mrb[0].mxu0
  %v1104 = vpop.f32.mrb[0].mxu0
  %v1105 = vadd.f32 %v93, %v1104
  %v1106 = vpop.f32.mrb[0].mxu0
  %1107 = vmatprep.mubr.bf16.mxu0 0
  %1108 = vmatmul.mubr.bf16.gmra.mrb[0].mxu0 %v920
  %v1109 = vpop.f32.mrb[0].mxu0
  %v1110 = vadd.f32 %v93, %v1109
  %v1111 = vpop.f32.mrb[0].mxu0
  %v1112 = vpop.f32.mrb[0].mxu0
  %v1113 = vadd.f32 %v93, %v1112
  %v1114 = vpop.f32.mrb[0].mxu0
  %1115 = vmatprep.mubr.bf16.mxu0 0
  %1116 = vmatmul.mubr.bf16.gmra.mrb[0].mxu0 %v923
  %v1117 = vpop.f32.mrb[0].mxu0
  %v1118 = vadd.f32 %v93, %v1117
  %v1119 = vpop.f32.mrb[0].mxu0
  %v1120 = vpop.f32.mrb[0].mxu0
  %v1121 = vadd.f32 %v93, %v1120
  %v1122 = vpop.f32.mrb[0].mxu0
  %1123 = vmatprep.mubr.bf16.mxu0 0
  %1124 = vmatmul.mubr.bf16.gmra.mrb[0].mxu0 %v926
  %v1125 = vpop.f32.mrb[0].mxu0
  %v1126 = vadd.f32 %v93, %v1125
  %v1127 = vpop.f32.mrb[0].mxu0
  %v1128 = vpop.f32.mrb[0].mxu0
  %v1129 = vadd.f32 %v93, %v1128
  %v1130 = vpop.f32.mrb[0].mxu0
  %1131 = vmatprep.mubr.bf16.mxu0 0
  %1132 = vmatmul.mubr.bf16.gmra.mrb[0].mxu0 %v929
  %v1133 = vpop.f32.mrb[0].mxu0
  %v1134 = vadd.f32 %v93, %v1133
  %v1135 = vpop.f32.mrb[0].mxu0
  %v1136 = vpop.f32.mrb[0].mxu0
  %v1137 = vadd.f32 %v93, %v1136
  %v1138 = vpop.f32.mrb[0].mxu0
  %1139 = vmatprep.mubr.bf16.mxu0 0
  %1140 = vmatmul.mubr.bf16.gmra.mrb[0].mxu0 %v932
  %v1141 = vpop.f32.mrb[0].mxu0
  %v1142 = vadd.f32 %v93, %v1141
  %v1143 = vpop.f32.mrb[0].mxu0
  %v1144 = vpop.f32.mrb[0].mxu0
  %v1145 = vadd.f32 %v93, %v1144
  %v1146 = vpop.f32.mrb[0].mxu0
  %1147 = vmatprep.mubr.bf16.mxu0 0
  %1148 = vmatmul.mubr.bf16.gmra.mrb[0].mxu0 %v935
  %v1149 = vpop.f32.mrb[0].mxu0
  %v1150 = vadd.f32 %v93, %v1149
  %v1151 = vpop.f32.mrb[0].mxu0
  %v1152 = vpop.f32.mrb[0].mxu0
  %v1153 = vadd.f32 %v93, %v1152
  %v1154 = vpop.f32.mrb[0].mxu0
  %1155 = vmatprep.mubr.bf16.mxu0 0
  %1156 = vmatmul.mubr.bf16.gmra.mrb[0].mxu0 %v938
  %v1157 = vpop.f32.mrb[0].mxu0
  %v1158 = vadd.f32 %v93, %v1157
  %v1159 = vpop.f32.mrb[0].mxu0
  %v1160 = vpop.f32.mrb[0].mxu0
  %v1161 = vadd.f32 %v93, %v1160
  %v1162 = vpop.f32.mrb[0].mxu0
  %1163 = vmatprep.mubr.bf16.mxu0 0
  %1164 = vmatmul.mubr.bf16.gmra.mrb[0].mxu0 %v941
  %v1165 = vpop.f32.mrb[0].mxu0
  %v1166 = vadd.f32 %v93, %v1165
  %v1167 = vpop.f32.mrb[0].mxu0
  %v1168 = vpop.f32.mrb[0].mxu0
  %v1169 = vadd.f32 %v93, %v1168
  %v1170 = vpop.f32.mrb[0].mxu0
  %1171 = vmatprep.mubr.bf16.mxu0 0
  %1172 = vmatmul.mubr.bf16.gmra.mrb[0].mxu0 %v944
  %v1173 = vpop.f32.mrb[0].mxu0
  %v1174 = vadd.f32 %v93, %v1173
  %v1175 = vpop.f32.mrb[0].mxu0
  %v1176 = vpop.f32.mrb[0].mxu0
  %v1177 = vadd.f32 %v93, %v1176
  %v1178 = vpop.f32.mrb[0].mxu0
  %1179 = vmatprep.mubr.bf16.mxu0 0
  %1180 = vmatmul.mubr.bf16.gmra.mrb[0].mxu0 %v947
  %v1181 = vpop.f32.mrb[0].mxu0
  %v1182 = vadd.f32 %v93, %v1181
  %v1183 = vpop.f32.mrb[0].mxu0
  %v1184 = vpop.f32.mrb[0].mxu0
  %v1185 = vadd.f32 %v93, %v1184
  %v1186 = vpop.f32.mrb[0].mxu0
  %1187 = vmatprep.mubr.bf16.mxu0 0
  %1188 = vmatmul.mubr.bf16.gmra.mrb[0].mxu0 %v950
  %v1189 = vpop.f32.mrb[0].mxu0
  %v1190 = vadd.f32 %v93, %v1189
  %v1191 = vpop.f32.mrb[0].mxu0
  %v1192 = vpop.f32.mrb[0].mxu0
  %v1193 = vadd.f32 %v93, %v1192
  %v1194 = vpop.f32.mrb[0].mxu0
  %1195 = vmatprep.mubr.bf16.mxu0 0
  %1196 = vmatmul.mubr.bf16.gmra.mrb[0].mxu0 %v953
  %v1197 = vpop.f32.mrb[0].mxu0
  %v1198 = vadd.f32 %v93, %v1197
  %v1199 = vpop.f32.mrb[0].mxu0
  %v1200 = vpop.f32.mrb[0].mxu0
  %v1201 = vadd.f32 %v93, %v1200
  %v1202 = vpop.f32.mrb[0].mxu0
  %1203 = vmatprep.mubr.bf16.mxu0 0
  %1204 = vmatmul.mubr.bf16.gmra.mrb[0].mxu0 %v956
  %v1205 = vpop.f32.mrb[0].mxu0
  %v1206 = vadd.f32 %v93, %v1205
  %v1207 = vpop.f32.mrb[0].mxu0
  %v1208 = vpop.f32.mrb[0].mxu0
  %v1209 = vadd.f32 %v93, %v1208
  %v1210 = vpop.f32.mrb[0].mxu0
  %1211 = vmatprep.mubr.bf16.mxu0 0
  %1212 = vmatmul.mubr.bf16.gmra.mrb[0].mxu0 %v959
  %v1213 = vpop.f32.mrb[0].mxu0
  %v1214 = vadd.f32 %v93, %v1213
  %v1215 = vpop.f32.mrb[0].mxu0
  %v1216 = vpop.f32.mrb[0].mxu0
  %v1217 = vadd.f32 %v93, %v1216
  %v1218 = vpop.f32.mrb[0].mxu0
  %1219 = vmatprep.mubr.bf16.mxu0 0
  %1220 = vmatmul.mubr.bf16.gmra.mrb[0].mxu0 %v962
  %v1221 = vpop.f32.mrb[0].mxu0
  %v1222 = vadd.f32 %v93, %v1221
  %v1223 = vpop.f32.mrb[0].mxu0
  %v1224 = vpop.f32.mrb[0].mxu0
  %v1225 = vadd.f32 %v93, %v1224
  %v1226 = vpop.f32.mrb[0].mxu0
  %1227 = vmatprep.mubr.bf16.mxu0 0
  %1228 = vmatmul.mubr.bf16.gmra.mrb[0].mxu0 %v965
  %v1229 = vpop.f32.mrb[0].mxu0
  %v1230 = vadd.f32 %v93, %v1229
  %v1231 = vpop.f32.mrb[0].mxu0
  %v1232 = vpop.f32.mrb[0].mxu0
  %v1233 = vadd.f32 %v93, %v1232
  %v1234 = vpop.f32.mrb[0].mxu0
  %1235 = vmatprep.mubr.bf16.mxu0 0
  %1236 = vmatmul.mubr.bf16.gmra.mrb[0].mxu0 %v968
  %v1237 = vpop.f32.mrb[0].mxu0
  %v1238 = vadd.f32 %v93, %v1237
  %v1239 = vpop.f32.mrb[0].mxu0
  %v1240 = vpop.f32.mrb[0].mxu0
  %v1241 = vadd.f32 %v93, %v1240
  %v1242 = vpop.f32.mrb[0].mxu0
  %1243 = vmatprep.mubr.bf16.mxu0 0
  %1244 = vmatmul.mubr.bf16.gmra.mrb[0].mxu0 %v971
  %v1245 = vpop.f32.mrb[0].mxu0
  %v1246 = vadd.f32 %v93, %v1245
  %v1247 = vpop.f32.mrb[0].mxu0
  %v1248 = vpop.f32.mrb[0].mxu0
  %v1249 = vadd.f32 %v93, %v1248
  %v1250 = vpop.f32.mrb[0].mxu0
  %1251 = vmatprep.mubr.bf16.mxu0 0
  %1252 = vmatmul.mubr.bf16.gmra.mrb[0].mxu0 %v974
  %v1253 = vpop.f32.mrb[0].mxu0
  %v1254 = vadd.f32 %v93, %v1253
  %v1255 = vpop.f32.mrb[0].mxu0
  %v1256 = vpop.f32.mrb[0].mxu0
  %v1257 = vadd.f32 %v93, %v1256
  %v1258 = vpop.f32.mrb[0].mxu0
  %1259 = vmatprep.mubr.bf16.mxu0 0
  %1260 = vmatmul.mubr.bf16.gmra.mrb[0].mxu0 %v977
  %v1261 = vpop.f32.mrb[0].mxu0
  %v1262 = vadd.f32 %v93, %v1261
  %v1263 = vpop.f32.mrb[0].mxu0
  %v1264 = vpop.f32.mrb[0].mxu0
  %v1265 = vadd.f32 %v93, %v1264
  %v1266 = vpop.f32.mrb[0].mxu0
  %1267 = vdwg.mxu0
  %v1268 = vpack.c.bf16 %v408, %v405
  %v1269 = vpack.c.bf16 %v416, %v413
  %v1270 = vpack.c.bf16 %v424, %v421
  %v1271 = vpack.c.bf16 %v432, %v429
  %v1272 = vpack.c.bf16 %v440, %v437
  %v1273 = vpack.c.bf16 %v448, %v445
  %v1274 = vpack.c.bf16 %v456, %v453
  %v1275 = vpack.c.bf16 %v464, %v461
  %v1276 = vpack.c.bf16 %v472, %v469
  %v1277 = vpack.c.bf16 %v480, %v477
  %v1278 = vpack.c.bf16 %v488, %v485
  %v1279 = vpack.c.bf16 %v496, %v493
  %v1280 = vpack.c.bf16 %v504, %v501
  %v1281 = vpack.c.bf16 %v512, %v509
  %v1282 = vpack.c.bf16 %v520, %v517
  %v1283 = vpack.c.bf16 %v528, %v525
  %v1284 = vpack.c.bf16 %v536, %v533
  %v1285 = vpack.c.bf16 %v544, %v541
  %v1286 = vpack.c.bf16 %v552, %v549
  %v1287 = vpack.c.bf16 %v560, %v557
  %v1288 = vpack.c.bf16 %v568, %v565
  %v1289 = vpack.c.bf16 %v576, %v573
  %v1290 = vpack.c.bf16 %v584, %v581
  %v1291 = vpack.c.bf16 %v592, %v589
  %v1292 = vpack.c.bf16 %v600, %v597
  %v1293 = vpack.c.bf16 %v608, %v605
  %v1294 = vpack.c.bf16 %v616, %v613
  %v1295 = vpack.c.bf16 %v624, %v621
  %v1296 = vpack.c.bf16 %v632, %v629
  %v1297 = vpack.c.bf16 %v640, %v637
  %v1298 = vpack.c.bf16 %v648, %v645
  %v1299 = vpack.c.bf16 %v656, %v653
  %v1332 = vunpack.c.l.b16 %v1268
  %v1333 = vunpack.c.h.b16 %v1268
  %v1334 = vunpack.c.l.b16 %v1269
  %v1335 = vunpack.c.h.b16 %v1269
  %v1336 = vunpack.c.l.b16 %v1270
  %v1337 = vunpack.c.h.b16 %v1270
  %v1338 = vunpack.c.l.b16 %v1271
  %v1339 = vunpack.c.h.b16 %v1271
  %v1340 = vunpack.c.l.b16 %v1272
  %v1341 = vunpack.c.h.b16 %v1272
  %v1342 = vunpack.c.l.b16 %v1273
  %v1343 = vunpack.c.h.b16 %v1273
  %v1344 = vunpack.c.l.b16 %v1274
  %v1345 = vunpack.c.h.b16 %v1274
  %v1346 = vunpack.c.l.b16 %v1275
  %v1347 = vunpack.c.h.b16 %v1275
  %v1348 = vunpack.c.l.b16 %v1276
  %v1349 = vunpack.c.h.b16 %v1276
  %v1350 = vunpack.c.l.b16 %v1277
  %v1351 = vunpack.c.h.b16 %v1277
  %v1352 = vunpack.c.l.b16 %v1278
  %v1353 = vunpack.c.h.b16 %v1278
  %v1354 = vunpack.c.l.b16 %v1279
  %v1355 = vunpack.c.h.b16 %v1279
  %v1356 = vunpack.c.l.b16 %v1280
  %v1357 = vunpack.c.h.b16 %v1280
  %v1358 = vunpack.c.l.b16 %v1281
  %v1359 = vunpack.c.h.b16 %v1281
  %v1360 = vunpack.c.l.b16 %v1282
  %v1361 = vunpack.c.h.b16 %v1282
  %v1362 = vunpack.c.l.b16 %v1283
  %v1363 = vunpack.c.h.b16 %v1283
  %v1364 = vunpack.c.l.b16 %v1284
  %v1365 = vunpack.c.h.b16 %v1284
  %v1366 = vunpack.c.l.b16 %v1285
  %v1367 = vunpack.c.h.b16 %v1285
  %v1368 = vunpack.c.l.b16 %v1286
  %v1369 = vunpack.c.h.b16 %v1286
  %v1370 = vunpack.c.l.b16 %v1287
  %v1371 = vunpack.c.h.b16 %v1287
  %v1372 = vunpack.c.l.b16 %v1288
  %v1373 = vunpack.c.h.b16 %v1288
  %v1374 = vunpack.c.l.b16 %v1289
  %v1375 = vunpack.c.h.b16 %v1289
  %v1376 = vunpack.c.l.b16 %v1290
  %v1377 = vunpack.c.h.b16 %v1290
  %v1378 = vunpack.c.l.b16 %v1291
  %v1379 = vunpack.c.h.b16 %v1291
  %v1380 = vunpack.c.l.b16 %v1292
  %v1381 = vunpack.c.h.b16 %v1292
  %v1382 = vunpack.c.l.b16 %v1293
  %v1383 = vunpack.c.h.b16 %v1293
  %v1384 = vunpack.c.l.b16 %v1294
  %v1385 = vunpack.c.h.b16 %v1294
  %v1386 = vunpack.c.l.b16 %v1295
  %v1387 = vunpack.c.h.b16 %v1295
  %v1388 = vunpack.c.l.b16 %v1296
  %v1389 = vunpack.c.h.b16 %v1296
  %v1390 = vunpack.c.l.b16 %v1297
  %v1391 = vunpack.c.h.b16 %v1297
  %v1392 = vunpack.c.l.b16 %v1298
  %v1393 = vunpack.c.h.b16 %v1298
  %v1394 = vunpack.c.l.b16 %v1299
  %v1395 = vunpack.c.h.b16 %v1299
  %v1396 = vpack.c.b16 %v1332, %v1332
  %v1397 = vpack.c.b16 %v1333, %v1333
  %v1398 = vpack.c.b16 %v1334, %v1334
  %v1399 = vpack.c.b16 %v1335, %v1335
  %v1400 = vpack.c.b16 %v1336, %v1336
  %v1401 = vpack.c.b16 %v1337, %v1337
  %v1402 = vpack.c.b16 %v1338, %v1338
  %v1403 = vpack.c.b16 %v1339, %v1339
  %v1404 = vpack.c.b16 %v1340, %v1340
  %v1405 = vpack.c.b16 %v1341, %v1341
  %v1406 = vpack.c.b16 %v1342, %v1342
  %v1407 = vpack.c.b16 %v1343, %v1343
  %v1408 = vpack.c.b16 %v1344, %v1344
  %v1409 = vpack.c.b16 %v1345, %v1345
  %v1410 = vpack.c.b16 %v1346, %v1346
  %v1411 = vpack.c.b16 %v1347, %v1347
  %v1412 = vpack.c.b16 %v1348, %v1348
  %v1413 = vpack.c.b16 %v1349, %v1349
  %v1414 = vpack.c.b16 %v1350, %v1350
  %v1415 = vpack.c.b16 %v1351, %v1351
  %v1416 = vpack.c.b16 %v1352, %v1352
  %v1417 = vpack.c.b16 %v1353, %v1353
  %v1418 = vpack.c.b16 %v1354, %v1354
  %v1419 = vpack.c.b16 %v1355, %v1355
  %v1420 = vpack.c.b16 %v1356, %v1356
  %v1421 = vpack.c.b16 %v1357, %v1357
  %v1422 = vpack.c.b16 %v1358, %v1358
  %v1423 = vpack.c.b16 %v1359, %v1359
  %v1424 = vpack.c.b16 %v1360, %v1360
  %v1425 = vpack.c.b16 %v1361, %v1361
  %v1426 = vpack.c.b16 %v1362, %v1362
  %v1427 = vpack.c.b16 %v1363, %v1363
  %v1428 = vpack.c.b16 %v1364, %v1364
  %v1429 = vpack.c.b16 %v1365, %v1365
  %v1430 = vpack.c.b16 %v1366, %v1366
  %v1431 = vpack.c.b16 %v1367, %v1367
  %v1432 = vpack.c.b16 %v1368, %v1368
  %v1433 = vpack.c.b16 %v1369, %v1369
  %v1434 = vpack.c.b16 %v1370, %v1370
  %v1435 = vpack.c.b16 %v1371, %v1371
  %v1436 = vpack.c.b16 %v1372, %v1372
  %v1437 = vpack.c.b16 %v1373, %v1373
  %v1438 = vpack.c.b16 %v1374, %v1374
  %v1439 = vpack.c.b16 %v1375, %v1375
  %v1440 = vpack.c.b16 %v1376, %v1376
  %v1441 = vpack.c.b16 %v1377, %v1377
  %v1442 = vpack.c.b16 %v1378, %v1378
  %v1443 = vpack.c.b16 %v1379, %v1379
  %v1444 = vpack.c.b16 %v1380, %v1380
  %v1445 = vpack.c.b16 %v1381, %v1381
  %v1446 = vpack.c.b16 %v1382, %v1382
  %v1447 = vpack.c.b16 %v1383, %v1383
  %v1448 = vpack.c.b16 %v1384, %v1384
  %v1449 = vpack.c.b16 %v1385, %v1385
  %v1450 = vpack.c.b16 %v1386, %v1386
  %v1451 = vpack.c.b16 %v1387, %v1387
  %v1452 = vpack.c.b16 %v1388, %v1388
  %v1453 = vpack.c.b16 %v1389, %v1389
  %v1454 = vpack.c.b16 %v1390, %v1390
  %v1455 = vpack.c.b16 %v1391, %v1391
  %v1456 = vpack.c.b16 %v1392, %v1392
  %v1457 = vpack.c.b16 %v1393, %v1393
  %v1458 = vpack.c.b16 %v1394, %v1394
  %v1459 = vpack.c.b16 %v1395, %v1395
  %1524 = vst [vmem:[%s4] sm:$0xf] %v1396
  %1525 = vst [vmem:[%s4 + $0x8] sm:$0xf] %v1397
  %1526 = vst [vmem:[%s4 + $0x10] sm:$0xf] %v1398
  %1527 = vst [vmem:[%s4 + $0x18] sm:$0xf] %v1399
  %1528 = vst [vmem:[%s4 + $0x20] sm:$0xf] %v1400
  %1529 = vst [vmem:[%s4 + $0x28] sm:$0xf] %v1401
  %1530 = vst [vmem:[%s4 + $0x30] sm:$0xf] %v1402
  %1531 = vst [vmem:[%s4 + $0x38] sm:$0xf] %v1403
  %1532 = vst [vmem:[%s4 + $0x40] sm:$0xf] %v1404
  %1533 = vst [vmem:[%s4 + $0x48] sm:$0xf] %v1405
  %1534 = vst [vmem:[%s4 + $0x50] sm:$0xf] %v1406
  %1535 = vst [vmem:[%s4 + $0x58] sm:$0xf] %v1407
  %1536 = vst [vmem:[%s4 + $0x60] sm:$0xf] %v1408
  %1537 = vst [vmem:[%s4 + $0x68] sm:$0xf] %v1409
  %1538 = vst [vmem:[%s4 + $0x70] sm:$0xf] %v1410
  %1539 = vst [vmem:[%s4 + $0x78] sm:$0xf] %v1411
  %1540 = vst [vmem:[%s4 + $0x80] sm:$0xf] %v1412
  %1541 = vst [vmem:[%s4 + $0x88] sm:$0xf] %v1413
  %1542 = vst [vmem:[%s4 + $0x90] sm:$0xf] %v1414
  %1543 = vst [vmem:[%s4 + $0x98] sm:$0xf] %v1415
  %1544 = vst [vmem:[%s4 + $0xa0] sm:$0xf] %v1416
  %1545 = vst [vmem:[%s4 + $0xa8] sm:$0xf] %v1417
  %1546 = vst [vmem:[%s4 + $0xb0] sm:$0xf] %v1418
  %1547 = vst [vmem:[%s4 + $0xb8] sm:$0xf] %v1419
  %1548 = vst [vmem:[%s4 + $0xc0] sm:$0xf] %v1420
  %1549 = vst [vmem:[%s4 + $0xc8] sm:$0xf] %v1421
  %1550 = vst [vmem:[%s4 + $0xd0] sm:$0xf] %v1422
  %1551 = vst [vmem:[%s4 + $0xd8] sm:$0xf] %v1423
  %1552 = vst [vmem:[%s4 + $0xe0] sm:$0xf] %v1424
  %1553 = vst [vmem:[%s4 + $0xe8] sm:$0xf] %v1425
  %1554 = vst [vmem:[%s4 + $0xf0] sm:$0xf] %v1426
  %1555 = vst [vmem:[%s4 + $0xf8] sm:$0xf] %v1427
  %1556 = vst [vmem:[%s4 + $0x100] sm:$0xf] %v1428
  %1557 = vst [vmem:[%s4 + $0x108] sm:$0xf] %v1429
  %1558 = vst [vmem:[%s4 + $0x110] sm:$0xf] %v1430
  %1559 = vst [vmem:[%s4 + $0x118] sm:$0xf] %v1431
  %1560 = vst [vmem:[%s4 + $0x120] sm:$0xf] %v1432
  %1561 = vst [vmem:[%s4 + $0x128] sm:$0xf] %v1433
  %1562 = vst [vmem:[%s4 + $0x130] sm:$0xf] %v1434
  %1563 = vst [vmem:[%s4 + $0x138] sm:$0xf] %v1435
  %1564 = vst [vmem:[%s4 + $0x140] sm:$0xf] %v1436
  %1565 = vst [vmem:[%s4 + $0x148] sm:$0xf] %v1437
  %1566 = vst [vmem:[%s4 + $0x150] sm:$0xf] %v1438
  %1567 = vst [vmem:[%s4 + $0x158] sm:$0xf] %v1439
  %1568 = vst [vmem:[%s4 + $0x160] sm:$0xf] %v1440
  %1569 = vst [vmem:[%s4 + $0x168] sm:$0xf] %v1441
  %1570 = vst [vmem:[%s4 + $0x170] sm:$0xf] %v1442
  %1571 = vst [vmem:[%s4 + $0x178] sm:$0xf] %v1443
  %1572 = vst [vmem:[%s4 + $0x180] sm:$0xf] %v1444
  %1573 = vst [vmem:[%s4 + $0x188] sm:$0xf] %v1445
  %1574 = vst [vmem:[%s4 + $0x190] sm:$0xf] %v1446
  %1575 = vst [vmem:[%s4 + $0x198] sm:$0xf] %v1447
  %1576 = vst [vmem:[%s4 + $0x1a0] sm:$0xf] %v1448
  %1577 = vst [vmem:[%s4 + $0x1a8] sm:$0xf] %v1449
  %1578 = vst [vmem:[%s4 + $0x1b0] sm:$0xf] %v1450
  %1579 = vst [vmem:[%s4 + $0x1b8] sm:$0xf] %v1451
  %1580 = vst [vmem:[%s4 + $0x1c0] sm:$0xf] %v1452
  %1581 = vst [vmem:[%s4 + $0x1c8] sm:$0xf] %v1453
  %1582 = vst [vmem:[%s4 + $0x1d0] sm:$0xf] %v1454
  %1583 = vst [vmem:[%s4 + $0x1d8] sm:$0xf] %v1455
  %1584 = vst [vmem:[%s4 + $0x1e0] sm:$0xf] %v1456
  %1585 = vst [vmem:[%s4 + $0x1e8] sm:$0xf] %v1457
  %1586 = vst [vmem:[%s4 + $0x1f0] sm:$0xf] %v1458
  %1587 = vst [vmem:[%s4 + $0x1f8] sm:$0xf] %v1459
  %v1588 = vpack.c.bf16 %v1017, %v1014
  %v1589 = vpack.c.bf16 %v1025, %v1022
  %v1590 = vpack.c.bf16 %v1033, %v1030
  %v1591 = vpack.c.bf16 %v1041, %v1038
  %v1592 = vpack.c.bf16 %v1049, %v1046
  %v1593 = vpack.c.bf16 %v1057, %v1054
  %v1594 = vpack.c.bf16 %v1065, %v1062
  %v1595 = vpack.c.bf16 %v1073, %v1070
  %v1596 = vpack.c.bf16 %v1081, %v1078
  %v1597 = vpack.c.bf16 %v1089, %v1086
  %v1598 = vpack.c.bf16 %v1097, %v1094
  %v1599 = vpack.c.bf16 %v1105, %v1102
  %v1600 = vpack.c.bf16 %v1113, %v1110
  %v1601 = vpack.c.bf16 %v1121, %v1118
  %v1602 = vpack.c.bf16 %v1129, %v1126
  %v1603 = vpack.c.bf16 %v1137, %v1134
  %v1604 = vpack.c.bf16 %v1145, %v1142
  %v1605 = vpack.c.bf16 %v1153, %v1150
  %v1606 = vpack.c.bf16 %v1161, %v1158
  %v1607 = vpack.c.bf16 %v1169, %v1166
  %v1608 = vpack.c.bf16 %v1177, %v1174
  %v1609 = vpack.c.bf16 %v1185, %v1182
  %v1610 = vpack.c.bf16 %v1193, %v1190
  %v1611 = vpack.c.bf16 %v1201, %v1198
  %v1612 = vpack.c.bf16 %v1209, %v1206
  %v1613 = vpack.c.bf16 %v1217, %v1214
  %v1614 = vpack.c.bf16 %v1225, %v1222
  %v1615 = vpack.c.bf16 %v1233, %v1230
  %v1616 = vpack.c.bf16 %v1241, %v1238
  %v1617 = vpack.c.bf16 %v1249, %v1246
  %v1618 = vpack.c.bf16 %v1257, %v1254
  %v1619 = vpack.c.bf16 %v1265, %v1262
  %v1652 = vunpack.c.l.b16 %v1588
  %v1653 = vunpack.c.h.b16 %v1588
  %v1654 = vunpack.c.l.b16 %v1589
  %v1655 = vunpack.c.h.b16 %v1589
  %v1656 = vunpack.c.l.b16 %v1590
  %v1657 = vunpack.c.h.b16 %v1590
  %v1658 = vunpack.c.l.b16 %v1591
  %v1659 = vunpack.c.h.b16 %v1591
  %v1660 = vunpack.c.l.b16 %v1592
  %v1661 = vunpack.c.h.b16 %v1592
  %v1662 = vunpack.c.l.b16 %v1593
  %v1663 = vunpack.c.h.b16 %v1593
  %v1664 = vunpack.c.l.b16 %v1594
  %v1665 = vunpack.c.h.b16 %v1594
  %v1666 = vunpack.c.l.b16 %v1595
  %v1667 = vunpack.c.h.b16 %v1595
  %v1668 = vunpack.c.l.b16 %v1596
  %v1669 = vunpack.c.h.b16 %v1596
  %v1670 = vunpack.c.l.b16 %v1597
  %v1671 = vunpack.c.h.b16 %v1597
  %v1672 = vunpack.c.l.b16 %v1598
  %v1673 = vunpack.c.h.b16 %v1598
  %v1674 = vunpack.c.l.b16 %v1599
  %v1675 = vunpack.c.h.b16 %v1599
  %v1676 = vunpack.c.l.b16 %v1600
  %v1677 = vunpack.c.h.b16 %v1600
  %v1678 = vunpack.c.l.b16 %v1601
  %v1679 = vunpack.c.h.b16 %v1601
  %v1680 = vunpack.c.l.b16 %v1602
  %v1681 = vunpack.c.h.b16 %v1602
  %v1682 = vunpack.c.l.b16 %v1603
  %v1683 = vunpack.c.h.b16 %v1603
  %v1684 = vunpack.c.l.b16 %v1604
  %v1685 = vunpack.c.h.b16 %v1604
  %v1686 = vunpack.c.l.b16 %v1605
  %v1687 = vunpack.c.h.b16 %v1605
  %v1688 = vunpack.c.l.b16 %v1606
  %v1689 = vunpack.c.h.b16 %v1606
  %v1690 = vunpack.c.l.b16 %v1607
  %v1691 = vunpack.c.h.b16 %v1607
  %v1692 = vunpack.c.l.b16 %v1608
  %v1693 = vunpack.c.h.b16 %v1608
  %v1694 = vunpack.c.l.b16 %v1609
  %v1695 = vunpack.c.h.b16 %v1609
  %v1696 = vunpack.c.l.b16 %v1610
  %v1697 = vunpack.c.h.b16 %v1610
  %v1698 = vunpack.c.l.b16 %v1611
  %v1699 = vunpack.c.h.b16 %v1611
  %v1700 = vunpack.c.l.b16 %v1612
  %v1701 = vunpack.c.h.b16 %v1612
  %v1702 = vunpack.c.l.b16 %v1613
  %v1703 = vunpack.c.h.b16 %v1613
  %v1704 = vunpack.c.l.b16 %v1614
  %v1705 = vunpack.c.h.b16 %v1614
  %v1706 = vunpack.c.l.b16 %v1615
  %v1707 = vunpack.c.h.b16 %v1615
  %v1708 = vunpack.c.l.b16 %v1616
  %v1709 = vunpack.c.h.b16 %v1616
  %v1710 = vunpack.c.l.b16 %v1617
  %v1711 = vunpack.c.h.b16 %v1617
  %v1712 = vunpack.c.l.b16 %v1618
  %v1713 = vunpack.c.h.b16 %v1618
  %v1714 = vunpack.c.l.b16 %v1619
  %v1715 = vunpack.c.h.b16 %v1619
  %v1716 = vpack.c.b16 %v1652, %v1652
  %v1717 = vpack.c.b16 %v1653, %v1653
  %v1718 = vpack.c.b16 %v1654, %v1654
  %v1719 = vpack.c.b16 %v1655, %v1655
  %v1720 = vpack.c.b16 %v1656, %v1656
  %v1721 = vpack.c.b16 %v1657, %v1657
  %v1722 = vpack.c.b16 %v1658, %v1658
  %v1723 = vpack.c.b16 %v1659, %v1659
  %v1724 = vpack.c.b16 %v1660, %v1660
  %v1725 = vpack.c.b16 %v1661, %v1661
  %v1726 = vpack.c.b16 %v1662, %v1662
  %v1727 = vpack.c.b16 %v1663, %v1663
  %v1728 = vpack.c.b16 %v1664, %v1664
  %v1729 = vpack.c.b16 %v1665, %v1665
  %v1730 = vpack.c.b16 %v1666, %v1666
  %v1731 = vpack.c.b16 %v1667, %v1667
  %v1732 = vpack.c.b16 %v1668, %v1668
  %v1733 = vpack.c.b16 %v1669, %v1669
  %v1734 = vpack.c.b16 %v1670, %v1670
  %v1735 = vpack.c.b16 %v1671, %v1671
  %v1736 = vpack.c.b16 %v1672, %v1672
  %v1737 = vpack.c.b16 %v1673, %v1673
  %v1738 = vpack.c.b16 %v1674, %v1674
  %v1739 = vpack.c.b16 %v1675, %v1675
  %v1740 = vpack.c.b16 %v1676, %v1676
  %v1741 = vpack.c.b16 %v1677, %v1677
  %v1742 = vpack.c.b16 %v1678, %v1678
  %v1743 = vpack.c.b16 %v1679, %v1679
  %v1744 = vpack.c.b16 %v1680, %v1680
  %v1745 = vpack.c.b16 %v1681, %v1681
  %v1746 = vpack.c.b16 %v1682, %v1682
  %v1747 = vpack.c.b16 %v1683, %v1683
  %v1748 = vpack.c.b16 %v1684, %v1684
  %v1749 = vpack.c.b16 %v1685, %v1685
  %v1750 = vpack.c.b16 %v1686, %v1686
  %v1751 = vpack.c.b16 %v1687, %v1687
  %v1752 = vpack.c.b16 %v1688, %v1688
  %v1753 = vpack.c.b16 %v1689, %v1689
  %v1754 = vpack.c.b16 %v1690, %v1690
  %v1755 = vpack.c.b16 %v1691, %v1691
  %v1756 = vpack.c.b16 %v1692, %v1692
  %v1757 = vpack.c.b16 %v1693, %v1693
  %v1758 = vpack.c.b16 %v1694, %v1694
  %v1759 = vpack.c.b16 %v1695, %v1695
  %v1760 = vpack.c.b16 %v1696, %v1696
  %v1761 = vpack.c.b16 %v1697, %v1697
  %v1762 = vpack.c.b16 %v1698, %v1698
  %v1763 = vpack.c.b16 %v1699, %v1699
  %v1764 = vpack.c.b16 %v1700, %v1700
  %v1765 = vpack.c.b16 %v1701, %v1701
  %v1766 = vpack.c.b16 %v1702, %v1702
  %v1767 = vpack.c.b16 %v1703, %v1703
  %v1768 = vpack.c.b16 %v1704, %v1704
  %v1769 = vpack.c.b16 %v1705, %v1705
  %v1770 = vpack.c.b16 %v1706, %v1706
  %v1771 = vpack.c.b16 %v1707, %v1707
  %v1772 = vpack.c.b16 %v1708, %v1708
  %v1773 = vpack.c.b16 %v1709, %v1709
  %v1774 = vpack.c.b16 %v1710, %v1710
  %v1775 = vpack.c.b16 %v1711, %v1711
  %v1776 = vpack.c.b16 %v1712, %v1712
  %v1777 = vpack.c.b16 %v1713, %v1713
  %v1778 = vpack.c.b16 %v1714, %v1714
  %v1779 = vpack.c.b16 %v1715, %v1715
  %1844 = vst [vmem:[%s4 + $0x4] sm:$0xf] %v1716
  %1845 = vst [vmem:[%s4 + $0xc] sm:$0xf] %v1717
  %1846 = vst [vmem:[%s4 + $0x14] sm:$0xf] %v1718
  %1847 = vst [vmem:[%s4 + $0x1c] sm:$0xf] %v1719
  %1848 = vst [vmem:[%s4 + $0x24] sm:$0xf] %v1720
  %1849 = vst [vmem:[%s4 + $0x2c] sm:$0xf] %v1721
  %1850 = vst [vmem:[%s4 + $0x34] sm:$0xf] %v1722
  %1851 = vst [vmem:[%s4 + $0x3c] sm:$0xf] %v1723
  %1852 = vst [vmem:[%s4 + $0x44] sm:$0xf] %v1724
  %1853 = vst [vmem:[%s4 + $0x4c] sm:$0xf] %v1725
  %1854 = vst [vmem:[%s4 + $0x54] sm:$0xf] %v1726
  %1855 = vst [vmem:[%s4 + $0x5c] sm:$0xf] %v1727
  %1856 = vst [vmem:[%s4 + $0x64] sm:$0xf] %v1728
  %1857 = vst [vmem:[%s4 + $0x6c] sm:$0xf] %v1729
  %1858 = vst [vmem:[%s4 + $0x74] sm:$0xf] %v1730
  %1859 = vst [vmem:[%s4 + $0x7c] sm:$0xf] %v1731
  %1860 = vst [vmem:[%s4 + $0x84] sm:$0xf] %v1732
  %1861 = vst [vmem:[%s4 + $0x8c] sm:$0xf] %v1733
  %1862 = vst [vmem:[%s4 + $0x94] sm:$0xf] %v1734
  %1863 = vst [vmem:[%s4 + $0x9c] sm:$0xf] %v1735
  %1864 = vst [vmem:[%s4 + $0xa4] sm:$0xf] %v1736
  %1865 = vst [vmem:[%s4 + $0xac] sm:$0xf] %v1737
  %1866 = vst [vmem:[%s4 + $0xb4] sm:$0xf] %v1738
  %1867 = vst [vmem:[%s4 + $0xbc] sm:$0xf] %v1739
  %1868 = vst [vmem:[%s4 + $0xc4] sm:$0xf] %v1740
  %1869 = vst [vmem:[%s4 + $0xcc] sm:$0xf] %v1741
  %1870 = vst [vmem:[%s4 + $0xd4] sm:$0xf] %v1742
  %1871 = vst [vmem:[%s4 + $0xdc] sm:$0xf] %v1743
  %1872 = vst [vmem:[%s4 + $0xe4] sm:$0xf] %v1744
  %1873 = vst [vmem:[%s4 + $0xec] sm:$0xf] %v1745
  %1874 = vst [vmem:[%s4 + $0xf4] sm:$0xf] %v1746
  %1875 = vst [vmem:[%s4 + $0xfc] sm:$0xf] %v1747
  %1876 = vst [vmem:[%s4 + $0x104] sm:$0xf] %v1748
  %1877 = vst [vmem:[%s4 + $0x10c] sm:$0xf] %v1749
  %1878 = vst [vmem:[%s4 + $0x114] sm:$0xf] %v1750
  %1879 = vst [vmem:[%s4 + $0x11c] sm:$0xf] %v1751
  %1880 = vst [vmem:[%s4 + $0x124] sm:$0xf] %v1752
  %1881 = vst [vmem:[%s4 + $0x12c] sm:$0xf] %v1753
  %1882 = vst [vmem:[%s4 + $0x134] sm:$0xf] %v1754
  %1883 = vst [vmem:[%s4 + $0x13c] sm:$0xf] %v1755
  %1884 = vst [vmem:[%s4 + $0x144] sm:$0xf] %v1756
  %1885 = vst [vmem:[%s4 + $0x14c] sm:$0xf] %v1757
  %1886 = vst [vmem:[%s4 + $0x154] sm:$0xf] %v1758
  %1887 = vst [vmem:[%s4 + $0x15c] sm:$0xf] %v1759
  %1888 = vst [vmem:[%s4 + $0x164] sm:$0xf] %v1760
  %1889 = vst [vmem:[%s4 + $0x16c] sm:$0xf] %v1761
  %1890 = vst [vmem:[%s4 + $0x174] sm:$0xf] %v1762
  %1891 = vst [vmem:[%s4 + $0x17c] sm:$0xf] %v1763
  %1892 = vst [vmem:[%s4 + $0x184] sm:$0xf] %v1764
  %1893 = vst [vmem:[%s4 + $0x18c] sm:$0xf] %v1765
  %1894 = vst [vmem:[%s4 + $0x194] sm:$0xf] %v1766
  %1895 = vst [vmem:[%s4 + $0x19c] sm:$0xf] %v1767
  %1896 = vst [vmem:[%s4 + $0x1a4] sm:$0xf] %v1768
  %1897 = vst [vmem:[%s4 + $0x1ac] sm:$0xf] %v1769
  %1898 = vst [vmem:[%s4 + $0x1b4] sm:$0xf] %v1770
  %1899 = vst [vmem:[%s4 + $0x1bc] sm:$0xf] %v1771
  %1900 = vst [vmem:[%s4 + $0x1c4] sm:$0xf] %v1772
  %1901 = vst [vmem:[%s4 + $0x1cc] sm:$0xf] %v1773
  %1902 = vst [vmem:[%s4 + $0x1d4] sm:$0xf] %v1774
  %1903 = vst [vmem:[%s4 + $0x1dc] sm:$0xf] %v1775
  %1904 = vst [vmem:[%s4 + $0x1e4] sm:$0xf] %v1776
  %1905 = vst [vmem:[%s4 + $0x1ec] sm:$0xf] %v1777
  %1906 = vst [vmem:[%s4 + $0x1f4] sm:$0xf] %v1778
  %1907 = vst [vmem:[%s4 + $0x1fc] sm:$0xf] %v1779
  // Predicated region
  $region18: #{dgi_forward.4} parent=0 // pred_check
    _
  $region19: #{dgi_forward.4} parent=0 // pred_check_branch
    %1909 = sbr.rel (0) target = $region21
  $region20: #{dgi_forward.4} parent=0 // pred_region
    _
  $region21: #{dgi_forward.4} parent=0 // pred_fallthru
    _
  // Predicated region
  $region22: #{dgi_forward.4} parent=0 // pred_check
    _
  $region23: #{dgi_forward.4} parent=0 // pred_check_branch
    %1911 = sbr.rel (0) target = $region25
  $region24: #{dgi_forward.4} parent=0 // pred_region
    _
  $region25: #{dgi_forward.4} parent=0 // pred_fallthru
    _

// kernel: dgi_forward.5
$region0: #{dgi_forward.5}
  #allocation0 [shape = 'u32[]', space=smem, size = 0x4, offset = 0x4, fixed_abs, tag = 'smem constant byte address 0x4 - core index']
  #allocation1 [shape = 'u32[144,128]{1,0:T(1,128)}', space=vmem, size = 0x12000, scoped, tag = 'internal scratch']
  #allocation2 [shape = 'f32[1]{0:T(128)S(6)}', space=smem, size = 0x200, scoped, tag = 'scoped memory for dgi_forward.5']
  %s0 = inlined_call_operand.vmem [shape: bf16[512,512], index: 0, kind: input, shape index: {}]
  %s1 = inlined_call_operand.vmem [shape: bf16[512,256], index: 1, kind: input, shape index: {}]
  %s2 = inlined_call_operand.<no memory space> [shape: f32[1], index: 2, kind: input, shape index: {}]
  %s3 = inlined_call_operand.vmem [shape: bf16[512,256], index: 3, kind: output, shape index: {}]
  %s4 = sld [smem:[#allocation0]]
  $region22: #{dgi_forward.5} parent=0
    _
  %s6 = ssub.s32 1, %s4
  %s7 = scalar_select 0, %s6, %s4
  %8 = sst [smem:[#allocation2]] %s2
  // Predicated region
  $region2: #{dgi_forward.5} parent=0 // pred_check
    _
  $region3: #{dgi_forward.5} parent=0 // pred_check_branch
    %10 = sbr.rel (0) target = $region5
  $region4: #{dgi_forward.5} parent=0 // pred_region
    _
  $region5: #{dgi_forward.5} parent=0 // pred_fallthru
    _
  // Predicated region
  $region6: #{dgi_forward.5} parent=0 // pred_check
    _
  $region7: #{dgi_forward.5} parent=0 // pred_check_branch
    %12 = sbr.rel (0) target = $region9
  $region8: #{dgi_forward.5} parent=0 // pred_region
    _
  $region9: #{dgi_forward.5} parent=0 // pred_fallthru
    _
  // Predicated region
  $region10: #{dgi_forward.5} parent=0 // pred_check
    _
  $region11: #{dgi_forward.5} parent=0 // pred_check_branch
    %14 = sbr.rel (0) target = $region13
  $region12: #{dgi_forward.5} parent=0 // pred_region
    _
  $region13: #{dgi_forward.5} parent=0 // pred_fallthru
    _
  %v15 = vld [vmem:[%s0] sm:$0xff]
  %v16 = vld [vmem:[%s0 + $0x8] sm:$0xff]
  %v17 = vld [vmem:[%s0 + $0x10] sm:$0xff]
  %v18 = vld [vmem:[%s0 + $0x18] sm:$0xff]
  %v19 = vld [vmem:[%s0 + $0x20] sm:$0xff]
  %v20 = vld [vmem:[%s0 + $0x28] sm:$0xff]
  %v21 = vld [vmem:[%s0 + $0x30] sm:$0xff]
  %v22 = vld [vmem:[%s0 + $0x38] sm:$0xff]
  %v23 = vld [vmem:[%s0 + $0x40] sm:$0xff]
  %v24 = vld [vmem:[%s0 + $0x48] sm:$0xff]
  %v25 = vld [vmem:[%s0 + $0x50] sm:$0xff]
  %v26 = vld [vmem:[%s0 + $0x58] sm:$0xff]
  %v27 = vld [vmem:[%s0 + $0x60] sm:$0xff]
  %v28 = vld [vmem:[%s0 + $0x68] sm:$0xff]
  %v29 = vld [vmem:[%s0 + $0x70] sm:$0xff]
  %v30 = vld [vmem:[%s0 + $0x78] sm:$0xff]
  %v31 = vld [vmem:[%s0 + $0x80] sm:$0xff]
  %v32 = vld [vmem:[%s0 + $0x88] sm:$0xff]
  %v33 = vld [vmem:[%s0 + $0x90] sm:$0xff]
  %v34 = vld [vmem:[%s0 + $0x98] sm:$0xff]
  %v35 = vld [vmem:[%s0 + $0xa0] sm:$0xff]
  %v36 = vld [vmem:[%s0 + $0xa8] sm:$0xff]
  %v37 = vld [vmem:[%s0 + $0xb0] sm:$0xff]
  %v38 = vld [vmem:[%s0 + $0xb8] sm:$0xff]
  %v39 = vld [vmem:[%s0 + $0xc0] sm:$0xff]
  %v40 = vld [vmem:[%s0 + $0xc8] sm:$0xff]
  %v41 = vld [vmem:[%s0 + $0xd0] sm:$0xff]
  %v42 = vld [vmem:[%s0 + $0xd8] sm:$0xff]
  %v43 = vld [vmem:[%s0 + $0xe0] sm:$0xff]
  %v44 = vld [vmem:[%s0 + $0xe8] sm:$0xff]
  %v45 = vld [vmem:[%s0 + $0xf0] sm:$0xff]
  %v46 = vld [vmem:[%s0 + $0xf8] sm:$0xff]
  %v47 = vld [vmem:[%s0 + $0x100] sm:$0xff]
  %v48 = vld [vmem:[%s0 + $0x108] sm:$0xff]
  %v49 = vld [vmem:[%s0 + $0x110] sm:$0xff]
  %v50 = vld [vmem:[%s0 + $0x118] sm:$0xff]
  %v51 = vld [vmem:[%s0 + $0x120] sm:$0xff]
  %v52 = vld [vmem:[%s0 + $0x128] sm:$0xff]
  %v53 = vld [vmem:[%s0 + $0x130] sm:$0xff]
  %v54 = vld [vmem:[%s0 + $0x138] sm:$0xff]
  %v55 = vld [vmem:[%s0 + $0x140] sm:$0xff]
  %v56 = vld [vmem:[%s0 + $0x148] sm:$0xff]
  %v57 = vld [vmem:[%s0 + $0x150] sm:$0xff]
  %v58 = vld [vmem:[%s0 + $0x158] sm:$0xff]
  %v59 = vld [vmem:[%s0 + $0x160] sm:$0xff]
  %v60 = vld [vmem:[%s0 + $0x168] sm:$0xff]
  %v61 = vld [vmem:[%s0 + $0x170] sm:$0xff]
  %v62 = vld [vmem:[%s0 + $0x178] sm:$0xff]
  %v63 = vld [vmem:[%s0 + $0x180] sm:$0xff]
  %v64 = vld [vmem:[%s0 + $0x188] sm:$0xff]
  %v65 = vld [vmem:[%s0 + $0x190] sm:$0xff]
  %v66 = vld [vmem:[%s0 + $0x198] sm:$0xff]
  %v67 = vld [vmem:[%s0 + $0x1a0] sm:$0xff]
  %v68 = vld [vmem:[%s0 + $0x1a8] sm:$0xff]
  %v69 = vld [vmem:[%s0 + $0x1b0] sm:$0xff]
  %v70 = vld [vmem:[%s0 + $0x1b8] sm:$0xff]
  %v71 = vld [vmem:[%s0 + $0x1c0] sm:$0xff]
  %v72 = vld [vmem:[%s0 + $0x1c8] sm:$0xff]
  %v73 = vld [vmem:[%s0 + $0x1d0] sm:$0xff]
  %v74 = vld [vmem:[%s0 + $0x1d8] sm:$0xff]
  %v75 = vld [vmem:[%s0 + $0x1e0] sm:$0xff]
  %v76 = vld [vmem:[%s0 + $0x1e8] sm:$0xff]
  %v77 = vld [vmem:[%s0 + $0x1f0] sm:$0xff]
  %v78 = vld [vmem:[%s0 + $0x1f8] sm:$0xff]
  %v79 = vld [vmem:[%s0 + $0x200] sm:$0xff]
  %v80 = vld [vmem:[%s0 + $0x208] sm:$0xff]
  %v81 = vld [vmem:[%s0 + $0x210] sm:$0xff]
  %v82 = vld [vmem:[%s0 + $0x218] sm:$0xff]
  %v83 = vld [vmem:[%s0 + $0x220] sm:$0xff]
  %v84 = vld [vmem:[%s0 + $0x228] sm:$0xff]
  %v85 = vld [vmem:[%s0 + $0x230] sm:$0xff]
  %v86 = vld [vmem:[%s0 + $0x238] sm:$0xff]
  %v87 = vld [vmem:[%s0 + $0x240] sm:$0xff]
  %v88 = vld [vmem:[%s0 + $0x248] sm:$0xff]
  %v89 = vld [vmem:[%s0 + $0x250] sm:$0xff]
  %v90 = vld [vmem:[%s0 + $0x258] sm:$0xff]
  %v91 = vld [vmem:[%s0 + $0x260] sm:$0xff]
  %v92 = vld [vmem:[%s0 + $0x268] sm:$0xff]
  %v93 = vld [vmem:[%s0 + $0x270] sm:$0xff]
  %v94 = vld [vmem:[%s0 + $0x278] sm:$0xff]
  %v95 = vld [vmem:[%s0 + $0x280] sm:$0xff]
  %v96 = vld [vmem:[%s0 + $0x288] sm:$0xff]
  %v97 = vld [vmem:[%s0 + $0x290] sm:$0xff]
  %v98 = vld [vmem:[%s0 + $0x298] sm:$0xff]
  %v99 = vld [vmem:[%s0 + $0x2a0] sm:$0xff]
  %v100 = vld [vmem:[%s0 + $0x2a8] sm:$0xff]
  %v101 = vld [vmem:[%s0 + $0x2b0] sm:$0xff]
  %v102 = vld [vmem:[%s0 + $0x2b8] sm:$0xff]
  %v103 = vld [vmem:[%s0 + $0x2c0] sm:$0xff]
  %v104 = vld [vmem:[%s0 + $0x2c8] sm:$0xff]
  %v105 = vld [vmem:[%s0 + $0x2d0] sm:$0xff]
  %v106 = vld [vmem:[%s0 + $0x2d8] sm:$0xff]
  %v107 = vld [vmem:[%s0 + $0x2e0] sm:$0xff]
  %v108 = vld [vmem:[%s0 + $0x2e8] sm:$0xff]
  %v109 = vld [vmem:[%s0 + $0x2f0] sm:$0xff]
  %v110 = vld [vmem:[%s0 + $0x2f8] sm:$0xff]
  %v111 = vld [vmem:[%s0 + $0x300] sm:$0xff]
  %v112 = vld [vmem:[%s0 + $0x308] sm:$0xff]
  %v113 = vld [vmem:[%s0 + $0x310] sm:$0xff]
  %v114 = vld [vmem:[%s0 + $0x318] sm:$0xff]
  %v115 = vld [vmem:[%s0 + $0x320] sm:$0xff]
  %v116 = vld [vmem:[%s0 + $0x328] sm:$0xff]
  %v117 = vld [vmem:[%s0 + $0x330] sm:$0xff]
  %v118 = vld [vmem:[%s0 + $0x338] sm:$0xff]
  %v119 = vld [vmem:[%s0 + $0x340] sm:$0xff]
  %v120 = vld [vmem:[%s0 + $0x348] sm:$0xff]
  %v121 = vld [vmem:[%s0 + $0x350] sm:$0xff]
  %v122 = vld [vmem:[%s0 + $0x358] sm:$0xff]
  %v123 = vld [vmem:[%s0 + $0x360] sm:$0xff]
  %v124 = vld [vmem:[%s0 + $0x368] sm:$0xff]
  %v125 = vld [vmem:[%s0 + $0x370] sm:$0xff]
  %v126 = vld [vmem:[%s0 + $0x378] sm:$0xff]
  %v127 = vld [vmem:[%s0 + $0x380] sm:$0xff]
  %v128 = vld [vmem:[%s0 + $0x388] sm:$0xff]
  %v129 = vld [vmem:[%s0 + $0x390] sm:$0xff]
  %v130 = vld [vmem:[%s0 + $0x398] sm:$0xff]
  %v131 = vld [vmem:[%s0 + $0x3a0] sm:$0xff]
  %v132 = vld [vmem:[%s0 + $0x3a8] sm:$0xff]
  %v133 = vld [vmem:[%s0 + $0x3b0] sm:$0xff]
  %v134 = vld [vmem:[%s0 + $0x3b8] sm:$0xff]
  %v135 = vld [vmem:[%s0 + $0x3c0] sm:$0xff]
  %v136 = vld [vmem:[%s0 + $0x3c8] sm:$0xff]
  %v137 = vld [vmem:[%s0 + $0x3d0] sm:$0xff]
  %v138 = vld [vmem:[%s0 + $0x3d8] sm:$0xff]
  %v139 = vld [vmem:[%s0 + $0x3e0] sm:$0xff]
  %v140 = vld [vmem:[%s0 + $0x3e8] sm:$0xff]
  %v141 = vld [vmem:[%s0 + $0x3f0] sm:$0xff]
  %v142 = vld [vmem:[%s0 + $0x3f8] sm:$0xff]
  %v143 = vld [vmem:[%s1] sm:$0xff]
  %v144 = vld [vmem:[%s1 + $0x8] sm:$0xff]
  %v145 = vld [vmem:[%s1 + $0x10] sm:$0xff]
  %v146 = vld [vmem:[%s1 + $0x18] sm:$0xff]
  %v147 = vld [vmem:[%s1 + $0x20] sm:$0xff]
  %v148 = vld [vmem:[%s1 + $0x28] sm:$0xff]
  %v149 = vld [vmem:[%s1 + $0x30] sm:$0xff]
  %v150 = vld [vmem:[%s1 + $0x38] sm:$0xff]
  %v151 = vld [vmem:[%s1 + $0x40] sm:$0xff]
  %v152 = vld [vmem:[%s1 + $0x48] sm:$0xff]
  %v153 = vld [vmem:[%s1 + $0x50] sm:$0xff]
  %v154 = vld [vmem:[%s1 + $0x58] sm:$0xff]
  %v155 = vld [vmem:[%s1 + $0x60] sm:$0xff]
  %v156 = vld [vmem:[%s1 + $0x68] sm:$0xff]
  %v157 = vld [vmem:[%s1 + $0x70] sm:$0xff]
  %v158 = vld [vmem:[%s1 + $0x78] sm:$0xff]
  %v159 = vld [vmem:[%s1 + $0x80] sm:$0xff]
  %v160 = vld [vmem:[%s1 + $0x88] sm:$0xff]
  %v161 = vld [vmem:[%s1 + $0x90] sm:$0xff]
  %v162 = vld [vmem:[%s1 + $0x98] sm:$0xff]
  %v163 = vld [vmem:[%s1 + $0xa0] sm:$0xff]
  %v164 = vld [vmem:[%s1 + $0xa8] sm:$0xff]
  %v165 = vld [vmem:[%s1 + $0xb0] sm:$0xff]
  %v166 = vld [vmem:[%s1 + $0xb8] sm:$0xff]
  %v167 = vld [vmem:[%s1 + $0xc0] sm:$0xff]
  %v168 = vld [vmem:[%s1 + $0xc8] sm:$0xff]
  %v169 = vld [vmem:[%s1 + $0xd0] sm:$0xff]
  %v170 = vld [vmem:[%s1 + $0xd8] sm:$0xff]
  %v171 = vld [vmem:[%s1 + $0xe0] sm:$0xff]
  %v172 = vld [vmem:[%s1 + $0xe8] sm:$0xff]
  %v173 = vld [vmem:[%s1 + $0xf0] sm:$0xff]
  %v174 = vld [vmem:[%s1 + $0xf8] sm:$0xff]
  %v175 = vld [vmem:[%s1 + $0x100] sm:$0xff]
  %v176 = vld [vmem:[%s1 + $0x108] sm:$0xff]
  %v177 = vld [vmem:[%s1 + $0x110] sm:$0xff]
  %v178 = vld [vmem:[%s1 + $0x118] sm:$0xff]
  %v179 = vld [vmem:[%s1 + $0x120] sm:$0xff]
  %v180 = vld [vmem:[%s1 + $0x128] sm:$0xff]
  %v181 = vld [vmem:[%s1 + $0x130] sm:$0xff]
  %v182 = vld [vmem:[%s1 + $0x138] sm:$0xff]
  %v183 = vld [vmem:[%s1 + $0x140] sm:$0xff]
  %v184 = vld [vmem:[%s1 + $0x148] sm:$0xff]
  %v185 = vld [vmem:[%s1 + $0x150] sm:$0xff]
  %v186 = vld [vmem:[%s1 + $0x158] sm:$0xff]
  %v187 = vld [vmem:[%s1 + $0x160] sm:$0xff]
  %v188 = vld [vmem:[%s1 + $0x168] sm:$0xff]
  %v189 = vld [vmem:[%s1 + $0x170] sm:$0xff]
  %v190 = vld [vmem:[%s1 + $0x178] sm:$0xff]
  %v191 = vld [vmem:[%s1 + $0x180] sm:$0xff]
  %v192 = vld [vmem:[%s1 + $0x188] sm:$0xff]
  %v193 = vld [vmem:[%s1 + $0x190] sm:$0xff]
  %v194 = vld [vmem:[%s1 + $0x198] sm:$0xff]
  %v195 = vld [vmem:[%s1 + $0x1a0] sm:$0xff]
  %v196 = vld [vmem:[%s1 + $0x1a8] sm:$0xff]
  %v197 = vld [vmem:[%s1 + $0x1b0] sm:$0xff]
  %v198 = vld [vmem:[%s1 + $0x1b8] sm:$0xff]
  %v199 = vld [vmem:[%s1 + $0x1c0] sm:$0xff]
  %v200 = vld [vmem:[%s1 + $0x1c8] sm:$0xff]
  %v201 = vld [vmem:[%s1 + $0x1d0] sm:$0xff]
  %v202 = vld [vmem:[%s1 + $0x1d8] sm:$0xff]
  %v203 = vld [vmem:[%s1 + $0x1e0] sm:$0xff]
  %v204 = vld [vmem:[%s1 + $0x1e8] sm:$0xff]
  %v205 = vld [vmem:[%s1 + $0x1f0] sm:$0xff]
  %v206 = vld [vmem:[%s1 + $0x1f8] sm:$0xff]
  %v335 = vunpack.c.l.b16 %v15
  %v336 = vunpack.c.h.b16 %v15
  %v337 = vunpack.c.l.b16 %v16
  %v338 = vunpack.c.h.b16 %v16
  %v339 = vunpack.c.l.b16 %v17
  %v340 = vunpack.c.h.b16 %v17
  %v341 = vunpack.c.l.b16 %v18
  %v342 = vunpack.c.h.b16 %v18
  %v343 = vunpack.c.l.b16 %v19
  %v344 = vunpack.c.h.b16 %v19
  %v345 = vunpack.c.l.b16 %v20
  %v346 = vunpack.c.h.b16 %v20
  %v347 = vunpack.c.l.b16 %v21
  %v348 = vunpack.c.h.b16 %v21
  %v349 = vunpack.c.l.b16 %v22
  %v350 = vunpack.c.h.b16 %v22
  %v351 = vunpack.c.l.b16 %v23
  %v352 = vunpack.c.h.b16 %v23
  %v353 = vunpack.c.l.b16 %v24
  %v354 = vunpack.c.h.b16 %v24
  %v355 = vunpack.c.l.b16 %v25
  %v356 = vunpack.c.h.b16 %v25
  %v357 = vunpack.c.l.b16 %v26
  %v358 = vunpack.c.h.b16 %v26
  %v359 = vunpack.c.l.b16 %v27
  %v360 = vunpack.c.h.b16 %v27
  %v361 = vunpack.c.l.b16 %v28
  %v362 = vunpack.c.h.b16 %v28
  %v363 = vunpack.c.l.b16 %v29
  %v364 = vunpack.c.h.b16 %v29
  %v365 = vunpack.c.l.b16 %v30
  %v366 = vunpack.c.h.b16 %v30
  %v367 = vunpack.c.l.b16 %v31
  %v368 = vunpack.c.h.b16 %v31
  %v369 = vunpack.c.l.b16 %v32
  %v370 = vunpack.c.h.b16 %v32
  %v371 = vunpack.c.l.b16 %v33
  %v372 = vunpack.c.h.b16 %v33
  %v373 = vunpack.c.l.b16 %v34
  %v374 = vunpack.c.h.b16 %v34
  %v375 = vunpack.c.l.b16 %v35
  %v376 = vunpack.c.h.b16 %v35
  %v377 = vunpack.c.l.b16 %v36
  %v378 = vunpack.c.h.b16 %v36
  %v379 = vunpack.c.l.b16 %v37
  %v380 = vunpack.c.h.b16 %v37
  %v381 = vunpack.c.l.b16 %v38
  %v382 = vunpack.c.h.b16 %v38
  %v383 = vunpack.c.l.b16 %v39
  %v384 = vunpack.c.h.b16 %v39
  %v385 = vunpack.c.l.b16 %v40
  %v386 = vunpack.c.h.b16 %v40
  %v387 = vunpack.c.l.b16 %v41
  %v388 = vunpack.c.h.b16 %v41
  %v389 = vunpack.c.l.b16 %v42
  %v390 = vunpack.c.h.b16 %v42
  %v391 = vunpack.c.l.b16 %v43
  %v392 = vunpack.c.h.b16 %v43
  %v393 = vunpack.c.l.b16 %v44
  %v394 = vunpack.c.h.b16 %v44
  %v395 = vunpack.c.l.b16 %v45
  %v396 = vunpack.c.h.b16 %v45
  %v397 = vunpack.c.l.b16 %v46
  %v398 = vunpack.c.h.b16 %v46
  %v399 = vunpack.c.l.b16 %v47
  %v400 = vunpack.c.h.b16 %v47
  %v401 = vunpack.c.l.b16 %v48
  %v402 = vunpack.c.h.b16 %v48
  %v403 = vunpack.c.l.b16 %v49
  %v404 = vunpack.c.h.b16 %v49
  %v405 = vunpack.c.l.b16 %v50
  %v406 = vunpack.c.h.b16 %v50
  %v407 = vunpack.c.l.b16 %v51
  %v408 = vunpack.c.h.b16 %v51
  %v409 = vunpack.c.l.b16 %v52
  %v410 = vunpack.c.h.b16 %v52
  %v411 = vunpack.c.l.b16 %v53
  %v412 = vunpack.c.h.b16 %v53
  %v413 = vunpack.c.l.b16 %v54
  %v414 = vunpack.c.h.b16 %v54
  %v415 = vunpack.c.l.b16 %v55
  %v416 = vunpack.c.h.b16 %v55
  %v417 = vunpack.c.l.b16 %v56
  %v418 = vunpack.c.h.b16 %v56
  %v419 = vunpack.c.l.b16 %v57
  %v420 = vunpack.c.h.b16 %v57
  %v421 = vunpack.c.l.b16 %v58
  %v422 = vunpack.c.h.b16 %v58
  %v423 = vunpack.c.l.b16 %v59
  %v424 = vunpack.c.h.b16 %v59
  %v425 = vunpack.c.l.b16 %v60
  %v426 = vunpack.c.h.b16 %v60
  %v427 = vunpack.c.l.b16 %v61
  %v428 = vunpack.c.h.b16 %v61
  %v429 = vunpack.c.l.b16 %v62
  %v430 = vunpack.c.h.b16 %v62
  %v431 = vunpack.c.l.b16 %v63
  %v432 = vunpack.c.h.b16 %v63
  %v433 = vunpack.c.l.b16 %v64
  %v434 = vunpack.c.h.b16 %v64
  %v435 = vunpack.c.l.b16 %v65
  %v436 = vunpack.c.h.b16 %v65
  %v437 = vunpack.c.l.b16 %v66
  %v438 = vunpack.c.h.b16 %v66
  %v439 = vunpack.c.l.b16 %v67
  %v440 = vunpack.c.h.b16 %v67
  %v441 = vunpack.c.l.b16 %v68
  %v442 = vunpack.c.h.b16 %v68
  %v443 = vunpack.c.l.b16 %v69
  %v444 = vunpack.c.h.b16 %v69
  %v445 = vunpack.c.l.b16 %v70
  %v446 = vunpack.c.h.b16 %v70
  %v447 = vunpack.c.l.b16 %v71
  %v448 = vunpack.c.h.b16 %v71
  %v449 = vunpack.c.l.b16 %v72
  %v450 = vunpack.c.h.b16 %v72
  %v451 = vunpack.c.l.b16 %v73
  %v452 = vunpack.c.h.b16 %v73
  %v453 = vunpack.c.l.b16 %v74
  %v454 = vunpack.c.h.b16 %v74
  %v455 = vunpack.c.l.b16 %v75
  %v456 = vunpack.c.h.b16 %v75
  %v457 = vunpack.c.l.b16 %v76
  %v458 = vunpack.c.h.b16 %v76
  %v459 = vunpack.c.l.b16 %v77
  %v460 = vunpack.c.h.b16 %v77
  %v461 = vunpack.c.l.b16 %v78
  %v462 = vunpack.c.h.b16 %v78
  %v463 = vunpack.c.l.b16 %v79
  %v464 = vunpack.c.h.b16 %v79
  %v465 = vunpack.c.l.b16 %v80
  %v466 = vunpack.c.h.b16 %v80
  %v467 = vunpack.c.l.b16 %v81
  %v468 = vunpack.c.h.b16 %v81
  %v469 = vunpack.c.l.b16 %v82
  %v470 = vunpack.c.h.b16 %v82
  %v471 = vunpack.c.l.b16 %v83
  %v472 = vunpack.c.h.b16 %v83
  %v473 = vunpack.c.l.b16 %v84
  %v474 = vunpack.c.h.b16 %v84
  %v475 = vunpack.c.l.b16 %v85
  %v476 = vunpack.c.h.b16 %v85
  %v477 = vunpack.c.l.b16 %v86
  %v478 = vunpack.c.h.b16 %v86
  %v479 = vunpack.c.l.b16 %v87
  %v480 = vunpack.c.h.b16 %v87
  %v481 = vunpack.c.l.b16 %v88
  %v482 = vunpack.c.h.b16 %v88
  %v483 = vunpack.c.l.b16 %v89
  %v484 = vunpack.c.h.b16 %v89
  %v485 = vunpack.c.l.b16 %v90
  %v486 = vunpack.c.h.b16 %v90
  %v487 = vunpack.c.l.b16 %v91
  %v488 = vunpack.c.h.b16 %v91
  %v489 = vunpack.c.l.b16 %v92
  %v490 = vunpack.c.h.b16 %v92
  %v491 = vunpack.c.l.b16 %v93
  %v492 = vunpack.c.h.b16 %v93
  %v493 = vunpack.c.l.b16 %v94
  %v494 = vunpack.c.h.b16 %v94
  %v495 = vunpack.c.l.b16 %v95
  %v496 = vunpack.c.h.b16 %v95
  %v497 = vunpack.c.l.b16 %v96
  %v498 = vunpack.c.h.b16 %v96
  %v499 = vunpack.c.l.b16 %v97
  %v500 = vunpack.c.h.b16 %v97
  %v501 = vunpack.c.l.b16 %v98
  %v502 = vunpack.c.h.b16 %v98
  %v503 = vunpack.c.l.b16 %v99
  %v504 = vunpack.c.h.b16 %v99
  %v505 = vunpack.c.l.b16 %v100
  %v506 = vunpack.c.h.b16 %v100
  %v507 = vunpack.c.l.b16 %v101
  %v508 = vunpack.c.h.b16 %v101
  %v509 = vunpack.c.l.b16 %v102
  %v510 = vunpack.c.h.b16 %v102
  %v511 = vunpack.c.l.b16 %v103
  %v512 = vunpack.c.h.b16 %v103
  %v513 = vunpack.c.l.b16 %v104
  %v514 = vunpack.c.h.b16 %v104
  %v515 = vunpack.c.l.b16 %v105
  %v516 = vunpack.c.h.b16 %v105
  %v517 = vunpack.c.l.b16 %v106
  %v518 = vunpack.c.h.b16 %v106
  %v519 = vunpack.c.l.b16 %v107
  %v520 = vunpack.c.h.b16 %v107
  %v521 = vunpack.c.l.b16 %v108
  %v522 = vunpack.c.h.b16 %v108
  %v523 = vunpack.c.l.b16 %v109
  %v524 = vunpack.c.h.b16 %v109
  %v525 = vunpack.c.l.b16 %v110
  %v526 = vunpack.c.h.b16 %v110
  %v527 = vunpack.c.l.b16 %v111
  %v528 = vunpack.c.h.b16 %v111
  %v529 = vunpack.c.l.b16 %v112
  %v530 = vunpack.c.h.b16 %v112
  %v531 = vunpack.c.l.b16 %v113
  %v532 = vunpack.c.h.b16 %v113
  %v533 = vunpack.c.l.b16 %v114
  %v534 = vunpack.c.h.b16 %v114
  %v535 = vunpack.c.l.b16 %v115
  %v536 = vunpack.c.h.b16 %v115
  %v537 = vunpack.c.l.b16 %v116
  %v538 = vunpack.c.h.b16 %v116
  %v539 = vunpack.c.l.b16 %v117
  %v540 = vunpack.c.h.b16 %v117
  %v541 = vunpack.c.l.b16 %v118
  %v542 = vunpack.c.h.b16 %v118
  %v543 = vunpack.c.l.b16 %v119
  %v544 = vunpack.c.h.b16 %v119
  %v545 = vunpack.c.l.b16 %v120
  %v546 = vunpack.c.h.b16 %v120
  %v547 = vunpack.c.l.b16 %v121
  %v548 = vunpack.c.h.b16 %v121
  %v549 = vunpack.c.l.b16 %v122
  %v550 = vunpack.c.h.b16 %v122
  %v551 = vunpack.c.l.b16 %v123
  %v552 = vunpack.c.h.b16 %v123
  %v553 = vunpack.c.l.b16 %v124
  %v554 = vunpack.c.h.b16 %v124
  %v555 = vunpack.c.l.b16 %v125
  %v556 = vunpack.c.h.b16 %v125
  %v557 = vunpack.c.l.b16 %v126
  %v558 = vunpack.c.h.b16 %v126
  %v559 = vunpack.c.l.b16 %v127
  %v560 = vunpack.c.h.b16 %v127
  %v561 = vunpack.c.l.b16 %v128
  %v562 = vunpack.c.h.b16 %v128
  %v563 = vunpack.c.l.b16 %v129
  %v564 = vunpack.c.h.b16 %v129
  %v565 = vunpack.c.l.b16 %v130
  %v566 = vunpack.c.h.b16 %v130
  %v567 = vunpack.c.l.b16 %v131
  %v568 = vunpack.c.h.b16 %v131
  %v569 = vunpack.c.l.b16 %v132
  %v570 = vunpack.c.h.b16 %v132
  %v571 = vunpack.c.l.b16 %v133
  %v572 = vunpack.c.h.b16 %v133
  %v573 = vunpack.c.l.b16 %v134
  %v574 = vunpack.c.h.b16 %v134
  %v575 = vunpack.c.l.b16 %v135
  %v576 = vunpack.c.h.b16 %v135
  %v577 = vunpack.c.l.b16 %v136
  %v578 = vunpack.c.h.b16 %v136
  %v579 = vunpack.c.l.b16 %v137
  %v580 = vunpack.c.h.b16 %v137
  %v581 = vunpack.c.l.b16 %v138
  %v582 = vunpack.c.h.b16 %v138
  %v583 = vunpack.c.l.b16 %v139
  %v584 = vunpack.c.h.b16 %v139
  %v585 = vunpack.c.l.b16 %v140
  %v586 = vunpack.c.h.b16 %v140
  %v587 = vunpack.c.l.b16 %v141
  %v588 = vunpack.c.h.b16 %v141
  %v589 = vunpack.c.l.b16 %v142
  %v590 = vunpack.c.h.b16 %v142
  %v591 = vpack.c.b16 %v339, %v335
  %v592 = vpack.c.b16 %v340, %v336
  %v593 = vpack.c.b16 %v341, %v337
  %v594 = vpack.c.b16 %v342, %v338
  %v595 = vpack.c.b16 %v347, %v343
  %v596 = vpack.c.b16 %v348, %v344
  %v597 = vpack.c.b16 %v349, %v345
  %v598 = vpack.c.b16 %v350, %v346
  %v599 = vpack.c.b16 %v355, %v351
  %v600 = vpack.c.b16 %v356, %v352
  %v601 = vpack.c.b16 %v357, %v353
  %v602 = vpack.c.b16 %v358, %v354
  %v603 = vpack.c.b16 %v363, %v359
  %v604 = vpack.c.b16 %v364, %v360
  %v605 = vpack.c.b16 %v365, %v361
  %v606 = vpack.c.b16 %v366, %v362
  %v607 = vpack.c.b16 %v371, %v367
  %v608 = vpack.c.b16 %v372, %v368
  %v609 = vpack.c.b16 %v373, %v369
  %v610 = vpack.c.b16 %v374, %v370
  %v611 = vpack.c.b16 %v379, %v375
  %v612 = vpack.c.b16 %v380, %v376
  %v613 = vpack.c.b16 %v381, %v377
  %v614 = vpack.c.b16 %v382, %v378
  %v615 = vpack.c.b16 %v387, %v383
  %v616 = vpack.c.b16 %v388, %v384
  %v617 = vpack.c.b16 %v389, %v385
  %v618 = vpack.c.b16 %v390, %v386
  %v619 = vpack.c.b16 %v395, %v391
  %v620 = vpack.c.b16 %v396, %v392
  %v621 = vpack.c.b16 %v397, %v393
  %v622 = vpack.c.b16 %v398, %v394
  %v623 = vpack.c.b16 %v403, %v399
  %v624 = vpack.c.b16 %v404, %v400
  %v625 = vpack.c.b16 %v405, %v401
  %v626 = vpack.c.b16 %v406, %v402
  %v627 = vpack.c.b16 %v411, %v407
  %v628 = vpack.c.b16 %v412, %v408
  %v629 = vpack.c.b16 %v413, %v409
  %v630 = vpack.c.b16 %v414, %v410
  %v631 = vpack.c.b16 %v419, %v415
  %v632 = vpack.c.b16 %v420, %v416
  %v633 = vpack.c.b16 %v421, %v417
  %v634 = vpack.c.b16 %v422, %v418
  %v635 = vpack.c.b16 %v427, %v423
  %v636 = vpack.c.b16 %v428, %v424
  %v637 = vpack.c.b16 %v429, %v425
  %v638 = vpack.c.b16 %v430, %v426
  %v639 = vpack.c.b16 %v435, %v431
  %v640 = vpack.c.b16 %v436, %v432
  %v641 = vpack.c.b16 %v437, %v433
  %v642 = vpack.c.b16 %v438, %v434
  %v643 = vpack.c.b16 %v443, %v439
  %v644 = vpack.c.b16 %v444, %v440
  %v645 = vpack.c.b16 %v445, %v441
  %v646 = vpack.c.b16 %v446, %v442
  %v647 = vpack.c.b16 %v451, %v447
  %v648 = vpack.c.b16 %v452, %v448
  %v649 = vpack.c.b16 %v453, %v449
  %v650 = vpack.c.b16 %v454, %v450
  %v651 = vpack.c.b16 %v459, %v455
  %v652 = vpack.c.b16 %v460, %v456
  %v653 = vpack.c.b16 %v461, %v457
  %v654 = vpack.c.b16 %v462, %v458
  %v655 = vpack.c.b16 %v467, %v463
  %v656 = vpack.c.b16 %v468, %v464
  %v657 = vpack.c.b16 %v469, %v465
  %v658 = vpack.c.b16 %v470, %v466
  %v659 = vpack.c.b16 %v475, %v471
  %v660 = vpack.c.b16 %v476, %v472
  %v661 = vpack.c.b16 %v477, %v473
  %v662 = vpack.c.b16 %v478, %v474
  %v663 = vpack.c.b16 %v483, %v479
  %v664 = vpack.c.b16 %v484, %v480
  %v665 = vpack.c.b16 %v485, %v481
  %v666 = vpack.c.b16 %v486, %v482
  %v667 = vpack.c.b16 %v491, %v487
  %v668 = vpack.c.b16 %v492, %v488
  %v669 = vpack.c.b16 %v493, %v489
  %v670 = vpack.c.b16 %v494, %v490
  %v671 = vpack.c.b16 %v499, %v495
  %v672 = vpack.c.b16 %v500, %v496
  %v673 = vpack.c.b16 %v501, %v497
  %v674 = vpack.c.b16 %v502, %v498
  %v675 = vpack.c.b16 %v507, %v503
  %v676 = vpack.c.b16 %v508, %v504
  %v677 = vpack.c.b16 %v509, %v505
  %v678 = vpack.c.b16 %v510, %v506
  %v679 = vpack.c.b16 %v515, %v511
  %v680 = vpack.c.b16 %v516, %v512
  %v681 = vpack.c.b16 %v517, %v513
  %v682 = vpack.c.b16 %v518, %v514
  %v683 = vpack.c.b16 %v523, %v519
  %v684 = vpack.c.b16 %v524, %v520
  %v685 = vpack.c.b16 %v525, %v521
  %v686 = vpack.c.b16 %v526, %v522
  %v687 = vpack.c.b16 %v531, %v527
  %v688 = vpack.c.b16 %v532, %v528
  %v689 = vpack.c.b16 %v533, %v529
  %v690 = vpack.c.b16 %v534, %v530
  %v691 = vpack.c.b16 %v539, %v535
  %v692 = vpack.c.b16 %v540, %v536
  %v693 = vpack.c.b16 %v541, %v537
  %v694 = vpack.c.b16 %v542, %v538
  %v695 = vpack.c.b16 %v547, %v543
  %v696 = vpack.c.b16 %v548, %v544
  %v697 = vpack.c.b16 %v549, %v545
  %v698 = vpack.c.b16 %v550, %v546
  %v699 = vpack.c.b16 %v555, %v551
  %v700 = vpack.c.b16 %v556, %v552
  %v701 = vpack.c.b16 %v557, %v553
  %v702 = vpack.c.b16 %v558, %v554
  %v703 = vpack.c.b16 %v563, %v559
  %v704 = vpack.c.b16 %v564, %v560
  %v705 = vpack.c.b16 %v565, %v561
  %v706 = vpack.c.b16 %v566, %v562
  %v707 = vpack.c.b16 %v571, %v567
  %v708 = vpack.c.b16 %v572, %v568
  %v709 = vpack.c.b16 %v573, %v569
  %v710 = vpack.c.b16 %v574, %v570
  %v711 = vpack.c.b16 %v579, %v575
  %v712 = vpack.c.b16 %v580, %v576
  %v713 = vpack.c.b16 %v581, %v577
  %v714 = vpack.c.b16 %v582, %v578
  %v715 = vpack.c.b16 %v587, %v583
  %v716 = vpack.c.b16 %v588, %v584
  %v717 = vpack.c.b16 %v589, %v585
  %v718 = vpack.c.b16 %v590, %v586
  %v911 = vunpack.c.l.b16 %v143
  %v912 = vunpack.c.h.b16 %v143
  %v913 = vunpack.c.l.b16 %v144
  %v914 = vunpack.c.h.b16 %v144
  %v915 = vunpack.c.l.b16 %v145
  %v916 = vunpack.c.h.b16 %v145
  %v917 = vunpack.c.l.b16 %v146
  %v918 = vunpack.c.h.b16 %v146
  %v919 = vunpack.c.l.b16 %v147
  %v920 = vunpack.c.h.b16 %v147
  %v921 = vunpack.c.l.b16 %v148
  %v922 = vunpack.c.h.b16 %v148
  %v923 = vunpack.c.l.b16 %v149
  %v924 = vunpack.c.h.b16 %v149
  %v925 = vunpack.c.l.b16 %v150
  %v926 = vunpack.c.h.b16 %v150
  %v927 = vunpack.c.l.b16 %v151
  %v928 = vunpack.c.h.b16 %v151
  %v929 = vunpack.c.l.b16 %v152
  %v930 = vunpack.c.h.b16 %v152
  %v931 = vunpack.c.l.b16 %v153
  %v932 = vunpack.c.h.b16 %v153
  %v933 = vunpack.c.l.b16 %v154
  %v934 = vunpack.c.h.b16 %v154
  %v935 = vunpack.c.l.b16 %v155
  %v936 = vunpack.c.h.b16 %v155
  %v937 = vunpack.c.l.b16 %v156
  %v938 = vunpack.c.h.b16 %v156
  %v939 = vunpack.c.l.b16 %v157
  %v940 = vunpack.c.h.b16 %v157
  %v941 = vunpack.c.l.b16 %v158
  %v942 = vunpack.c.h.b16 %v158
  %v943 = vunpack.c.l.b16 %v159
  %v944 = vunpack.c.h.b16 %v159
  %v945 = vunpack.c.l.b16 %v160
  %v946 = vunpack.c.h.b16 %v160
  %v947 = vunpack.c.l.b16 %v161
  %v948 = vunpack.c.h.b16 %v161
  %v949 = vunpack.c.l.b16 %v162
  %v950 = vunpack.c.h.b16 %v162
  %v951 = vunpack.c.l.b16 %v163
  %v952 = vunpack.c.h.b16 %v163
  %v953 = vunpack.c.l.b16 %v164
  %v954 = vunpack.c.h.b16 %v164
  %v955 = vunpack.c.l.b16 %v165
  %v956 = vunpack.c.h.b16 %v165
  %v957 = vunpack.c.l.b16 %v166
  %v958 = vunpack.c.h.b16 %v166
  %v959 = vunpack.c.l.b16 %v167
  %v960 = vunpack.c.h.b16 %v167
  %v961 = vunpack.c.l.b16 %v168
  %v962 = vunpack.c.h.b16 %v168
  %v963 = vunpack.c.l.b16 %v169
  %v964 = vunpack.c.h.b16 %v169
  %v965 = vunpack.c.l.b16 %v170
  %v966 = vunpack.c.h.b16 %v170
  %v967 = vunpack.c.l.b16 %v171
  %v968 = vunpack.c.h.b16 %v171
  %v969 = vunpack.c.l.b16 %v172
  %v970 = vunpack.c.h.b16 %v172
  %v971 = vunpack.c.l.b16 %v173
  %v972 = vunpack.c.h.b16 %v173
  %v973 = vunpack.c.l.b16 %v174
  %v974 = vunpack.c.h.b16 %v174
  %v975 = vunpack.c.l.b16 %v175
  %v976 = vunpack.c.h.b16 %v175
  %v977 = vunpack.c.l.b16 %v176
  %v978 = vunpack.c.h.b16 %v176
  %v979 = vunpack.c.l.b16 %v177
  %v980 = vunpack.c.h.b16 %v177
  %v981 = vunpack.c.l.b16 %v178
  %v982 = vunpack.c.h.b16 %v178
  %v983 = vunpack.c.l.b16 %v179
  %v984 = vunpack.c.h.b16 %v179
  %v985 = vunpack.c.l.b16 %v180
  %v986 = vunpack.c.h.b16 %v180
  %v987 = vunpack.c.l.b16 %v181
  %v988 = vunpack.c.h.b16 %v181
  %v989 = vunpack.c.l.b16 %v182
  %v990 = vunpack.c.h.b16 %v182
  %v991 = vunpack.c.l.b16 %v183
  %v992 = vunpack.c.h.b16 %v183
  %v993 = vunpack.c.l.b16 %v184
  %v994 = vunpack.c.h.b16 %v184
  %v995 = vunpack.c.l.b16 %v185
  %v996 = vunpack.c.h.b16 %v185
  %v997 = vunpack.c.l.b16 %v186
  %v998 = vunpack.c.h.b16 %v186
  %v999 = vunpack.c.l.b16 %v187
  %v1000 = vunpack.c.h.b16 %v187
  %v1001 = vunpack.c.l.b16 %v188
  %v1002 = vunpack.c.h.b16 %v188
  %v1003 = vunpack.c.l.b16 %v189
  %v1004 = vunpack.c.h.b16 %v189
  %v1005 = vunpack.c.l.b16 %v190
  %v1006 = vunpack.c.h.b16 %v190
  %v1007 = vunpack.c.l.b16 %v191
  %v1008 = vunpack.c.h.b16 %v191
  %v1009 = vunpack.c.l.b16 %v192
  %v1010 = vunpack.c.h.b16 %v192
  %v1011 = vunpack.c.l.b16 %v193
  %v1012 = vunpack.c.h.b16 %v193
  %v1013 = vunpack.c.l.b16 %v194
  %v1014 = vunpack.c.h.b16 %v194
  %v1015 = vunpack.c.l.b16 %v195
  %v1016 = vunpack.c.h.b16 %v195
  %v1017 = vunpack.c.l.b16 %v196
  %v1018 = vunpack.c.h.b16 %v196
  %v1019 = vunpack.c.l.b16 %v197
  %v1020 = vunpack.c.h.b16 %v197
  %v1021 = vunpack.c.l.b16 %v198
  %v1022 = vunpack.c.h.b16 %v198
  %v1023 = vunpack.c.l.b16 %v199
  %v1024 = vunpack.c.h.b16 %v199
  %v1025 = vunpack.c.l.b16 %v200
  %v1026 = vunpack.c.h.b16 %v200
  %v1027 = vunpack.c.l.b16 %v201
  %v1028 = vunpack.c.h.b16 %v201
  %v1029 = vunpack.c.l.b16 %v202
  %v1030 = vunpack.c.h.b16 %v202
  %v1031 = vunpack.c.l.b16 %v203
  %v1032 = vunpack.c.h.b16 %v203
  %v1033 = vunpack.c.l.b16 %v204
  %v1034 = vunpack.c.h.b16 %v204
  %v1035 = vunpack.c.l.b16 %v205
  %v1036 = vunpack.c.h.b16 %v205
  %v1037 = vunpack.c.l.b16 %v206
  %v1038 = vunpack.c.h.b16 %v206
  %v1039 = vpack.c.b16 %v913, %v911
  %v1040 = vpack.c.b16 %v914, %v912
  %v1041 = vpack.c.b16 %v917, %v915
  %v1042 = vpack.c.b16 %v918, %v916
  %v1043 = vpack.c.b16 %v921, %v919
  %v1044 = vpack.c.b16 %v922, %v920
  %v1045 = vpack.c.b16 %v925, %v923
  %v1046 = vpack.c.b16 %v926, %v924
  %v1047 = vpack.c.b16 %v929, %v927
  %v1048 = vpack.c.b16 %v930, %v928
  %v1049 = vpack.c.b16 %v933, %v931
  %v1050 = vpack.c.b16 %v934, %v932
  %v1051 = vpack.c.b16 %v937, %v935
  %v1052 = vpack.c.b16 %v938, %v936
  %v1053 = vpack.c.b16 %v941, %v939
  %v1054 = vpack.c.b16 %v942, %v940
  %v1055 = vpack.c.b16 %v945, %v943
  %v1056 = vpack.c.b16 %v946, %v944
  %v1057 = vpack.c.b16 %v949, %v947
  %v1058 = vpack.c.b16 %v950, %v948
  %v1059 = vpack.c.b16 %v953, %v951
  %v1060 = vpack.c.b16 %v954, %v952
  %v1061 = vpack.c.b16 %v957, %v955
  %v1062 = vpack.c.b16 %v958, %v956
  %v1063 = vpack.c.b16 %v961, %v959
  %v1064 = vpack.c.b16 %v962, %v960
  %v1065 = vpack.c.b16 %v965, %v963
  %v1066 = vpack.c.b16 %v966, %v964
  %v1067 = vpack.c.b16 %v969, %v967
  %v1068 = vpack.c.b16 %v970, %v968
  %v1069 = vpack.c.b16 %v973, %v971
  %v1070 = vpack.c.b16 %v974, %v972
  %v1071 = vpack.c.b16 %v977, %v975
  %v1072 = vpack.c.b16 %v978, %v976
  %v1073 = vpack.c.b16 %v981, %v979
  %v1074 = vpack.c.b16 %v982, %v980
  %v1075 = vpack.c.b16 %v985, %v983
  %v1076 = vpack.c.b16 %v986, %v984
  %v1077 = vpack.c.b16 %v989, %v987
  %v1078 = vpack.c.b16 %v990, %v988
  %v1079 = vpack.c.b16 %v993, %v991
  %v1080 = vpack.c.b16 %v994, %v992
  %v1081 = vpack.c.b16 %v997, %v995
  %v1082 = vpack.c.b16 %v998, %v996
  %v1083 = vpack.c.b16 %v1001, %v999
  %v1084 = vpack.c.b16 %v1002, %v1000
  %v1085 = vpack.c.b16 %v1005, %v1003
  %v1086 = vpack.c.b16 %v1006, %v1004
  %v1087 = vpack.c.b16 %v1009, %v1007
  %v1088 = vpack.c.b16 %v1010, %v1008
  %v1089 = vpack.c.b16 %v1013, %v1011
  %v1090 = vpack.c.b16 %v1014, %v1012
  %v1091 = vpack.c.b16 %v1017, %v1015
  %v1092 = vpack.c.b16 %v1018, %v1016
  %v1093 = vpack.c.b16 %v1021, %v1019
  %v1094 = vpack.c.b16 %v1022, %v1020
  %v1095 = vpack.c.b16 %v1025, %v1023
  %v1096 = vpack.c.b16 %v1026, %v1024
  %v1097 = vpack.c.b16 %v1029, %v1027
  %v1098 = vpack.c.b16 %v1030, %v1028
  %v1099 = vpack.c.b16 %v1033, %v1031
  %v1100 = vpack.c.b16 %v1034, %v1032
  %v1101 = vpack.c.b16 %v1037, %v1035
  %v1102 = vpack.c.b16 %v1038, %v1036
  %1167 = vmatprep.subr.bf16.mxu0 %v1040
  %1168 = vmatpush1.bf16.msra.mxu0 %v1039
  %1169 = vmatprep.subr.bf16.mxu0 %v1042
  %1170 = vmatpush1.bf16.msra.mxu0 %v1041
  %1171 = vmatprep.subr.bf16.mxu0 %v1044
  %1172 = vmatpush1.bf16.msra.mxu0 %v1043
  %1173 = vmatprep.subr.bf16.mxu0 %v1046
  %1174 = vmatpush1.bf16.msra.mxu0 %v1045
  %1175 = vmatprep.subr.bf16.mxu0 %v1048
  %1176 = vmatpush1.bf16.msra.mxu0 %v1047
  %1177 = vmatprep.subr.bf16.mxu0 %v1050
  %1178 = vmatpush1.bf16.msra.mxu0 %v1049
  %1179 = vmatprep.subr.bf16.mxu0 %v1052
  %1180 = vmatpush1.bf16.msra.mxu0 %v1051
  %1181 = vmatprep.subr.bf16.mxu0 %v1054
  %1182 = vmatpush1.bf16.msra.mxu0 %v1053
  %1183 = vmatprep.subr.bf16.mxu0 %v1056
  %1184 = vmatpush1.bf16.msra.mxu0 %v1055
  %1185 = vmatprep.subr.bf16.mxu0 %v1058
  %1186 = vmatpush1.bf16.msra.mxu0 %v1057
  %1187 = vmatprep.subr.bf16.mxu0 %v1060
  %1188 = vmatpush1.bf16.msra.mxu0 %v1059
  %1189 = vmatprep.subr.bf16.mxu0 %v1062
  %1190 = vmatpush1.bf16.msra.mxu0 %v1061
  %1191 = vmatprep.subr.bf16.mxu0 %v1064
  %1192 = vmatpush1.bf16.msra.mxu0 %v1063
  %1193 = vmatprep.subr.bf16.mxu0 %v1066
  %1194 = vmatpush1.bf16.msra.mxu0 %v1065
  %1195 = vmatprep.subr.bf16.mxu0 %v1068
  %1196 = vmatpush1.bf16.msra.mxu0 %v1067
  %1197 = vmatprep.subr.bf16.mxu0 %v1070
  %1198 = vmatpush1.bf16.msra.mxu0 %v1069
  %1199 = vmatprep.mubr.bf16.mxu0 %v592
  %1200 = vmatmul.mubr.bf16.gmra.mrb[0].mxu0 %v591
  %v1201 = vpop.f32.mrb[0].mxu0
  %v1202 = vadd.f32 0.0, %v1201
  %v1203 = vpop.f32.mrb[0].mxu0
  %v1204 = vadd.f32 0.0, %v1203
  %v1205 = vpop.f32.mrb[0].mxu0
  %v1206 = vadd.f32 0.0, %v1205
  %v1207 = vpop.f32.mrb[0].mxu0
  %v1208 = vadd.f32 0.0, %v1207
  %1209 = vmatprep.mubr.bf16.mxu0 %v596
  %1210 = vmatmul.mubr.bf16.gmra.mrb[0].mxu0 %v595
  %v1211 = vpop.f32.mrb[0].mxu0
  %v1212 = vadd.f32 0.0, %v1211
  %v1213 = vpop.f32.mrb[0].mxu0
  %v1214 = vadd.f32 0.0, %v1213
  %v1215 = vpop.f32.mrb[0].mxu0
  %v1216 = vadd.f32 0.0, %v1215
  %v1217 = vpop.f32.mrb[0].mxu0
  %v1218 = vadd.f32 0.0, %v1217
  %1219 = vmatprep.mubr.bf16.mxu0 %v600
  %1220 = vmatmul.mubr.bf16.gmra.mrb[0].mxu0 %v599
  %v1221 = vpop.f32.mrb[0].mxu0
  %v1222 = vadd.f32 0.0, %v1221
  %v1223 = vpop.f32.mrb[0].mxu0
  %v1224 = vadd.f32 0.0, %v1223
  %v1225 = vpop.f32.mrb[0].mxu0
  %v1226 = vadd.f32 0.0, %v1225
  %v1227 = vpop.f32.mrb[0].mxu0
  %v1228 = vadd.f32 0.0, %v1227
  %1229 = vmatprep.mubr.bf16.mxu0 %v604
  %1230 = vmatmul.mubr.bf16.gmra.mrb[0].mxu0 %v603
  %v1231 = vpop.f32.mrb[0].mxu0
  %v1232 = vadd.f32 0.0, %v1231
  %v1233 = vpop.f32.mrb[0].mxu0
  %v1234 = vadd.f32 0.0, %v1233
  %v1235 = vpop.f32.mrb[0].mxu0
  %v1236 = vadd.f32 0.0, %v1235
  %v1237 = vpop.f32.mrb[0].mxu0
  %v1238 = vadd.f32 0.0, %v1237
  %1239 = vmatprep.mubr.bf16.mxu0 %v608
  %1240 = vmatmul.mubr.bf16.gmra.mrb[0].mxu0 %v607
  %v1241 = vpop.f32.mrb[0].mxu0
  %v1242 = vadd.f32 0.0, %v1241
  %v1243 = vpop.f32.mrb[0].mxu0
  %v1244 = vadd.f32 0.0, %v1243
  %v1245 = vpop.f32.mrb[0].mxu0
  %v1246 = vadd.f32 0.0, %v1245
  %v1247 = vpop.f32.mrb[0].mxu0
  %v1248 = vadd.f32 0.0, %v1247
  %1249 = vmatprep.mubr.bf16.mxu0 %v612
  %1250 = vmatmul.mubr.bf16.gmra.mrb[0].mxu0 %v611
  %v1251 = vpop.f32.mrb[0].mxu0
  %v1252 = vadd.f32 0.0, %v1251
  %v1253 = vpop.f32.mrb[0].mxu0
  %v1254 = vadd.f32 0.0, %v1253
  %v1255 = vpop.f32.mrb[0].mxu0
  %v1256 = vadd.f32 0.0, %v1255
  %v1257 = vpop.f32.mrb[0].mxu0
  %v1258 = vadd.f32 0.0, %v1257
  %1259 = vmatprep.mubr.bf16.mxu0 %v616
  %1260 = vmatmul.mubr.bf16.gmra.mrb[0].mxu0 %v615
  %v1261 = vpop.f32.mrb[0].mxu0
  %v1262 = vadd.f32 0.0, %v1261
  %v1263 = vpop.f32.mrb[0].mxu0
  %v1264 = vadd.f32 0.0, %v1263
  %v1265 = vpop.f32.mrb[0].mxu0
  %v1266 = vadd.f32 0.0, %v1265
  %v1267 = vpop.f32.mrb[0].mxu0
  %v1268 = vadd.f32 0.0, %v1267
  %1269 = vmatprep.mubr.bf16.mxu0 %v620
  %1270 = vmatmul.mubr.bf16.gmra.mrb[0].mxu0 %v619
  %v1271 = vpop.f32.mrb[0].mxu0
  %v1272 = vadd.f32 0.0, %v1271
  %v1273 = vpop.f32.mrb[0].mxu0
  %v1274 = vadd.f32 0.0, %v1273
  %v1275 = vpop.f32.mrb[0].mxu0
  %v1276 = vadd.f32 0.0, %v1275
  %v1277 = vpop.f32.mrb[0].mxu0
  %v1278 = vadd.f32 0.0, %v1277
  %1279 = vmatprep.mubr.bf16.mxu0 %v624
  %1280 = vmatmul.mubr.bf16.gmra.mrb[0].mxu0 %v623
  %v1281 = vpop.f32.mrb[0].mxu0
  %v1282 = vadd.f32 0.0, %v1281
  %v1283 = vpop.f32.mrb[0].mxu0
  %v1284 = vadd.f32 0.0, %v1283
  %v1285 = vpop.f32.mrb[0].mxu0
  %v1286 = vadd.f32 0.0, %v1285
  %v1287 = vpop.f32.mrb[0].mxu0
  %v1288 = vadd.f32 0.0, %v1287
  %1289 = vmatprep.mubr.bf16.mxu0 %v628
  %1290 = vmatmul.mubr.bf16.gmra.mrb[0].mxu0 %v627
  %v1291 = vpop.f32.mrb[0].mxu0
  %v1292 = vadd.f32 0.0, %v1291
  %v1293 = vpop.f32.mrb[0].mxu0
  %v1294 = vadd.f32 0.0, %v1293
  %v1295 = vpop.f32.mrb[0].mxu0
  %v1296 = vadd.f32 0.0, %v1295
  %v1297 = vpop.f32.mrb[0].mxu0
  %v1298 = vadd.f32 0.0, %v1297
  %1299 = vmatprep.mubr.bf16.mxu0 %v632
  %1300 = vmatmul.mubr.bf16.gmra.mrb[0].mxu0 %v631
  %v1301 = vpop.f32.mrb[0].mxu0
  %v1302 = vadd.f32 0.0, %v1301
  %v1303 = vpop.f32.mrb[0].mxu0
  %v1304 = vadd.f32 0.0, %v1303
  %v1305 = vpop.f32.mrb[0].mxu0
  %v1306 = vadd.f32 0.0, %v1305
  %v1307 = vpop.f32.mrb[0].mxu0
  %v1308 = vadd.f32 0.0, %v1307
  %1309 = vmatprep.mubr.bf16.mxu0 %v636
  %1310 = vmatmul.mubr.bf16.gmra.mrb[0].mxu0 %v635
  %v1311 = vpop.f32.mrb[0].mxu0
  %v1312 = vadd.f32 0.0, %v1311
  %v1313 = vpop.f32.mrb[0].mxu0
  %v1314 = vadd.f32 0.0, %v1313
  %v1315 = vpop.f32.mrb[0].mxu0
  %v1316 = vadd.f32 0.0, %v1315
  %v1317 = vpop.f32.mrb[0].mxu0
  %v1318 = vadd.f32 0.0, %v1317
  %1319 = vmatprep.mubr.bf16.mxu0 %v640
  %1320 = vmatmul.mubr.bf16.gmra.mrb[0].mxu0 %v639
  %v1321 = vpop.f32.mrb[0].mxu0
  %v1322 = vadd.f32 0.0, %v1321
  %v1323 = vpop.f32.mrb[0].mxu0
  %v1324 = vadd.f32 0.0, %v1323
  %v1325 = vpop.f32.mrb[0].mxu0
  %v1326 = vadd.f32 0.0, %v1325
  %v1327 = vpop.f32.mrb[0].mxu0
  %v1328 = vadd.f32 0.0, %v1327
  %1329 = vmatprep.mubr.bf16.mxu0 %v644
  %1330 = vmatmul.mubr.bf16.gmra.mrb[0].mxu0 %v643
  %v1331 = vpop.f32.mrb[0].mxu0
  %v1332 = vadd.f32 0.0, %v1331
  %v1333 = vpop.f32.mrb[0].mxu0
  %v1334 = vadd.f32 0.0, %v1333
  %v1335 = vpop.f32.mrb[0].mxu0
  %v1336 = vadd.f32 0.0, %v1335
  %v1337 = vpop.f32.mrb[0].mxu0
  %v1338 = vadd.f32 0.0, %v1337
  %1339 = vmatprep.mubr.bf16.mxu0 %v648
  %1340 = vmatmul.mubr.bf16.gmra.mrb[0].mxu0 %v647
  %v1341 = vpop.f32.mrb[0].mxu0
  %v1342 = vadd.f32 0.0, %v1341
  %v1343 = vpop.f32.mrb[0].mxu0
  %v1344 = vadd.f32 0.0, %v1343
  %v1345 = vpop.f32.mrb[0].mxu0
  %v1346 = vadd.f32 0.0, %v1345
  %v1347 = vpop.f32.mrb[0].mxu0
  %v1348 = vadd.f32 0.0, %v1347
  %1349 = vmatprep.mubr.bf16.mxu0 %v652
  %1350 = vmatmul.mubr.bf16.gmra.mrb[0].mxu0 %v651
  %v1351 = vpop.f32.mrb[0].mxu0
  %v1352 = vadd.f32 0.0, %v1351
  %v1353 = vpop.f32.mrb[0].mxu0
  %v1354 = vadd.f32 0.0, %v1353
  %v1355 = vpop.f32.mrb[0].mxu0
  %v1356 = vadd.f32 0.0, %v1355
  %v1357 = vpop.f32.mrb[0].mxu0
  %v1358 = vadd.f32 0.0, %v1357
  %1359 = vmatprep.mubr.bf16.mxu0 %v656
  %1360 = vmatmul.mubr.bf16.gmra.mrb[0].mxu0 %v655
  %v1361 = vpop.f32.mrb[0].mxu0
  %v1362 = vadd.f32 0.0, %v1361
  %v1363 = vpop.f32.mrb[0].mxu0
  %v1364 = vadd.f32 0.0, %v1363
  %v1365 = vpop.f32.mrb[0].mxu0
  %v1366 = vadd.f32 0.0, %v1365
  %v1367 = vpop.f32.mrb[0].mxu0
  %v1368 = vadd.f32 0.0, %v1367
  %1369 = vmatprep.mubr.bf16.mxu0 %v660
  %1370 = vmatmul.mubr.bf16.gmra.mrb[0].mxu0 %v659
  %v1371 = vpop.f32.mrb[0].mxu0
  %v1372 = vadd.f32 0.0, %v1371
  %v1373 = vpop.f32.mrb[0].mxu0
  %v1374 = vadd.f32 0.0, %v1373
  %v1375 = vpop.f32.mrb[0].mxu0
  %v1376 = vadd.f32 0.0, %v1375
  %v1377 = vpop.f32.mrb[0].mxu0
  %v1378 = vadd.f32 0.0, %v1377
  %1379 = vmatprep.mubr.bf16.mxu0 %v664
  %1380 = vmatmul.mubr.bf16.gmra.mrb[0].mxu0 %v663
  %v1381 = vpop.f32.mrb[0].mxu0
  %v1382 = vadd.f32 0.0, %v1381
  %v1383 = vpop.f32.mrb[0].mxu0
  %v1384 = vadd.f32 0.0, %v1383
  %v1385 = vpop.f32.mrb[0].mxu0
  %v1386 = vadd.f32 0.0, %v1385
  %v1387 = vpop.f32.mrb[0].mxu0
  %v1388 = vadd.f32 0.0, %v1387
  %1389 = vmatprep.mubr.bf16.mxu0 %v668
  %1390 = vmatmul.mubr.bf16.gmra.mrb[0].mxu0 %v667
  %v1391 = vpop.f32.mrb[0].mxu0
  %v1392 = vadd.f32 0.0, %v1391
  %v1393 = vpop.f32.mrb[0].mxu0
  %v1394 = vadd.f32 0.0, %v1393
  %v1395 = vpop.f32.mrb[0].mxu0
  %v1396 = vadd.f32 0.0, %v1395
  %v1397 = vpop.f32.mrb[0].mxu0
  %v1398 = vadd.f32 0.0, %v1397
  %1399 = vmatprep.mubr.bf16.mxu0 %v672
  %1400 = vmatmul.mubr.bf16.gmra.mrb[0].mxu0 %v671
  %v1401 = vpop.f32.mrb[0].mxu0
  %v1402 = vadd.f32 0.0, %v1401
  %v1403 = vpop.f32.mrb[0].mxu0
  %v1404 = vadd.f32 0.0, %v1403
  %v1405 = vpop.f32.mrb[0].mxu0
  %v1406 = vadd.f32 0.0, %v1405
  %v1407 = vpop.f32.mrb[0].mxu0
  %v1408 = vadd.f32 0.0, %v1407
  %1409 = vmatprep.mubr.bf16.mxu0 %v676
  %1410 = vmatmul.mubr.bf16.gmra.mrb[0].mxu0 %v675
  %v1411 = vpop.f32.mrb[0].mxu0
  %v1412 = vadd.f32 0.0, %v1411
  %v1413 = vpop.f32.mrb[0].mxu0
  %v1414 = vadd.f32 0.0, %v1413
  %v1415 = vpop.f32.mrb[0].mxu0
  %v1416 = vadd.f32 0.0, %v1415
  %v1417 = vpop.f32.mrb[0].mxu0
  %v1418 = vadd.f32 0.0, %v1417
  %1419 = vmatprep.mubr.bf16.mxu0 %v680
  %1420 = vmatmul.mubr.bf16.gmra.mrb[0].mxu0 %v679
  %v1421 = vpop.f32.mrb[0].mxu0
  %v1422 = vadd.f32 0.0, %v1421
  %v1423 = vpop.f32.mrb[0].mxu0
  %v1424 = vadd.f32 0.0, %v1423
  %v1425 = vpop.f32.mrb[0].mxu0
  %v1426 = vadd.f32 0.0, %v1425
  %v1427 = vpop.f32.mrb[0].mxu0
  %v1428 = vadd.f32 0.0, %v1427
  %1429 = vmatprep.mubr.bf16.mxu0 %v684
  %1430 = vmatmul.mubr.bf16.gmra.mrb[0].mxu0 %v683
  %v1431 = vpop.f32.mrb[0].mxu0
  %v1432 = vadd.f32 0.0, %v1431
  %v1433 = vpop.f32.mrb[0].mxu0
  %v1434 = vadd.f32 0.0, %v1433
  %v1435 = vpop.f32.mrb[0].mxu0
  %v1436 = vadd.f32 0.0, %v1435
  %v1437 = vpop.f32.mrb[0].mxu0
  %v1438 = vadd.f32 0.0, %v1437
  %1439 = vmatprep.mubr.bf16.mxu0 %v688
  %1440 = vmatmul.mubr.bf16.gmra.mrb[0].mxu0 %v687
  %v1441 = vpop.f32.mrb[0].mxu0
  %v1442 = vadd.f32 0.0, %v1441
  %v1443 = vpop.f32.mrb[0].mxu0
  %v1444 = vadd.f32 0.0, %v1443
  %v1445 = vpop.f32.mrb[0].mxu0
  %v1446 = vadd.f32 0.0, %v1445
  %v1447 = vpop.f32.mrb[0].mxu0
  %v1448 = vadd.f32 0.0, %v1447
  %1449 = vmatprep.mubr.bf16.mxu0 %v692
  %1450 = vmatmul.mubr.bf16.gmra.mrb[0].mxu0 %v691
  %v1451 = vpop.f32.mrb[0].mxu0
  %v1452 = vadd.f32 0.0, %v1451
  %v1453 = vpop.f32.mrb[0].mxu0
  %v1454 = vadd.f32 0.0, %v1453
  %v1455 = vpop.f32.mrb[0].mxu0
  %v1456 = vadd.f32 0.0, %v1455
  %v1457 = vpop.f32.mrb[0].mxu0
  %v1458 = vadd.f32 0.0, %v1457
  %1459 = vmatprep.mubr.bf16.mxu0 %v696
  %1460 = vmatmul.mubr.bf16.gmra.mrb[0].mxu0 %v695
  %v1461 = vpop.f32.mrb[0].mxu0
  %v1462 = vadd.f32 0.0, %v1461
  %v1463 = vpop.f32.mrb[0].mxu0
  %v1464 = vadd.f32 0.0, %v1463
  %v1465 = vpop.f32.mrb[0].mxu0
  %v1466 = vadd.f32 0.0, %v1465
  %v1467 = vpop.f32.mrb[0].mxu0
  %v1468 = vadd.f32 0.0, %v1467
  %1469 = vmatprep.mubr.bf16.mxu0 %v700
  %1470 = vmatmul.mubr.bf16.gmra.mrb[0].mxu0 %v699
  %v1471 = vpop.f32.mrb[0].mxu0
  %v1472 = vadd.f32 0.0, %v1471
  %v1473 = vpop.f32.mrb[0].mxu0
  %v1474 = vadd.f32 0.0, %v1473
  %v1475 = vpop.f32.mrb[0].mxu0
  %v1476 = vadd.f32 0.0, %v1475
  %v1477 = vpop.f32.mrb[0].mxu0
  %v1478 = vadd.f32 0.0, %v1477
  %1479 = vmatprep.mubr.bf16.mxu0 %v704
  %1480 = vmatmul.mubr.bf16.gmra.mrb[0].mxu0 %v703
  %v1481 = vpop.f32.mrb[0].mxu0
  %v1482 = vadd.f32 0.0, %v1481
  %v1483 = vpop.f32.mrb[0].mxu0
  %v1484 = vadd.f32 0.0, %v1483
  %v1485 = vpop.f32.mrb[0].mxu0
  %v1486 = vadd.f32 0.0, %v1485
  %v1487 = vpop.f32.mrb[0].mxu0
  %v1488 = vadd.f32 0.0, %v1487
  %1489 = vmatprep.mubr.bf16.mxu0 %v708
  %1490 = vmatmul.mubr.bf16.gmra.mrb[0].mxu0 %v707
  %v1491 = vpop.f32.mrb[0].mxu0
  %v1492 = vadd.f32 0.0, %v1491
  %v1493 = vpop.f32.mrb[0].mxu0
  %v1494 = vadd.f32 0.0, %v1493
  %v1495 = vpop.f32.mrb[0].mxu0
  %v1496 = vadd.f32 0.0, %v1495
  %v1497 = vpop.f32.mrb[0].mxu0
  %v1498 = vadd.f32 0.0, %v1497
  %1499 = vmatprep.mubr.bf16.mxu0 %v712
  %1500 = vmatmul.mubr.bf16.gmra.mrb[0].mxu0 %v711
  %v1501 = vpop.f32.mrb[0].mxu0
  %v1502 = vadd.f32 0.0, %v1501
  %v1503 = vpop.f32.mrb[0].mxu0
  %v1504 = vadd.f32 0.0, %v1503
  %v1505 = vpop.f32.mrb[0].mxu0
  %v1506 = vadd.f32 0.0, %v1505
  %v1507 = vpop.f32.mrb[0].mxu0
  %v1508 = vadd.f32 0.0, %v1507
  %1509 = vmatprep.mubr.bf16.mxu0 %v716
  %1510 = vmatmul.mubr.bf16.gmra.mrb[0].mxu0 %v715
  %v1511 = vpop.f32.mrb[0].mxu0
  %v1512 = vadd.f32 0.0, %v1511
  %v1513 = vpop.f32.mrb[0].mxu0
  %v1514 = vadd.f32 0.0, %v1513
  %v1515 = vpop.f32.mrb[0].mxu0
  %v1516 = vadd.f32 0.0, %v1515
  %v1517 = vpop.f32.mrb[0].mxu0
  %v1518 = vadd.f32 0.0, %v1517
  %1519 = vdwg.mxu0
  %1520 = vmatprep.subr.bf16.mxu0 %v1072
  %1521 = vmatpush1.bf16.msra.mxu0 %v1071
  %1522 = vmatprep.subr.bf16.mxu0 %v1074
  %1523 = vmatpush1.bf16.msra.mxu0 %v1073
  %1524 = vmatprep.subr.bf16.mxu0 %v1076
  %1525 = vmatpush1.bf16.msra.mxu0 %v1075
  %1526 = vmatprep.subr.bf16.mxu0 %v1078
  %1527 = vmatpush1.bf16.msra.mxu0 %v1077
  %1528 = vmatprep.subr.bf16.mxu0 %v1080
  %1529 = vmatpush1.bf16.msra.mxu0 %v1079
  %1530 = vmatprep.subr.bf16.mxu0 %v1082
  %1531 = vmatpush1.bf16.msra.mxu0 %v1081
  %1532 = vmatprep.subr.bf16.mxu0 %v1084
  %1533 = vmatpush1.bf16.msra.mxu0 %v1083
  %1534 = vmatprep.subr.bf16.mxu0 %v1086
  %1535 = vmatpush1.bf16.msra.mxu0 %v1085
  %1536 = vmatprep.subr.bf16.mxu0 %v1088
  %1537 = vmatpush1.bf16.msra.mxu0 %v1087
  %1538 = vmatprep.subr.bf16.mxu0 %v1090
  %1539 = vmatpush1.bf16.msra.mxu0 %v1089
  %1540 = vmatprep.subr.bf16.mxu0 %v1092
  %1541 = vmatpush1.bf16.msra.mxu0 %v1091
  %1542 = vmatprep.subr.bf16.mxu0 %v1094
  %1543 = vmatpush1.bf16.msra.mxu0 %v1093
  %1544 = vmatprep.subr.bf16.mxu0 %v1096
  %1545 = vmatpush1.bf16.msra.mxu0 %v1095
  %1546 = vmatprep.subr.bf16.mxu0 %v1098
  %1547 = vmatpush1.bf16.msra.mxu0 %v1097
  %1548 = vmatprep.subr.bf16.mxu0 %v1100
  %1549 = vmatpush1.bf16.msra.mxu0 %v1099
  %1550 = vmatprep.subr.bf16.mxu0 %v1102
  %1551 = vmatpush1.bf16.msra.mxu0 %v1101
  %1552 = vmatprep.mubr.bf16.mxu0 %v594
  %1553 = vmatmul.mubr.bf16.gmra.mrb[0].mxu0 %v593
  %v1554 = vpop.f32.mrb[0].mxu0
  %v1555 = vadd.f32 %v1202, %v1554
  %v1556 = vpop.f32.mrb[0].mxu0
  %v1557 = vadd.f32 %v1204, %v1556
  %v1558 = vpop.f32.mrb[0].mxu0
  %v1559 = vadd.f32 %v1206, %v1558
  %v1560 = vpop.f32.mrb[0].mxu0
  %v1561 = vadd.f32 %v1208, %v1560
  %1562 = vmatprep.mubr.bf16.mxu0 %v598
  %1563 = vmatmul.mubr.bf16.gmra.mrb[0].mxu0 %v597
  %v1564 = vpop.f32.mrb[0].mxu0
  %v1565 = vadd.f32 %v1212, %v1564
  %v1566 = vpop.f32.mrb[0].mxu0
  %v1567 = vadd.f32 %v1214, %v1566
  %v1568 = vpop.f32.mrb[0].mxu0
  %v1569 = vadd.f32 %v1216, %v1568
  %v1570 = vpop.f32.mrb[0].mxu0
  %v1571 = vadd.f32 %v1218, %v1570
  %1572 = vmatprep.mubr.bf16.mxu0 %v602
  %1573 = vmatmul.mubr.bf16.gmra.mrb[0].mxu0 %v601
  %v1574 = vpop.f32.mrb[0].mxu0
  %v1575 = vadd.f32 %v1222, %v1574
  %v1576 = vpop.f32.mrb[0].mxu0
  %v1577 = vadd.f32 %v1224, %v1576
  %v1578 = vpop.f32.mrb[0].mxu0
  %v1579 = vadd.f32 %v1226, %v1578
  %v1580 = vpop.f32.mrb[0].mxu0
  %v1581 = vadd.f32 %v1228, %v1580
  %1582 = vmatprep.mubr.bf16.mxu0 %v606
  %1583 = vmatmul.mubr.bf16.gmra.mrb[0].mxu0 %v605
  %v1584 = vpop.f32.mrb[0].mxu0
  %v1585 = vadd.f32 %v1232, %v1584
  %v1586 = vpop.f32.mrb[0].mxu0
  %v1587 = vadd.f32 %v1234, %v1586
  %v1588 = vpop.f32.mrb[0].mxu0
  %v1589 = vadd.f32 %v1236, %v1588
  %v1590 = vpop.f32.mrb[0].mxu0
  %v1591 = vadd.f32 %v1238, %v1590
  %1592 = vmatprep.mubr.bf16.mxu0 %v610
  %1593 = vmatmul.mubr.bf16.gmra.mrb[0].mxu0 %v609
  %v1594 = vpop.f32.mrb[0].mxu0
  %v1595 = vadd.f32 %v1242, %v1594
  %v1596 = vpop.f32.mrb[0].mxu0
  %v1597 = vadd.f32 %v1244, %v1596
  %v1598 = vpop.f32.mrb[0].mxu0
  %v1599 = vadd.f32 %v1246, %v1598
  %v1600 = vpop.f32.mrb[0].mxu0
  %v1601 = vadd.f32 %v1248, %v1600
  %1602 = vmatprep.mubr.bf16.mxu0 %v614
  %1603 = vmatmul.mubr.bf16.gmra.mrb[0].mxu0 %v613
  %v1604 = vpop.f32.mrb[0].mxu0
  %v1605 = vadd.f32 %v1252, %v1604
  %v1606 = vpop.f32.mrb[0].mxu0
  %v1607 = vadd.f32 %v1254, %v1606
  %v1608 = vpop.f32.mrb[0].mxu0
  %v1609 = vadd.f32 %v1256, %v1608
  %v1610 = vpop.f32.mrb[0].mxu0
  %v1611 = vadd.f32 %v1258, %v1610
  %1612 = vmatprep.mubr.bf16.mxu0 %v618
  %1613 = vmatmul.mubr.bf16.gmra.mrb[0].mxu0 %v617
  %v1614 = vpop.f32.mrb[0].mxu0
  %v1615 = vadd.f32 %v1262, %v1614
  %v1616 = vpop.f32.mrb[0].mxu0
  %v1617 = vadd.f32 %v1264, %v1616
  %v1618 = vpop.f32.mrb[0].mxu0
  %v1619 = vadd.f32 %v1266, %v1618
  %v1620 = vpop.f32.mrb[0].mxu0
  %v1621 = vadd.f32 %v1268, %v1620
  %1622 = vmatprep.mubr.bf16.mxu0 %v622
  %1623 = vmatmul.mubr.bf16.gmra.mrb[0].mxu0 %v621
  %v1624 = vpop.f32.mrb[0].mxu0
  %v1625 = vadd.f32 %v1272, %v1624
  %v1626 = vpop.f32.mrb[0].mxu0
  %v1627 = vadd.f32 %v1274, %v1626
  %v1628 = vpop.f32.mrb[0].mxu0
  %v1629 = vadd.f32 %v1276, %v1628
  %v1630 = vpop.f32.mrb[0].mxu0
  %v1631 = vadd.f32 %v1278, %v1630
  %1632 = vmatprep.mubr.bf16.mxu0 %v626
  %1633 = vmatmul.mubr.bf16.gmra.mrb[0].mxu0 %v625
  %v1634 = vpop.f32.mrb[0].mxu0
  %v1635 = vadd.f32 %v1282, %v1634
  %v1636 = vpop.f32.mrb[0].mxu0
  %v1637 = vadd.f32 %v1284, %v1636
  %v1638 = vpop.f32.mrb[0].mxu0
  %v1639 = vadd.f32 %v1286, %v1638
  %v1640 = vpop.f32.mrb[0].mxu0
  %v1641 = vadd.f32 %v1288, %v1640
  %1642 = vmatprep.mubr.bf16.mxu0 %v630
  %1643 = vmatmul.mubr.bf16.gmra.mrb[0].mxu0 %v629
  %v1644 = vpop.f32.mrb[0].mxu0
  %v1645 = vadd.f32 %v1292, %v1644
  %v1646 = vpop.f32.mrb[0].mxu0
  %v1647 = vadd.f32 %v1294, %v1646
  %v1648 = vpop.f32.mrb[0].mxu0
  %v1649 = vadd.f32 %v1296, %v1648
  %v1650 = vpop.f32.mrb[0].mxu0
  %v1651 = vadd.f32 %v1298, %v1650
  %1652 = vmatprep.mubr.bf16.mxu0 %v634
  %1653 = vmatmul.mubr.bf16.gmra.mrb[0].mxu0 %v633
  %v1654 = vpop.f32.mrb[0].mxu0
  %v1655 = vadd.f32 %v1302, %v1654
  %v1656 = vpop.f32.mrb[0].mxu0
  %v1657 = vadd.f32 %v1304, %v1656
  %v1658 = vpop.f32.mrb[0].mxu0
  %v1659 = vadd.f32 %v1306, %v1658
  %v1660 = vpop.f32.mrb[0].mxu0
  %v1661 = vadd.f32 %v1308, %v1660
  %1662 = vmatprep.mubr.bf16.mxu0 %v638
  %1663 = vmatmul.mubr.bf16.gmra.mrb[0].mxu0 %v637
  %v1664 = vpop.f32.mrb[0].mxu0
  %v1665 = vadd.f32 %v1312, %v1664
  %v1666 = vpop.f32.mrb[0].mxu0
  %v1667 = vadd.f32 %v1314, %v1666
  %v1668 = vpop.f32.mrb[0].mxu0
  %v1669 = vadd.f32 %v1316, %v1668
  %v1670 = vpop.f32.mrb[0].mxu0
  %v1671 = vadd.f32 %v1318, %v1670
  %1672 = vmatprep.mubr.bf16.mxu0 %v642
  %1673 = vmatmul.mubr.bf16.gmra.mrb[0].mxu0 %v641
  %v1674 = vpop.f32.mrb[0].mxu0
  %v1675 = vadd.f32 %v1322, %v1674
  %v1676 = vpop.f32.mrb[0].mxu0
  %v1677 = vadd.f32 %v1324, %v1676
  %v1678 = vpop.f32.mrb[0].mxu0
  %v1679 = vadd.f32 %v1326, %v1678
  %v1680 = vpop.f32.mrb[0].mxu0
  %v1681 = vadd.f32 %v1328, %v1680
  %1682 = vmatprep.mubr.bf16.mxu0 %v646
  %1683 = vmatmul.mubr.bf16.gmra.mrb[0].mxu0 %v645
  %v1684 = vpop.f32.mrb[0].mxu0
  %v1685 = vadd.f32 %v1332, %v1684
  %v1686 = vpop.f32.mrb[0].mxu0
  %v1687 = vadd.f32 %v1334, %v1686
  %v1688 = vpop.f32.mrb[0].mxu0
  %v1689 = vadd.f32 %v1336, %v1688
  %v1690 = vpop.f32.mrb[0].mxu0
  %v1691 = vadd.f32 %v1338, %v1690
  %1692 = vmatprep.mubr.bf16.mxu0 %v650
  %1693 = vmatmul.mubr.bf16.gmra.mrb[0].mxu0 %v649
  %v1694 = vpop.f32.mrb[0].mxu0
  %v1695 = vadd.f32 %v1342, %v1694
  %v1696 = vpop.f32.mrb[0].mxu0
  %v1697 = vadd.f32 %v1344, %v1696
  %v1698 = vpop.f32.mrb[0].mxu0
  %v1699 = vadd.f32 %v1346, %v1698
  %v1700 = vpop.f32.mrb[0].mxu0
  %v1701 = vadd.f32 %v1348, %v1700
  %1702 = vmatprep.mubr.bf16.mxu0 %v654
  %1703 = vmatmul.mubr.bf16.gmra.mrb[0].mxu0 %v653
  %v1704 = vpop.f32.mrb[0].mxu0
  %v1705 = vadd.f32 %v1352, %v1704
  %v1706 = vpop.f32.mrb[0].mxu0
  %v1707 = vadd.f32 %v1354, %v1706
  %v1708 = vpop.f32.mrb[0].mxu0
  %v1709 = vadd.f32 %v1356, %v1708
  %v1710 = vpop.f32.mrb[0].mxu0
  %v1711 = vadd.f32 %v1358, %v1710
  %1712 = vmatprep.mubr.bf16.mxu0 %v658
  %1713 = vmatmul.mubr.bf16.gmra.mrb[0].mxu0 %v657
  %v1714 = vpop.f32.mrb[0].mxu0
  %v1715 = vadd.f32 %v1362, %v1714
  %v1716 = vpop.f32.mrb[0].mxu0
  %v1717 = vadd.f32 %v1364, %v1716
  %v1718 = vpop.f32.mrb[0].mxu0
  %v1719 = vadd.f32 %v1366, %v1718
  %v1720 = vpop.f32.mrb[0].mxu0
  %v1721 = vadd.f32 %v1368, %v1720
  %1722 = vmatprep.mubr.bf16.mxu0 %v662
  %1723 = vmatmul.mubr.bf16.gmra.mrb[0].mxu0 %v661
  %v1724 = vpop.f32.mrb[0].mxu0
  %v1725 = vadd.f32 %v1372, %v1724
  %v1726 = vpop.f32.mrb[0].mxu0
  %v1727 = vadd.f32 %v1374, %v1726
  %v1728 = vpop.f32.mrb[0].mxu0
  %v1729 = vadd.f32 %v1376, %v1728
  %v1730 = vpop.f32.mrb[0].mxu0
  %v1731 = vadd.f32 %v1378, %v1730
  %1732 = vmatprep.mubr.bf16.mxu0 %v666
  %1733 = vmatmul.mubr.bf16.gmra.mrb[0].mxu0 %v665
  %v1734 = vpop.f32.mrb[0].mxu0
  %v1735 = vadd.f32 %v1382, %v1734
  %v1736 = vpop.f32.mrb[0].mxu0
  %v1737 = vadd.f32 %v1384, %v1736
  %v1738 = vpop.f32.mrb[0].mxu0
  %v1739 = vadd.f32 %v1386, %v1738
  %v1740 = vpop.f32.mrb[0].mxu0
  %v1741 = vadd.f32 %v1388, %v1740
  %1742 = vmatprep.mubr.bf16.mxu0 %v670
  %1743 = vmatmul.mubr.bf16.gmra.mrb[0].mxu0 %v669
  %v1744 = vpop.f32.mrb[0].mxu0
  %v1745 = vadd.f32 %v1392, %v1744
  %v1746 = vpop.f32.mrb[0].mxu0
  %v1747 = vadd.f32 %v1394, %v1746
  %v1748 = vpop.f32.mrb[0].mxu0
  %v1749 = vadd.f32 %v1396, %v1748
  %v1750 = vpop.f32.mrb[0].mxu0
  %v1751 = vadd.f32 %v1398, %v1750
  %1752 = vmatprep.mubr.bf16.mxu0 %v674
  %1753 = vmatmul.mubr.bf16.gmra.mrb[0].mxu0 %v673
  %v1754 = vpop.f32.mrb[0].mxu0
  %v1755 = vadd.f32 %v1402, %v1754
  %v1756 = vpop.f32.mrb[0].mxu0
  %v1757 = vadd.f32 %v1404, %v1756
  %v1758 = vpop.f32.mrb[0].mxu0
  %v1759 = vadd.f32 %v1406, %v1758
  %v1760 = vpop.f32.mrb[0].mxu0
  %v1761 = vadd.f32 %v1408, %v1760
  %1762 = vmatprep.mubr.bf16.mxu0 %v678
  %1763 = vmatmul.mubr.bf16.gmra.mrb[0].mxu0 %v677
  %v1764 = vpop.f32.mrb[0].mxu0
  %v1765 = vadd.f32 %v1412, %v1764
  %v1766 = vpop.f32.mrb[0].mxu0
  %v1767 = vadd.f32 %v1414, %v1766
  %v1768 = vpop.f32.mrb[0].mxu0
  %v1769 = vadd.f32 %v1416, %v1768
  %v1770 = vpop.f32.mrb[0].mxu0
  %v1771 = vadd.f32 %v1418, %v1770
  %1772 = vmatprep.mubr.bf16.mxu0 %v682
  %1773 = vmatmul.mubr.bf16.gmra.mrb[0].mxu0 %v681
  %v1774 = vpop.f32.mrb[0].mxu0
  %v1775 = vadd.f32 %v1422, %v1774
  %v1776 = vpop.f32.mrb[0].mxu0
  %v1777 = vadd.f32 %v1424, %v1776
  %v1778 = vpop.f32.mrb[0].mxu0
  %v1779 = vadd.f32 %v1426, %v1778
  %v1780 = vpop.f32.mrb[0].mxu0
  %v1781 = vadd.f32 %v1428, %v1780
  %1782 = vmatprep.mubr.bf16.mxu0 %v686
  %1783 = vmatmul.mubr.bf16.gmra.mrb[0].mxu0 %v685
  %v1784 = vpop.f32.mrb[0].mxu0
  %v1785 = vadd.f32 %v1432, %v1784
  %v1786 = vpop.f32.mrb[0].mxu0
  %v1787 = vadd.f32 %v1434, %v1786
  %v1788 = vpop.f32.mrb[0].mxu0
  %v1789 = vadd.f32 %v1436, %v1788
  %v1790 = vpop.f32.mrb[0].mxu0
  %v1791 = vadd.f32 %v1438, %v1790
  %1792 = vmatprep.mubr.bf16.mxu0 %v690
  %1793 = vmatmul.mubr.bf16.gmra.mrb[0].mxu0 %v689
  %v1794 = vpop.f32.mrb[0].mxu0
  %v1795 = vadd.f32 %v1442, %v1794
  %v1796 = vpop.f32.mrb[0].mxu0
  %v1797 = vadd.f32 %v1444, %v1796
  %v1798 = vpop.f32.mrb[0].mxu0
  %v1799 = vadd.f32 %v1446, %v1798
  %v1800 = vpop.f32.mrb[0].mxu0
  %v1801 = vadd.f32 %v1448, %v1800
  %1802 = vmatprep.mubr.bf16.mxu0 %v694
  %1803 = vmatmul.mubr.bf16.gmra.mrb[0].mxu0 %v693
  %v1804 = vpop.f32.mrb[0].mxu0
  %v1805 = vadd.f32 %v1452, %v1804
  %v1806 = vpop.f32.mrb[0].mxu0
  %v1807 = vadd.f32 %v1454, %v1806
  %v1808 = vpop.f32.mrb[0].mxu0
  %v1809 = vadd.f32 %v1456, %v1808
  %v1810 = vpop.f32.mrb[0].mxu0
  %v1811 = vadd.f32 %v1458, %v1810
  %1812 = vmatprep.mubr.bf16.mxu0 %v698
  %1813 = vmatmul.mubr.bf16.gmra.mrb[0].mxu0 %v697
  %v1814 = vpop.f32.mrb[0].mxu0
  %v1815 = vadd.f32 %v1462, %v1814
  %v1816 = vpop.f32.mrb[0].mxu0
  %v1817 = vadd.f32 %v1464, %v1816
  %v1818 = vpop.f32.mrb[0].mxu0
  %v1819 = vadd.f32 %v1466, %v1818
  %v1820 = vpop.f32.mrb[0].mxu0
  %v1821 = vadd.f32 %v1468, %v1820
  %1822 = vmatprep.mubr.bf16.mxu0 %v702
  %1823 = vmatmul.mubr.bf16.gmra.mrb[0].mxu0 %v701
  %v1824 = vpop.f32.mrb[0].mxu0
  %v1825 = vadd.f32 %v1472, %v1824
  %v1826 = vpop.f32.mrb[0].mxu0
  %v1827 = vadd.f32 %v1474, %v1826
  %v1828 = vpop.f32.mrb[0].mxu0
  %v1829 = vadd.f32 %v1476, %v1828
  %v1830 = vpop.f32.mrb[0].mxu0
  %v1831 = vadd.f32 %v1478, %v1830
  %1832 = vmatprep.mubr.bf16.mxu0 %v706
  %1833 = vmatmul.mubr.bf16.gmra.mrb[0].mxu0 %v705
  %v1834 = vpop.f32.mrb[0].mxu0
  %v1835 = vadd.f32 %v1482, %v1834
  %v1836 = vpop.f32.mrb[0].mxu0
  %v1837 = vadd.f32 %v1484, %v1836
  %v1838 = vpop.f32.mrb[0].mxu0
  %v1839 = vadd.f32 %v1486, %v1838
  %v1840 = vpop.f32.mrb[0].mxu0
  %v1841 = vadd.f32 %v1488, %v1840
  %1842 = vmatprep.mubr.bf16.mxu0 %v710
  %1843 = vmatmul.mubr.bf16.gmra.mrb[0].mxu0 %v709
  %v1844 = vpop.f32.mrb[0].mxu0
  %v1845 = vadd.f32 %v1492, %v1844
  %v1846 = vpop.f32.mrb[0].mxu0
  %v1847 = vadd.f32 %v1494, %v1846
  %v1848 = vpop.f32.mrb[0].mxu0
  %v1849 = vadd.f32 %v1496, %v1848
  %v1850 = vpop.f32.mrb[0].mxu0
  %v1851 = vadd.f32 %v1498, %v1850
  %1852 = vmatprep.mubr.bf16.mxu0 %v714
  %1853 = vmatmul.mubr.bf16.gmra.mrb[0].mxu0 %v713
  %v1854 = vpop.f32.mrb[0].mxu0
  %v1855 = vadd.f32 %v1502, %v1854
  %v1856 = vpop.f32.mrb[0].mxu0
  %v1857 = vadd.f32 %v1504, %v1856
  %v1858 = vpop.f32.mrb[0].mxu0
  %v1859 = vadd.f32 %v1506, %v1858
  %v1860 = vpop.f32.mrb[0].mxu0
  %v1861 = vadd.f32 %v1508, %v1860
  %1862 = vmatprep.mubr.bf16.mxu0 %v718
  %1863 = vmatmul.mubr.bf16.gmra.mrb[0].mxu0 %v717
  %v1864 = vpop.f32.mrb[0].mxu0
  %v1865 = vadd.f32 %v1512, %v1864
  %v1866 = vpop.f32.mrb[0].mxu0
  %v1867 = vadd.f32 %v1514, %v1866
  %v1868 = vpop.f32.mrb[0].mxu0
  %v1869 = vadd.f32 %v1516, %v1868
  %v1870 = vpop.f32.mrb[0].mxu0
  %v1871 = vadd.f32 %v1518, %v1870
  %1872 = vdwg.mxu0
  %s1873 = sld [smem:[#allocation2]]
  %v1874 = vmax.f32 %v1555, 0.0
  %v1875 = vmax.f32 %v1557, 0.0
  %v1876 = vmax.f32 %v1559, 0.0
  %v1877 = vmax.f32 %v1561, 0.0
  %v1878 = vmax.f32 %v1565, 0.0
  %v1879 = vmax.f32 %v1567, 0.0
  %v1880 = vmax.f32 %v1569, 0.0
  %v1881 = vmax.f32 %v1571, 0.0
  %v1882 = vmax.f32 %v1575, 0.0
  %v1883 = vmax.f32 %v1577, 0.0
  %v1884 = vmax.f32 %v1579, 0.0
  %v1885 = vmax.f32 %v1581, 0.0
  %v1886 = vmax.f32 %v1585, 0.0
  %v1887 = vmax.f32 %v1587, 0.0
  %v1888 = vmax.f32 %v1589, 0.0
  %v1889 = vmax.f32 %v1591, 0.0
  %v1890 = vmax.f32 %v1595, 0.0
  %v1891 = vmax.f32 %v1597, 0.0
  %v1892 = vmax.f32 %v1599, 0.0
  %v1893 = vmax.f32 %v1601, 0.0
  %v1894 = vmax.f32 %v1605, 0.0
  %v1895 = vmax.f32 %v1607, 0.0
  %v1896 = vmax.f32 %v1609, 0.0
  %v1897 = vmax.f32 %v1611, 0.0
  %v1898 = vmax.f32 %v1615, 0.0
  %v1899 = vmax.f32 %v1617, 0.0
  %v1900 = vmax.f32 %v1619, 0.0
  %v1901 = vmax.f32 %v1621, 0.0
  %v1902 = vmax.f32 %v1625, 0.0
  %v1903 = vmax.f32 %v1627, 0.0
  %v1904 = vmax.f32 %v1629, 0.0
  %v1905 = vmax.f32 %v1631, 0.0
  %v1906 = vmax.f32 %v1635, 0.0
  %v1907 = vmax.f32 %v1637, 0.0
  %v1908 = vmax.f32 %v1639, 0.0
  %v1909 = vmax.f32 %v1641, 0.0
  %v1910 = vmax.f32 %v1645, 0.0
  %v1911 = vmax.f32 %v1647, 0.0
  %v1912 = vmax.f32 %v1649, 0.0
  %v1913 = vmax.f32 %v1651, 0.0
  %v1914 = vmax.f32 %v1655, 0.0
  %v1915 = vmax.f32 %v1657, 0.0
  %v1916 = vmax.f32 %v1659, 0.0
  %v1917 = vmax.f32 %v1661, 0.0
  %v1918 = vmax.f32 %v1665, 0.0
  %v1919 = vmax.f32 %v1667, 0.0
  %v1920 = vmax.f32 %v1669, 0.0
  %v1921 = vmax.f32 %v1671, 0.0
  %v1922 = vmax.f32 %v1675, 0.0
  %v1923 = vmax.f32 %v1677, 0.0
  %v1924 = vmax.f32 %v1679, 0.0
  %v1925 = vmax.f32 %v1681, 0.0
  %v1926 = vmax.f32 %v1685, 0.0
  %v1927 = vmax.f32 %v1687, 0.0
  %v1928 = vmax.f32 %v1689, 0.0
  %v1929 = vmax.f32 %v1691, 0.0
  %v1930 = vmax.f32 %v1695, 0.0
  %v1931 = vmax.f32 %v1697, 0.0
  %v1932 = vmax.f32 %v1699, 0.0
  %v1933 = vmax.f32 %v1701, 0.0
  %v1934 = vmax.f32 %v1705, 0.0
  %v1935 = vmax.f32 %v1707, 0.0
  %v1936 = vmax.f32 %v1709, 0.0
  %v1937 = vmax.f32 %v1711, 0.0
  %v1938 = vmax.f32 %v1715, 0.0
  %v1939 = vmax.f32 %v1717, 0.0
  %v1940 = vmax.f32 %v1719, 0.0
  %v1941 = vmax.f32 %v1721, 0.0
  %v1942 = vmax.f32 %v1725, 0.0
  %v1943 = vmax.f32 %v1727, 0.0
  %v1944 = vmax.f32 %v1729, 0.0
  %v1945 = vmax.f32 %v1731, 0.0
  %v1946 = vmax.f32 %v1735, 0.0
  %v1947 = vmax.f32 %v1737, 0.0
  %v1948 = vmax.f32 %v1739, 0.0
  %v1949 = vmax.f32 %v1741, 0.0
  %v1950 = vmax.f32 %v1745, 0.0
  %v1951 = vmax.f32 %v1747, 0.0
  %v1952 = vmax.f32 %v1749, 0.0
  %v1953 = vmax.f32 %v1751, 0.0
  %v1954 = vmax.f32 %v1755, 0.0
  %v1955 = vmax.f32 %v1757, 0.0
  %v1956 = vmax.f32 %v1759, 0.0
  %v1957 = vmax.f32 %v1761, 0.0
  %v1958 = vmax.f32 %v1765, 0.0
  %v1959 = vmax.f32 %v1767, 0.0
  %v1960 = vmax.f32 %v1769, 0.0
  %v1961 = vmax.f32 %v1771, 0.0
  %v1962 = vmax.f32 %v1775, 0.0
  %v1963 = vmax.f32 %v1777, 0.0
  %v1964 = vmax.f32 %v1779, 0.0
  %v1965 = vmax.f32 %v1781, 0.0
  %v1966 = vmax.f32 %v1785, 0.0
  %v1967 = vmax.f32 %v1787, 0.0
  %v1968 = vmax.f32 %v1789, 0.0
  %v1969 = vmax.f32 %v1791, 0.0
  %v1970 = vmax.f32 %v1795, 0.0
  %v1971 = vmax.f32 %v1797, 0.0
  %v1972 = vmax.f32 %v1799, 0.0
  %v1973 = vmax.f32 %v1801, 0.0
  %v1974 = vmax.f32 %v1805, 0.0
  %v1975 = vmax.f32 %v1807, 0.0
  %v1976 = vmax.f32 %v1809, 0.0
  %v1977 = vmax.f32 %v1811, 0.0
  %v1978 = vmax.f32 %v1815, 0.0
  %v1979 = vmax.f32 %v1817, 0.0
  %v1980 = vmax.f32 %v1819, 0.0
  %v1981 = vmax.f32 %v1821, 0.0
  %v1982 = vmax.f32 %v1825, 0.0
  %v1983 = vmax.f32 %v1827, 0.0
  %v1984 = vmax.f32 %v1829, 0.0
  %v1985 = vmax.f32 %v1831, 0.0
  %v1986 = vmax.f32 %v1835, 0.0
  %v1987 = vmax.f32 %v1837, 0.0
  %v1988 = vmax.f32 %v1839, 0.0
  %v1989 = vmax.f32 %v1841, 0.0
  %v1990 = vmax.f32 %v1845, 0.0
  %v1991 = vmax.f32 %v1847, 0.0
  %v1992 = vmax.f32 %v1849, 0.0
  %v1993 = vmax.f32 %v1851, 0.0
  %v1994 = vmax.f32 %v1855, 0.0
  %v1995 = vmax.f32 %v1857, 0.0
  %v1996 = vmax.f32 %v1859, 0.0
  %v1997 = vmax.f32 %v1861, 0.0
  %v1998 = vmax.f32 %v1865, 0.0
  %v1999 = vmax.f32 %v1867, 0.0
  %v2000 = vmax.f32 %v1869, 0.0
  %v2001 = vmax.f32 %v1871, 0.0
  %v2002 = vmin.f32 %v1555, 0.0
  %v2003 = vmin.f32 %v1557, 0.0
  %v2004 = vmin.f32 %v1559, 0.0
  %v2005 = vmin.f32 %v1561, 0.0
  %v2006 = vmin.f32 %v1565, 0.0
  %v2007 = vmin.f32 %v1567, 0.0
  %v2008 = vmin.f32 %v1569, 0.0
  %v2009 = vmin.f32 %v1571, 0.0
  %v2010 = vmin.f32 %v1575, 0.0
  %v2011 = vmin.f32 %v1577, 0.0
  %v2012 = vmin.f32 %v1579, 0.0
  %v2013 = vmin.f32 %v1581, 0.0
  %v2014 = vmin.f32 %v1585, 0.0
  %v2015 = vmin.f32 %v1587, 0.0
  %v2016 = vmin.f32 %v1589, 0.0
  %v2017 = vmin.f32 %v1591, 0.0
  %v2018 = vmin.f32 %v1595, 0.0
  %v2019 = vmin.f32 %v1597, 0.0
  %v2020 = vmin.f32 %v1599, 0.0
  %v2021 = vmin.f32 %v1601, 0.0
  %v2022 = vmin.f32 %v1605, 0.0
  %v2023 = vmin.f32 %v1607, 0.0
  %v2024 = vmin.f32 %v1609, 0.0
  %v2025 = vmin.f32 %v1611, 0.0
  %v2026 = vmin.f32 %v1615, 0.0
  %v2027 = vmin.f32 %v1617, 0.0
  %v2028 = vmin.f32 %v1619, 0.0
  %v2029 = vmin.f32 %v1621, 0.0
  %v2030 = vmin.f32 %v1625, 0.0
  %v2031 = vmin.f32 %v1627, 0.0
  %v2032 = vmin.f32 %v1629, 0.0
  %v2033 = vmin.f32 %v1631, 0.0
  %v2034 = vmin.f32 %v1635, 0.0
  %v2035 = vmin.f32 %v1637, 0.0
  %v2036 = vmin.f32 %v1639, 0.0
  %v2037 = vmin.f32 %v1641, 0.0
  %v2038 = vmin.f32 %v1645, 0.0
  %v2039 = vmin.f32 %v1647, 0.0
  %v2040 = vmin.f32 %v1649, 0.0
  %v2041 = vmin.f32 %v1651, 0.0
  %v2042 = vmin.f32 %v1655, 0.0
  %v2043 = vmin.f32 %v1657, 0.0
  %v2044 = vmin.f32 %v1659, 0.0
  %v2045 = vmin.f32 %v1661, 0.0
  %v2046 = vmin.f32 %v1665, 0.0
  %v2047 = vmin.f32 %v1667, 0.0
  %v2048 = vmin.f32 %v1669, 0.0
  %v2049 = vmin.f32 %v1671, 0.0
  %v2050 = vmin.f32 %v1675, 0.0
  %v2051 = vmin.f32 %v1677, 0.0
  %v2052 = vmin.f32 %v1679, 0.0
  %v2053 = vmin.f32 %v1681, 0.0
  %v2054 = vmin.f32 %v1685, 0.0
  %v2055 = vmin.f32 %v1687, 0.0
  %v2056 = vmin.f32 %v1689, 0.0
  %v2057 = vmin.f32 %v1691, 0.0
  %v2058 = vmin.f32 %v1695, 0.0
  %v2059 = vmin.f32 %v1697, 0.0
  %v2060 = vmin.f32 %v1699, 0.0
  %v2061 = vmin.f32 %v1701, 0.0
  %v2062 = vmin.f32 %v1705, 0.0
  %v2063 = vmin.f32 %v1707, 0.0
  %v2064 = vmin.f32 %v1709, 0.0
  %v2065 = vmin.f32 %v1711, 0.0
  %v2066 = vmin.f32 %v1715, 0.0
  %v2067 = vmin.f32 %v1717, 0.0
  %v2068 = vmin.f32 %v1719, 0.0
  %v2069 = vmin.f32 %v1721, 0.0
  %v2070 = vmin.f32 %v1725, 0.0
  %v2071 = vmin.f32 %v1727, 0.0
  %v2072 = vmin.f32 %v1729, 0.0
  %v2073 = vmin.f32 %v1731, 0.0
  %v2074 = vmin.f32 %v1735, 0.0
  %v2075 = vmin.f32 %v1737, 0.0
  %v2076 = vmin.f32 %v1739, 0.0
  %v2077 = vmin.f32 %v1741, 0.0
  %v2078 = vmin.f32 %v1745, 0.0
  %v2079 = vmin.f32 %v1747, 0.0
  %v2080 = vmin.f32 %v1749, 0.0
  %v2081 = vmin.f32 %v1751, 0.0
  %v2082 = vmin.f32 %v1755, 0.0
  %v2083 = vmin.f32 %v1757, 0.0
  %v2084 = vmin.f32 %v1759, 0.0
  %v2085 = vmin.f32 %v1761, 0.0
  %v2086 = vmin.f32 %v1765, 0.0
  %v2087 = vmin.f32 %v1767, 0.0
  %v2088 = vmin.f32 %v1769, 0.0
  %v2089 = vmin.f32 %v1771, 0.0
  %v2090 = vmin.f32 %v1775, 0.0
  %v2091 = vmin.f32 %v1777, 0.0
  %v2092 = vmin.f32 %v1779, 0.0
  %v2093 = vmin.f32 %v1781, 0.0
  %v2094 = vmin.f32 %v1785, 0.0
  %v2095 = vmin.f32 %v1787, 0.0
  %v2096 = vmin.f32 %v1789, 0.0
  %v2097 = vmin.f32 %v1791, 0.0
  %v2098 = vmin.f32 %v1795, 0.0
  %v2099 = vmin.f32 %v1797, 0.0
  %v2100 = vmin.f32 %v1799, 0.0
  %v2101 = vmin.f32 %v1801, 0.0
  %v2102 = vmin.f32 %v1805, 0.0
  %v2103 = vmin.f32 %v1807, 0.0
  %v2104 = vmin.f32 %v1809, 0.0
  %v2105 = vmin.f32 %v1811, 0.0
  %v2106 = vmin.f32 %v1815, 0.0
  %v2107 = vmin.f32 %v1817, 0.0
  %v2108 = vmin.f32 %v1819, 0.0
  %v2109 = vmin.f32 %v1821, 0.0
  %v2110 = vmin.f32 %v1825, 0.0
  %v2111 = vmin.f32 %v1827, 0.0
  %v2112 = vmin.f32 %v1829, 0.0
  %v2113 = vmin.f32 %v1831, 0.0
  %v2114 = vmin.f32 %v1835, 0.0
  %v2115 = vmin.f32 %v1837, 0.0
  %v2116 = vmin.f32 %v1839, 0.0
  %v2117 = vmin.f32 %v1841, 0.0
  %v2118 = vmin.f32 %v1845, 0.0
  %v2119 = vmin.f32 %v1847, 0.0
  %v2120 = vmin.f32 %v1849, 0.0
  %v2121 = vmin.f32 %v1851, 0.0
  %v2122 = vmin.f32 %v1855, 0.0
  %v2123 = vmin.f32 %v1857, 0.0
  %v2124 = vmin.f32 %v1859, 0.0
  %v2125 = vmin.f32 %v1861, 0.0
  %v2126 = vmin.f32 %v1865, 0.0
  %v2127 = vmin.f32 %v1867, 0.0
  %v2128 = vmin.f32 %v1869, 0.0
  %v2129 = vmin.f32 %v1871, 0.0
  %v2130 = vstv %s1873
  %v2131 = vmul.f32 %v2130, %v2002
  %v2132 = vmul.f32 %v2130, %v2003
  %v2133 = vmul.f32 %v2130, %v2004
  %v2134 = vmul.f32 %v2130, %v2005
  %v2135 = vmul.f32 %v2130, %v2006
  %v2136 = vmul.f32 %v2130, %v2007
  %v2137 = vmul.f32 %v2130, %v2008
  %v2138 = vmul.f32 %v2130, %v2009
  %v2139 = vmul.f32 %v2130, %v2010
  %v2140 = vmul.f32 %v2130, %v2011
  %v2141 = vmul.f32 %v2130, %v2012
  %v2142 = vmul.f32 %v2130, %v2013
  %v2143 = vmul.f32 %v2130, %v2014
  %v2144 = vmul.f32 %v2130, %v2015
  %v2145 = vmul.f32 %v2130, %v2016
  %v2146 = vmul.f32 %v2130, %v2017
  %v2147 = vmul.f32 %v2130, %v2018
  %v2148 = vmul.f32 %v2130, %v2019
  %v2149 = vmul.f32 %v2130, %v2020
  %v2150 = vmul.f32 %v2130, %v2021
  %v2151 = vmul.f32 %v2130, %v2022
  %v2152 = vmul.f32 %v2130, %v2023
  %v2153 = vmul.f32 %v2130, %v2024
  %v2154 = vmul.f32 %v2130, %v2025
  %v2155 = vmul.f32 %v2130, %v2026
  %v2156 = vmul.f32 %v2130, %v2027
  %v2157 = vmul.f32 %v2130, %v2028
  %v2158 = vmul.f32 %v2130, %v2029
  %v2159 = vmul.f32 %v2130, %v2030
  %v2160 = vmul.f32 %v2130, %v2031
  %v2161 = vmul.f32 %v2130, %v2032
  %v2162 = vmul.f32 %v2130, %v2033
  %v2163 = vmul.f32 %v2130, %v2034
  %v2164 = vmul.f32 %v2130, %v2035
  %v2165 = vmul.f32 %v2130, %v2036
  %v2166 = vmul.f32 %v2130, %v2037
  %v2167 = vmul.f32 %v2130, %v2038
  %v2168 = vmul.f32 %v2130, %v2039
  %v2169 = vmul.f32 %v2130, %v2040
  %v2170 = vmul.f32 %v2130, %v2041
  %v2171 = vmul.f32 %v2130, %v2042
  %v2172 = vmul.f32 %v2130, %v2043
  %v2173 = vmul.f32 %v2130, %v2044
  %v2174 = vmul.f32 %v2130, %v2045
  %v2175 = vmul.f32 %v2130, %v2046
  %v2176 = vmul.f32 %v2130, %v2047
  %v2177 = vmul.f32 %v2130, %v2048
  %v2178 = vmul.f32 %v2130, %v2049
  %v2179 = vmul.f32 %v2130, %v2050
  %v2180 = vmul.f32 %v2130, %v2051
  %v2181 = vmul.f32 %v2130, %v2052
  %v2182 = vmul.f32 %v2130, %v2053
  %v2183 = vmul.f32 %v2130, %v2054
  %v2184 = vmul.f32 %v2130, %v2055
  %v2185 = vmul.f32 %v2130, %v2056
  %v2186 = vmul.f32 %v2130, %v2057
  %v2187 = vmul.f32 %v2130, %v2058
  %v2188 = vmul.f32 %v2130, %v2059
  %v2189 = vmul.f32 %v2130, %v2060
  %v2190 = vmul.f32 %v2130, %v2061
  %v2191 = vmul.f32 %v2130, %v2062
  %v2192 = vmul.f32 %v2130, %v2063
  %v2193 = vmul.f32 %v2130, %v2064
  %v2194 = vmul.f32 %v2130, %v2065
  %v2195 = vmul.f32 %v2130, %v2066
  %v2196 = vmul.f32 %v2130, %v2067
  %v2197 = vmul.f32 %v2130, %v2068
  %v2198 = vmul.f32 %v2130, %v2069
  %v2199 = vmul.f32 %v2130, %v2070
  %v2200 = vmul.f32 %v2130, %v2071
  %v2201 = vmul.f32 %v2130, %v2072
  %v2202 = vmul.f32 %v2130, %v2073
  %v2203 = vmul.f32 %v2130, %v2074
  %v2204 = vmul.f32 %v2130, %v2075
  %v2205 = vmul.f32 %v2130, %v2076
  %v2206 = vmul.f32 %v2130, %v2077
  %v2207 = vmul.f32 %v2130, %v2078
  %v2208 = vmul.f32 %v2130, %v2079
  %v2209 = vmul.f32 %v2130, %v2080
  %v2210 = vmul.f32 %v2130, %v2081
  %v2211 = vmul.f32 %v2130, %v2082
  %v2212 = vmul.f32 %v2130, %v2083
  %v2213 = vmul.f32 %v2130, %v2084
  %v2214 = vmul.f32 %v2130, %v2085
  %v2215 = vmul.f32 %v2130, %v2086
  %v2216 = vmul.f32 %v2130, %v2087
  %v2217 = vmul.f32 %v2130, %v2088
  %v2218 = vmul.f32 %v2130, %v2089
  %v2219 = vmul.f32 %v2130, %v2090
  %v2220 = vmul.f32 %v2130, %v2091
  %v2221 = vmul.f32 %v2130, %v2092
  %v2222 = vmul.f32 %v2130, %v2093
  %v2223 = vmul.f32 %v2130, %v2094
  %v2224 = vmul.f32 %v2130, %v2095
  %v2225 = vmul.f32 %v2130, %v2096
  %v2226 = vmul.f32 %v2130, %v2097
  %v2227 = vmul.f32 %v2130, %v2098
  %v2228 = vmul.f32 %v2130, %v2099
  %v2229 = vmul.f32 %v2130, %v2100
  %v2230 = vmul.f32 %v2130, %v2101
  %v2231 = vmul.f32 %v2130, %v2102
  %v2232 = vmul.f32 %v2130, %v2103
  %v2233 = vmul.f32 %v2130, %v2104
  %v2234 = vmul.f32 %v2130, %v2105
  %v2235 = vmul.f32 %v2130, %v2106
  %v2236 = vmul.f32 %v2130, %v2107
  %v2237 = vmul.f32 %v2130, %v2108
  %v2238 = vmul.f32 %v2130, %v2109
  %v2239 = vmul.f32 %v2130, %v2110
  %v2240 = vmul.f32 %v2130, %v2111
  %v2241 = vmul.f32 %v2130, %v2112
  %v2242 = vmul.f32 %v2130, %v2113
  %v2243 = vmul.f32 %v2130, %v2114
  %v2244 = vmul.f32 %v2130, %v2115
  %v2245 = vmul.f32 %v2130, %v2116
  %v2246 = vmul.f32 %v2130, %v2117
  %v2247 = vmul.f32 %v2130, %v2118
  %v2248 = vmul.f32 %v2130, %v2119
  %v2249 = vmul.f32 %v2130, %v2120
  %v2250 = vmul.f32 %v2130, %v2121
  %v2251 = vmul.f32 %v2130, %v2122
  %v2252 = vmul.f32 %v2130, %v2123
  %v2253 = vmul.f32 %v2130, %v2124
  %v2254 = vmul.f32 %v2130, %v2125
  %v2255 = vmul.f32 %v2130, %v2126
  %v2256 = vmul.f32 %v2130, %v2127
  %v2257 = vmul.f32 %v2130, %v2128
  %v2258 = vmul.f32 %v2130, %v2129
  %v2259 = vadd.f32 %v1874, %v2131
  %v2260 = vadd.f32 %v1875, %v2132
  %v2261 = vadd.f32 %v1876, %v2133
  %v2262 = vadd.f32 %v1877, %v2134
  %v2263 = vadd.f32 %v1878, %v2135
  %v2264 = vadd.f32 %v1879, %v2136
  %v2265 = vadd.f32 %v1880, %v2137
  %v2266 = vadd.f32 %v1881, %v2138
  %v2267 = vadd.f32 %v1882, %v2139
  %v2268 = vadd.f32 %v1883, %v2140
  %v2269 = vadd.f32 %v1884, %v2141
  %v2270 = vadd.f32 %v1885, %v2142
  %v2271 = vadd.f32 %v1886, %v2143
  %v2272 = vadd.f32 %v1887, %v2144
  %v2273 = vadd.f32 %v1888, %v2145
  %v2274 = vadd.f32 %v1889, %v2146
  %v2275 = vadd.f32 %v1890, %v2147
  %v2276 = vadd.f32 %v1891, %v2148
  %v2277 = vadd.f32 %v1892, %v2149
  %v2278 = vadd.f32 %v1893, %v2150
  %v2279 = vadd.f32 %v1894, %v2151
  %v2280 = vadd.f32 %v1895, %v2152
  %v2281 = vadd.f32 %v1896, %v2153
  %v2282 = vadd.f32 %v1897, %v2154
  %v2283 = vadd.f32 %v1898, %v2155
  %v2284 = vadd.f32 %v1899, %v2156
  %v2285 = vadd.f32 %v1900, %v2157
  %v2286 = vadd.f32 %v1901, %v2158
  %v2287 = vadd.f32 %v1902, %v2159
  %v2288 = vadd.f32 %v1903, %v2160
  %v2289 = vadd.f32 %v1904, %v2161
  %v2290 = vadd.f32 %v1905, %v2162
  %v2291 = vadd.f32 %v1906, %v2163
  %v2292 = vadd.f32 %v1907, %v2164
  %v2293 = vadd.f32 %v1908, %v2165
  %v2294 = vadd.f32 %v1909, %v2166
  %v2295 = vadd.f32 %v1910, %v2167
  %v2296 = vadd.f32 %v1911, %v2168
  %v2297 = vadd.f32 %v1912, %v2169
  %v2298 = vadd.f32 %v1913, %v2170
  %v2299 = vadd.f32 %v1914, %v2171
  %v2300 = vadd.f32 %v1915, %v2172
  %v2301 = vadd.f32 %v1916, %v2173
  %v2302 = vadd.f32 %v1917, %v2174
  %v2303 = vadd.f32 %v1918, %v2175
  %v2304 = vadd.f32 %v1919, %v2176
  %v2305 = vadd.f32 %v1920, %v2177
  %v2306 = vadd.f32 %v1921, %v2178
  %v2307 = vadd.f32 %v1922, %v2179
  %v2308 = vadd.f32 %v1923, %v2180
  %v2309 = vadd.f32 %v1924, %v2181
  %v2310 = vadd.f32 %v1925, %v2182
  %v2311 = vadd.f32 %v1926, %v2183
  %v2312 = vadd.f32 %v1927, %v2184
  %v2313 = vadd.f32 %v1928, %v2185
  %v2314 = vadd.f32 %v1929, %v2186
  %v2315 = vadd.f32 %v1930, %v2187
  %v2316 = vadd.f32 %v1931, %v2188
  %v2317 = vadd.f32 %v1932, %v2189
  %v2318 = vadd.f32 %v1933, %v2190
  %v2319 = vadd.f32 %v1934, %v2191
  %v2320 = vadd.f32 %v1935, %v2192
  %v2321 = vadd.f32 %v1936, %v2193
  %v2322 = vadd.f32 %v1937, %v2194
  %v2323 = vadd.f32 %v1938, %v2195
  %v2324 = vadd.f32 %v1939, %v2196
  %v2325 = vadd.f32 %v1940, %v2197
  %v2326 = vadd.f32 %v1941, %v2198
  %v2327 = vadd.f32 %v1942, %v2199
  %v2328 = vadd.f32 %v1943, %v2200
  %v2329 = vadd.f32 %v1944, %v2201
  %v2330 = vadd.f32 %v1945, %v2202
  %v2331 = vadd.f32 %v1946, %v2203
  %v2332 = vadd.f32 %v1947, %v2204
  %v2333 = vadd.f32 %v1948, %v2205
  %v2334 = vadd.f32 %v1949, %v2206
  %v2335 = vadd.f32 %v1950, %v2207
  %v2336 = vadd.f32 %v1951, %v2208
  %v2337 = vadd.f32 %v1952, %v2209
  %v2338 = vadd.f32 %v1953, %v2210
  %v2339 = vadd.f32 %v1954, %v2211
  %v2340 = vadd.f32 %v1955, %v2212
  %v2341 = vadd.f32 %v1956, %v2213
  %v2342 = vadd.f32 %v1957, %v2214
  %v2343 = vadd.f32 %v1958, %v2215
  %v2344 = vadd.f32 %v1959, %v2216
  %v2345 = vadd.f32 %v1960, %v2217
  %v2346 = vadd.f32 %v1961, %v2218
  %v2347 = vadd.f32 %v1962, %v2219
  %v2348 = vadd.f32 %v1963, %v2220
  %v2349 = vadd.f32 %v1964, %v2221
  %v2350 = vadd.f32 %v1965, %v2222
  %v2351 = vadd.f32 %v1966, %v2223
  %v2352 = vadd.f32 %v1967, %v2224
  %v2353 = vadd.f32 %v1968, %v2225
  %v2354 = vadd.f32 %v1969, %v2226
  %v2355 = vadd.f32 %v1970, %v2227
  %v2356 = vadd.f32 %v1971, %v2228
  %v2357 = vadd.f32 %v1972, %v2229
  %v2358 = vadd.f32 %v1973, %v2230
  %v2359 = vadd.f32 %v1974, %v2231
  %v2360 = vadd.f32 %v1975, %v2232
  %v2361 = vadd.f32 %v1976, %v2233
  %v2362 = vadd.f32 %v1977, %v2234
  %v2363 = vadd.f32 %v1978, %v2235
  %v2364 = vadd.f32 %v1979, %v2236
  %v2365 = vadd.f32 %v1980, %v2237
  %v2366 = vadd.f32 %v1981, %v2238
  %v2367 = vadd.f32 %v1982, %v2239
  %v2368 = vadd.f32 %v1983, %v2240
  %v2369 = vadd.f32 %v1984, %v2241
  %v2370 = vadd.f32 %v1985, %v2242
  %v2371 = vadd.f32 %v1986, %v2243
  %v2372 = vadd.f32 %v1987, %v2244
  %v2373 = vadd.f32 %v1988, %v2245
  %v2374 = vadd.f32 %v1989, %v2246
  %v2375 = vadd.f32 %v1990, %v2247
  %v2376 = vadd.f32 %v1991, %v2248
  %v2377 = vadd.f32 %v1992, %v2249
  %v2378 = vadd.f32 %v1993, %v2250
  %v2379 = vadd.f32 %v1994, %v2251
  %v2380 = vadd.f32 %v1995, %v2252
  %v2381 = vadd.f32 %v1996, %v2253
  %v2382 = vadd.f32 %v1997, %v2254
  %v2383 = vadd.f32 %v1998, %v2255
  %v2384 = vadd.f32 %v1999, %v2256
  %v2385 = vadd.f32 %v2000, %v2257
  %v2386 = vadd.f32 %v2001, %v2258
  %v2387 = vpack.c.bf16 %v2261, %v2259
  %v2388 = vpack.c.bf16 %v2262, %v2260
  %v2389 = vpack.c.bf16 %v2265, %v2263
  %v2390 = vpack.c.bf16 %v2266, %v2264
  %v2391 = vpack.c.bf16 %v2269, %v2267
  %v2392 = vpack.c.bf16 %v2270, %v2268
  %v2393 = vpack.c.bf16 %v2273, %v2271
  %v2394 = vpack.c.bf16 %v2274, %v2272
  %v2395 = vpack.c.bf16 %v2277, %v2275
  %v2396 = vpack.c.bf16 %v2278, %v2276
  %v2397 = vpack.c.bf16 %v2281, %v2279
  %v2398 = vpack.c.bf16 %v2282, %v2280
  %v2399 = vpack.c.bf16 %v2285, %v2283
  %v2400 = vpack.c.bf16 %v2286, %v2284
  %v2401 = vpack.c.bf16 %v2289, %v2287
  %v2402 = vpack.c.bf16 %v2290, %v2288
  %v2403 = vpack.c.bf16 %v2293, %v2291
  %v2404 = vpack.c.bf16 %v2294, %v2292
  %v2405 = vpack.c.bf16 %v2297, %v2295
  %v2406 = vpack.c.bf16 %v2298, %v2296
  %v2407 = vpack.c.bf16 %v2301, %v2299
  %v2408 = vpack.c.bf16 %v2302, %v2300
  %v2409 = vpack.c.bf16 %v2305, %v2303
  %v2410 = vpack.c.bf16 %v2306, %v2304
  %v2411 = vpack.c.bf16 %v2309, %v2307
  %v2412 = vpack.c.bf16 %v2310, %v2308
  %v2413 = vpack.c.bf16 %v2313, %v2311
  %v2414 = vpack.c.bf16 %v2314, %v2312
  %v2415 = vpack.c.bf16 %v2317, %v2315
  %v2416 = vpack.c.bf16 %v2318, %v2316
  %v2417 = vpack.c.bf16 %v2321, %v2319
  %v2418 = vpack.c.bf16 %v2322, %v2320
  %v2419 = vpack.c.bf16 %v2325, %v2323
  %v2420 = vpack.c.bf16 %v2326, %v2324
  %v2421 = vpack.c.bf16 %v2329, %v2327
  %v2422 = vpack.c.bf16 %v2330, %v2328
  %v2423 = vpack.c.bf16 %v2333, %v2331
  %v2424 = vpack.c.bf16 %v2334, %v2332
  %v2425 = vpack.c.bf16 %v2337, %v2335
  %v2426 = vpack.c.bf16 %v2338, %v2336
  %v2427 = vpack.c.bf16 %v2341, %v2339
  %v2428 = vpack.c.bf16 %v2342, %v2340
  %v2429 = vpack.c.bf16 %v2345, %v2343
  %v2430 = vpack.c.bf16 %v2346, %v2344
  %v2431 = vpack.c.bf16 %v2349, %v2347
  %v2432 = vpack.c.bf16 %v2350, %v2348
  %v2433 = vpack.c.bf16 %v2353, %v2351
  %v2434 = vpack.c.bf16 %v2354, %v2352
  %v2435 = vpack.c.bf16 %v2357, %v2355
  %v2436 = vpack.c.bf16 %v2358, %v2356
  %v2437 = vpack.c.bf16 %v2361, %v2359
  %v2438 = vpack.c.bf16 %v2362, %v2360
  %v2439 = vpack.c.bf16 %v2365, %v2363
  %v2440 = vpack.c.bf16 %v2366, %v2364
  %v2441 = vpack.c.bf16 %v2369, %v2367
  %v2442 = vpack.c.bf16 %v2370, %v2368
  %v2443 = vpack.c.bf16 %v2373, %v2371
  %v2444 = vpack.c.bf16 %v2374, %v2372
  %v2445 = vpack.c.bf16 %v2377, %v2375
  %v2446 = vpack.c.bf16 %v2378, %v2376
  %v2447 = vpack.c.bf16 %v2381, %v2379
  %v2448 = vpack.c.bf16 %v2382, %v2380
  %v2449 = vpack.c.bf16 %v2385, %v2383
  %v2450 = vpack.c.bf16 %v2386, %v2384
  %v2515 = vunpack.c.l.b16 %v2387
  %v2516 = vunpack.c.l.b16 %v2388
  %v2517 = vunpack.c.h.b16 %v2387
  %v2518 = vunpack.c.h.b16 %v2388
  %v2519 = vunpack.c.l.b16 %v2389
  %v2520 = vunpack.c.l.b16 %v2390
  %v2521 = vunpack.c.h.b16 %v2389
  %v2522 = vunpack.c.h.b16 %v2390
  %v2523 = vunpack.c.l.b16 %v2391
  %v2524 = vunpack.c.l.b16 %v2392
  %v2525 = vunpack.c.h.b16 %v2391
  %v2526 = vunpack.c.h.b16 %v2392
  %v2527 = vunpack.c.l.b16 %v2393
  %v2528 = vunpack.c.l.b16 %v2394
  %v2529 = vunpack.c.h.b16 %v2393
  %v2530 = vunpack.c.h.b16 %v2394
  %v2531 = vunpack.c.l.b16 %v2395
  %v2532 = vunpack.c.l.b16 %v2396
  %v2533 = vunpack.c.h.b16 %v2395
  %v2534 = vunpack.c.h.b16 %v2396
  %v2535 = vunpack.c.l.b16 %v2397
  %v2536 = vunpack.c.l.b16 %v2398
  %v2537 = vunpack.c.h.b16 %v2397
  %v2538 = vunpack.c.h.b16 %v2398
  %v2539 = vunpack.c.l.b16 %v2399
  %v2540 = vunpack.c.l.b16 %v2400
  %v2541 = vunpack.c.h.b16 %v2399
  %v2542 = vunpack.c.h.b16 %v2400
  %v2543 = vunpack.c.l.b16 %v2401
  %v2544 = vunpack.c.l.b16 %v2402
  %v2545 = vunpack.c.h.b16 %v2401
  %v2546 = vunpack.c.h.b16 %v2402
  %v2547 = vunpack.c.l.b16 %v2403
  %v2548 = vunpack.c.l.b16 %v2404
  %v2549 = vunpack.c.h.b16 %v2403
  %v2550 = vunpack.c.h.b16 %v2404
  %v2551 = vunpack.c.l.b16 %v2405
  %v2552 = vunpack.c.l.b16 %v2406
  %v2553 = vunpack.c.h.b16 %v2405
  %v2554 = vunpack.c.h.b16 %v2406
  %v2555 = vunpack.c.l.b16 %v2407
  %v2556 = vunpack.c.l.b16 %v2408
  %v2557 = vunpack.c.h.b16 %v2407
  %v2558 = vunpack.c.h.b16 %v2408
  %v2559 = vunpack.c.l.b16 %v2409
  %v2560 = vunpack.c.l.b16 %v2410
  %v2561 = vunpack.c.h.b16 %v2409
  %v2562 = vunpack.c.h.b16 %v2410
  %v2563 = vunpack.c.l.b16 %v2411
  %v2564 = vunpack.c.l.b16 %v2412
  %v2565 = vunpack.c.h.b16 %v2411
  %v2566 = vunpack.c.h.b16 %v2412
  %v2567 = vunpack.c.l.b16 %v2413
  %v2568 = vunpack.c.l.b16 %v2414
  %v2569 = vunpack.c.h.b16 %v2413
  %v2570 = vunpack.c.h.b16 %v2414
  %v2571 = vunpack.c.l.b16 %v2415
  %v2572 = vunpack.c.l.b16 %v2416
  %v2573 = vunpack.c.h.b16 %v2415
  %v2574 = vunpack.c.h.b16 %v2416
  %v2575 = vunpack.c.l.b16 %v2417
  %v2576 = vunpack.c.l.b16 %v2418
  %v2577 = vunpack.c.h.b16 %v2417
  %v2578 = vunpack.c.h.b16 %v2418
  %v2579 = vunpack.c.l.b16 %v2419
  %v2580 = vunpack.c.l.b16 %v2420
  %v2581 = vunpack.c.h.b16 %v2419
  %v2582 = vunpack.c.h.b16 %v2420
  %v2583 = vunpack.c.l.b16 %v2421
  %v2584 = vunpack.c.l.b16 %v2422
  %v2585 = vunpack.c.h.b16 %v2421
  %v2586 = vunpack.c.h.b16 %v2422
  %v2587 = vunpack.c.l.b16 %v2423
  %v2588 = vunpack.c.l.b16 %v2424
  %v2589 = vunpack.c.h.b16 %v2423
  %v2590 = vunpack.c.h.b16 %v2424
  %v2591 = vunpack.c.l.b16 %v2425
  %v2592 = vunpack.c.l.b16 %v2426
  %v2593 = vunpack.c.h.b16 %v2425
  %v2594 = vunpack.c.h.b16 %v2426
  %v2595 = vunpack.c.l.b16 %v2427
  %v2596 = vunpack.c.l.b16 %v2428
  %v2597 = vunpack.c.h.b16 %v2427
  %v2598 = vunpack.c.h.b16 %v2428
  %v2599 = vunpack.c.l.b16 %v2429
  %v2600 = vunpack.c.l.b16 %v2430
  %v2601 = vunpack.c.h.b16 %v2429
  %v2602 = vunpack.c.h.b16 %v2430
  %v2603 = vunpack.c.l.b16 %v2431
  %v2604 = vunpack.c.l.b16 %v2432
  %v2605 = vunpack.c.h.b16 %v2431
  %v2606 = vunpack.c.h.b16 %v2432
  %v2607 = vunpack.c.l.b16 %v2433
  %v2608 = vunpack.c.l.b16 %v2434
  %v2609 = vunpack.c.h.b16 %v2433
  %v2610 = vunpack.c.h.b16 %v2434
  %v2611 = vunpack.c.l.b16 %v2435
  %v2612 = vunpack.c.l.b16 %v2436
  %v2613 = vunpack.c.h.b16 %v2435
  %v2614 = vunpack.c.h.b16 %v2436
  %v2615 = vunpack.c.l.b16 %v2437
  %v2616 = vunpack.c.l.b16 %v2438
  %v2617 = vunpack.c.h.b16 %v2437
  %v2618 = vunpack.c.h.b16 %v2438
  %v2619 = vunpack.c.l.b16 %v2439
  %v2620 = vunpack.c.l.b16 %v2440
  %v2621 = vunpack.c.h.b16 %v2439
  %v2622 = vunpack.c.h.b16 %v2440
  %v2623 = vunpack.c.l.b16 %v2441
  %v2624 = vunpack.c.l.b16 %v2442
  %v2625 = vunpack.c.h.b16 %v2441
  %v2626 = vunpack.c.h.b16 %v2442
  %v2627 = vunpack.c.l.b16 %v2443
  %v2628 = vunpack.c.l.b16 %v2444
  %v2629 = vunpack.c.h.b16 %v2443
  %v2630 = vunpack.c.h.b16 %v2444
  %v2631 = vunpack.c.l.b16 %v2445
  %v2632 = vunpack.c.l.b16 %v2446
  %v2633 = vunpack.c.h.b16 %v2445
  %v2634 = vunpack.c.h.b16 %v2446
  %v2635 = vunpack.c.l.b16 %v2447
  %v2636 = vunpack.c.l.b16 %v2448
  %v2637 = vunpack.c.h.b16 %v2447
  %v2638 = vunpack.c.h.b16 %v2448
  %v2639 = vunpack.c.l.b16 %v2449
  %v2640 = vunpack.c.l.b16 %v2450
  %v2641 = vunpack.c.h.b16 %v2449
  %v2642 = vunpack.c.h.b16 %v2450
  %v2643 = vpack.c.b16 %v2516, %v2515
  %v2644 = vpack.c.b16 %v2518, %v2517
  %v2645 = vpack.c.b16 %v2520, %v2519
  %v2646 = vpack.c.b16 %v2522, %v2521
  %v2647 = vpack.c.b16 %v2524, %v2523
  %v2648 = vpack.c.b16 %v2526, %v2525
  %v2649 = vpack.c.b16 %v2528, %v2527
  %v2650 = vpack.c.b16 %v2530, %v2529
  %v2651 = vpack.c.b16 %v2532, %v2531
  %v2652 = vpack.c.b16 %v2534, %v2533
  %v2653 = vpack.c.b16 %v2536, %v2535
  %v2654 = vpack.c.b16 %v2538, %v2537
  %v2655 = vpack.c.b16 %v2540, %v2539
  %v2656 = vpack.c.b16 %v2542, %v2541
  %v2657 = vpack.c.b16 %v2544, %v2543
  %v2658 = vpack.c.b16 %v2546, %v2545
  %v2659 = vpack.c.b16 %v2548, %v2547
  %v2660 = vpack.c.b16 %v2550, %v2549
  %v2661 = vpack.c.b16 %v2552, %v2551
  %v2662 = vpack.c.b16 %v2554, %v2553
  %v2663 = vpack.c.b16 %v2556, %v2555
  %v2664 = vpack.c.b16 %v2558, %v2557
  %v2665 = vpack.c.b16 %v2560, %v2559
  %v2666 = vpack.c.b16 %v2562, %v2561
  %v2667 = vpack.c.b16 %v2564, %v2563
  %v2668 = vpack.c.b16 %v2566, %v2565
  %v2669 = vpack.c.b16 %v2568, %v2567
  %v2670 = vpack.c.b16 %v2570, %v2569
  %v2671 = vpack.c.b16 %v2572, %v2571
  %v2672 = vpack.c.b16 %v2574, %v2573
  %v2673 = vpack.c.b16 %v2576, %v2575
  %v2674 = vpack.c.b16 %v2578, %v2577
  %v2675 = vpack.c.b16 %v2580, %v2579
  %v2676 = vpack.c.b16 %v2582, %v2581
  %v2677 = vpack.c.b16 %v2584, %v2583
  %v2678 = vpack.c.b16 %v2586, %v2585
  %v2679 = vpack.c.b16 %v2588, %v2587
  %v2680 = vpack.c.b16 %v2590, %v2589
  %v2681 = vpack.c.b16 %v2592, %v2591
  %v2682 = vpack.c.b16 %v2594, %v2593
  %v2683 = vpack.c.b16 %v2596, %v2595
  %v2684 = vpack.c.b16 %v2598, %v2597
  %v2685 = vpack.c.b16 %v2600, %v2599
  %v2686 = vpack.c.b16 %v2602, %v2601
  %v2687 = vpack.c.b16 %v2604, %v2603
  %v2688 = vpack.c.b16 %v2606, %v2605
  %v2689 = vpack.c.b16 %v2608, %v2607
  %v2690 = vpack.c.b16 %v2610, %v2609
  %v2691 = vpack.c.b16 %v2612, %v2611
  %v2692 = vpack.c.b16 %v2614, %v2613
  %v2693 = vpack.c.b16 %v2616, %v2615
  %v2694 = vpack.c.b16 %v2618, %v2617
  %v2695 = vpack.c.b16 %v2620, %v2619
  %v2696 = vpack.c.b16 %v2622, %v2621
  %v2697 = vpack.c.b16 %v2624, %v2623
  %v2698 = vpack.c.b16 %v2626, %v2625
  %v2699 = vpack.c.b16 %v2628, %v2627
  %v2700 = vpack.c.b16 %v2630, %v2629
  %v2701 = vpack.c.b16 %v2632, %v2631
  %v2702 = vpack.c.b16 %v2634, %v2633
  %v2703 = vpack.c.b16 %v2636, %v2635
  %v2704 = vpack.c.b16 %v2638, %v2637
  %v2705 = vpack.c.b16 %v2640, %v2639
  %v2706 = vpack.c.b16 %v2642, %v2641
  %2771 = vst [vmem:[%s3] sm:$0xff] %v2643
  %2772 = vst [vmem:[%s3 + $0x8] sm:$0xff] %v2644
  %2773 = vst [vmem:[%s3 + $0x10] sm:$0xff] %v2645
  %2774 = vst [vmem:[%s3 + $0x18] sm:$0xff] %v2646
  %2775 = vst [vmem:[%s3 + $0x20] sm:$0xff] %v2647
  %2776 = vst [vmem:[%s3 + $0x28] sm:$0xff] %v2648
  %2777 = vst [vmem:[%s3 + $0x30] sm:$0xff] %v2649
  %2778 = vst [vmem:[%s3 + $0x38] sm:$0xff] %v2650
  %2779 = vst [vmem:[%s3 + $0x40] sm:$0xff] %v2651
  %2780 = vst [vmem:[%s3 + $0x48] sm:$0xff] %v2652
  %2781 = vst [vmem:[%s3 + $0x50] sm:$0xff] %v2653
  %2782 = vst [vmem:[%s3 + $0x58] sm:$0xff] %v2654
  %2783 = vst [vmem:[%s3 + $0x60] sm:$0xff] %v2655
  %2784 = vst [vmem:[%s3 + $0x68] sm:$0xff] %v2656
  %2785 = vst [vmem:[%s3 + $0x70] sm:$0xff] %v2657
  %2786 = vst [vmem:[%s3 + $0x78] sm:$0xff] %v2658
  %2787 = vst [vmem:[%s3 + $0x80] sm:$0xff] %v2659
  %2788 = vst [vmem:[%s3 + $0x88] sm:$0xff] %v2660
  %2789 = vst [vmem:[%s3 + $0x90] sm:$0xff] %v2661
  %2790 = vst [vmem:[%s3 + $0x98] sm:$0xff] %v2662
  %2791 = vst [vmem:[%s3 + $0xa0] sm:$0xff] %v2663
  %2792 = vst [vmem:[%s3 + $0xa8] sm:$0xff] %v2664
  %2793 = vst [vmem:[%s3 + $0xb0] sm:$0xff] %v2665
  %2794 = vst [vmem:[%s3 + $0xb8] sm:$0xff] %v2666
  %2795 = vst [vmem:[%s3 + $0xc0] sm:$0xff] %v2667
  %2796 = vst [vmem:[%s3 + $0xc8] sm:$0xff] %v2668
  %2797 = vst [vmem:[%s3 + $0xd0] sm:$0xff] %v2669
  %2798 = vst [vmem:[%s3 + $0xd8] sm:$0xff] %v2670
  %2799 = vst [vmem:[%s3 + $0xe0] sm:$0xff] %v2671
  %2800 = vst [vmem:[%s3 + $0xe8] sm:$0xff] %v2672
  %2801 = vst [vmem:[%s3 + $0xf0] sm:$0xff] %v2673
  %2802 = vst [vmem:[%s3 + $0xf8] sm:$0xff] %v2674
  %2803 = vst [vmem:[%s3 + $0x100] sm:$0xff] %v2675
  %2804 = vst [vmem:[%s3 + $0x108] sm:$0xff] %v2676
  %2805 = vst [vmem:[%s3 + $0x110] sm:$0xff] %v2677
  %2806 = vst [vmem:[%s3 + $0x118] sm:$0xff] %v2678
  %2807 = vst [vmem:[%s3 + $0x120] sm:$0xff] %v2679
  %2808 = vst [vmem:[%s3 + $0x128] sm:$0xff] %v2680
  %2809 = vst [vmem:[%s3 + $0x130] sm:$0xff] %v2681
  %2810 = vst [vmem:[%s3 + $0x138] sm:$0xff] %v2682
  %2811 = vst [vmem:[%s3 + $0x140] sm:$0xff] %v2683
  %2812 = vst [vmem:[%s3 + $0x148] sm:$0xff] %v2684
  %2813 = vst [vmem:[%s3 + $0x150] sm:$0xff] %v2685
  %2814 = vst [vmem:[%s3 + $0x158] sm:$0xff] %v2686
  %2815 = vst [vmem:[%s3 + $0x160] sm:$0xff] %v2687
  %2816 = vst [vmem:[%s3 + $0x168] sm:$0xff] %v2688
  %2817 = vst [vmem:[%s3 + $0x170] sm:$0xff] %v2689
  %2818 = vst [vmem:[%s3 + $0x178] sm:$0xff] %v2690
  %2819 = vst [vmem:[%s3 + $0x180] sm:$0xff] %v2691
  %2820 = vst [vmem:[%s3 + $0x188] sm:$0xff] %v2692
  %2821 = vst [vmem:[%s3 + $0x190] sm:$0xff] %v2693
  %2822 = vst [vmem:[%s3 + $0x198] sm:$0xff] %v2694
  %2823 = vst [vmem:[%s3 + $0x1a0] sm:$0xff] %v2695
  %2824 = vst [vmem:[%s3 + $0x1a8] sm:$0xff] %v2696
  %2825 = vst [vmem:[%s3 + $0x1b0] sm:$0xff] %v2697
  %2826 = vst [vmem:[%s3 + $0x1b8] sm:$0xff] %v2698
  %2827 = vst [vmem:[%s3 + $0x1c0] sm:$0xff] %v2699
  %2828 = vst [vmem:[%s3 + $0x1c8] sm:$0xff] %v2700
  %2829 = vst [vmem:[%s3 + $0x1d0] sm:$0xff] %v2701
  %2830 = vst [vmem:[%s3 + $0x1d8] sm:$0xff] %v2702
  %2831 = vst [vmem:[%s3 + $0x1e0] sm:$0xff] %v2703
  %2832 = vst [vmem:[%s3 + $0x1e8] sm:$0xff] %v2704
  %2833 = vst [vmem:[%s3 + $0x1f0] sm:$0xff] %v2705
  %2834 = vst [vmem:[%s3 + $0x1f8] sm:$0xff] %v2706
  // Predicated region
  $region14: #{dgi_forward.5} parent=0 // pred_check
    _
  $region15: #{dgi_forward.5} parent=0 // pred_check_branch
    %2836 = sbr.rel (0) target = $region17
  $region16: #{dgi_forward.5} parent=0 // pred_region
    _
  $region17: #{dgi_forward.5} parent=0 // pred_fallthru
    _
  // Predicated region
  $region18: #{dgi_forward.5} parent=0 // pred_check
    _
  $region19: #{dgi_forward.5} parent=0 // pred_check_branch
    %2838 = sbr.rel (0) target = $region21
  $region20: #{dgi_forward.5} parent=0 // pred_region
    _
  $region21: #{dgi_forward.5} parent=0 // pred_fallthru
    _

</llo_original>
